<compile_context>
chip_gen: v6e
topology: v6e:2x2x1
jax: 0.10.0
libtpu: 0.0.40
codegen_flags: <defaults>
</compile_context>

<pallas_src>
import math
from functools import partial

import numpy as np
import jax
import jax.numpy as jnp
from jax import lax
from jax.experimental import pallas as pl
from jax.experimental.pallas import tpu as pltpu


# ----------------------------------------------------------------------------
# In-kernel helpers
# ----------------------------------------------------------------------------
def _lrelu(v):
    # LeakyReLU(0.2): max(v, 0.2 v) == v for v>=0, 0.2 v for v<0.
    return jnp.maximum(v, 0.2 * v)


def _instance_norm(y, g_ref, b_ref, eps):
    """y: (bt, rows, C) f32; per-(element, channel) statistics over `rows`."""
    m = jnp.mean(y, axis=1, keepdims=True)                     # (bt, 1, C)
    m2 = jnp.mean(y * y, axis=1, keepdims=True)                # one-pass variance
    var = jnp.maximum(m2 - m * m, 0.0)
    scale = lax.rsqrt(var + eps) * g_ref[...]                  # (bt, 1, C)
    shift = b_ref[...] - m * scale
    return y * scale + shift


def _edge_masks(hh, ww, cin):
    """0/1 masks for the +-1 column taps, built once and reused per conv."""
    hw = hh * ww
    col = lax.broadcasted_iota(jnp.int32, (hw, 1), 0) % ww     # w-coordinate
    lm = jnp.broadcast_to((col != 0).astype(jnp.float32), (hw, cin))
    rm = jnp.broadcast_to((col != ww - 1).astype(jnp.float32), (hw, cin))
    return lm, rm


def _im2col_3x3(x2d, lm, rm, hh, ww):
    """(hh*ww, cin) f32 -> (hh*ww, 9*cin) bf16 im2col patches (SAME padding).

    Zero-row padded buffer + column masks reproduce SAME padding; tap t =
    3*kh + kw occupies lane block [t*cin, (t+1)*cin).
    """
    hw = hh * ww
    cin = x2d.shape[1]
    pad = ((ww + 1 + 7) // 8) * 8                              # sublane-aligned zero border
    zpad = jnp.zeros((pad, cin), jnp.float32)
    buf = jnp.concatenate([zpad, x2d, zpad], axis=0)           # (hw + 2*pad, cin)
    patches = []
    for t in range(9):
        oi, oj = t // 3 - 1, t % 3 - 1                         # tap offsets in (h, w)
        start = pad + oi * ww + oj
        p = buf[start:start + hw]
        if oj == -1:                                           # reads x[h+oi, w-1]
            p = p * lm
        elif oj == 1:                                          # reads x[h+oi, w+1]
            p = p * rm
        patches.append(p)
    return jnp.concatenate(patches, axis=1).astype(jnp.bfloat16)   # (hw, 9*cin)


def _conv3x3(x3, w_ref, b_ref, lm, rm, hh, ww):
    """x3: (bt, hh*ww, cin) f32, w_ref: (9*cin, cout) bf16 -> (bt*hh*ww, cout) f32.

    Single MXU matmul over the stacked K = 9*cin contraction (batch merged
    into the M dimension)."""
    bt = x3.shape[0]
    cols = [_im2col_3x3(x3[b], lm, rm, hh, ww) for b in range(bt)]
    im = cols[0] if bt == 1 else jnp.concatenate(cols, axis=0)
    return jnp.dot(im, w_ref[...], preferred_element_type=jnp.float32) + b_ref[...]


# ----------------------------------------------------------------------------
# Fused ResBlk kernel (bt batch elements per grid step)
# ----------------------------------------------------------------------------
def _resblk_kernel(*refs, bt, hh, ww, normalize, downsample, learned_sc, eps):
    it = iter(refs)
    x_ref = next(it)
    pool_ref = next(it) if downsample else None
    if normalize:
        n1g_ref = next(it); n1b_ref = next(it)
        n2g_ref = next(it); n2b_ref = next(it)
    w1_ref = next(it); b1_ref = next(it)
    w2_ref = next(it); b2_ref = next(it)
    wsc_ref = next(it) if learned_sc else None
    o_ref = next(it)

    hw = hh * ww
    ph, pw = (hh // 2, ww // 2) if downsample else (hh, ww)
    phw = ph * pw

    x3 = x_ref[...]                                            # (bt, hw, cin) f32
    cin = x3.shape[2]

    lm1, rm1 = _edge_masks(hh, ww, cin)
    lm2, rm2 = (lm1, rm1) if not downsample else _edge_masks(ph, pw, cin)

    if downsample:
        pool = pool_ref[...]                                   # (phw, hw) bf16

        def _pool(a3):                                         # (bt, hw, c) -> (bt, phw, c)
            return jnp.stack(
                [jnp.dot(pool, a3[b].astype(jnp.bfloat16),
                         preferred_element_type=jnp.float32) for b in range(bt)],
                axis=0)

    # ---- residual: [IN] -> lrelu -> conv1 -> [pool] -> [IN] -> lrelu -> conv2
    r3 = x3
    if normalize:
        r3 = _instance_norm(r3, n1g_ref, n1b_ref, eps)
    r3 = _lrelu(r3)
    r = _conv3x3(r3, w1_ref, b1_ref, lm1, rm1, hh, ww)         # (bt*hw, cin)
    r3 = r.reshape(bt, hw, cin)
    if downsample:
        r3 = _pool(r3)                                         # (bt, phw, cin)
    if normalize:
        r3 = _instance_norm(r3, n2g_ref, n2b_ref, eps)
    r3 = _lrelu(r3)
    r = _conv3x3(r3, w2_ref, b2_ref, lm2, rm2, ph, pw)         # (bt*phw, cout)

    # ---- shortcut: pool FIRST (commutes with the per-pixel 1x1 conv), then 1x1
    if downsample:
        sc = _pool(x3).reshape(bt * phw, cin)
    else:
        sc = x3.reshape(bt * hw, cin)
    if learned_sc:
        sc = jnp.dot(sc.astype(jnp.bfloat16), wsc_ref[...],
                     preferred_element_type=jnp.float32)       # (bt*phw, cout)

    cout = r.shape[1]
    o_ref[...] = ((sc + r) * (1.0 / math.sqrt(2.0))).reshape(bt, phw, cout)


# ----------------------------------------------------------------------------
# Wrapper-side preparation and pallas_call
# ----------------------------------------------------------------------------
def _pool_matrix(hh, ww):
    """(hh//2 * ww//2, hh*ww) bf16 matrix implementing 2x2 average pooling."""
    ph, pw = hh // 2, ww // 2
    P = np.zeros((ph * pw, hh * ww), np.float32)
    for m in range(ph):
        for j in range(pw):
            r = m * pw + j
            for a in range(2):
                for b in range(2):
                    P[r, (2 * m + a) * ww + (2 * j + b)] = 0.25
    return jnp.asarray(P, dtype=jnp.bfloat16)                  # 0.25 exact in bf16


def prepare_resblk_params(tp):
    """Pre-pack PyTorch-layout weights ONCE into matmul-ready layouts."""
    cout, cin = tp["conv2_w"].shape[0], tp["conv2_w"].shape[1]
    cmid = tp["conv1_w"].shape[0]                              # == cin for ResBlk

    def pack3x3(w):                                            # (co,ci,3,3) -> (9*ci, co) bf16
        co, ci = w.shape[0], w.shape[1]
        return jnp.transpose(w, (2, 3, 1, 0)).reshape(9 * ci, co).astype(jnp.bfloat16)

    prep = {
        "w1": pack3x3(tp["conv1_w"]),
        "b1": tp["conv1_b"].reshape(1, cmid).astype(jnp.float32),
        "w2": pack3x3(tp["conv2_w"]),
        "b2": tp["conv2_b"].reshape(1, cout).astype(jnp.float32),
    }
    if "sc_w" in tp:                                           # learned 1x1 shortcut
        prep["wsc"] = tp["sc_w"].reshape(cout, cin).T.astype(jnp.bfloat16)
    for name in ("n1g", "n1b", "n2g", "n2b"):
        if name in tp:
            prep[name] = tp[name].reshape(1, -1).astype(jnp.float32)
    return prep


def _pick_batch_block(B, hw, cin, cout):
    """Largest divisor of B that (a) keeps >=2 grid steps when B>=2 (so both
    v7x TensorCores get work) and (b) keeps the per-step working set small."""
    def step_bytes(bt):
        return (2 * bt * hw * max(cin, cout) * 4               # in/out blocks
                + 4 * bt * hw * 9 * cin * 4)                   # im2col + temporaries
    best = 1
    for cand in range(1, B + 1):
        if B % cand:
            continue
        if B >= 2 and B // cand < 2:
            continue
        if step_bytes(cand) > (12 << 20):
            continue
        best = cand
    return best


@partial(jax.jit, static_argnames=("normalize", "downsample"))
def resblk_forward(x_nchw, prep, *, normalize=False, downsample=False):
    """ResBlk.forward.  x_nchw: (B, Cin, H, W) f32 -> (B, Cout, H', W') f32."""
    B, cin, H, W = x_nchw.shape
    cout = prep["w2"].shape[-1]
    learned_sc = cin != cout
    ph, pw = (H // 2, W // 2) if downsample else (H, W)
    hw, phw = H * W, ph * pw

    bt = _pick_batch_block(B, hw, cin, cout)
    x2d = jnp.transpose(x_nchw, (0, 2, 3, 1)).reshape(B, hw, cin)

    def const_spec(arr):                                       # grid-invariant block
        n = arr.ndim
        return pl.BlockSpec(arr.shape, lambda b, n=n: (0,) * n)

    inputs = [x2d]
    in_specs = [pl.BlockSpec((bt, hw, cin), lambda b: (b, 0, 0))]
    const_inputs = []
    if downsample:
        const_inputs.append(_pool_matrix(H, W))
    if normalize:
        const_inputs += [prep[n] for n in ("n1g", "n1b", "n2g", "n2b")]
    const_inputs += [prep[n] for n in ("w1", "b1", "w2", "b2")]
    if learned_sc:
        const_inputs.append(prep["wsc"])
    for a in const_inputs:
        inputs.append(a)
        in_specs.append(const_spec(a))

    # Explicit VMEM budget: double-buffered activation blocks + resident weights
    # + in-kernel im2col / padded-buffer temporaries, with headroom.
    weight_bytes = sum(int(np.prod(a.shape)) * a.dtype.itemsize for a in const_inputs)
    vmem_bytes = (2 * bt * hw * cin * 4 + 2 * bt * phw * cout * 4
                  + weight_bytes + 4 * bt * hw * 9 * cin * 4 + (4 << 20))
    vmem_limit = int(min(max(vmem_bytes, 16 << 20), 48 << 20))

    out = pl.pallas_call(
        partial(_resblk_kernel, bt=bt, hh=H, ww=W, normalize=normalize,
                downsample=downsample, learned_sc=learned_sc, eps=1e-5),
        out_shape=jax.ShapeDtypeStruct((B, phw, cout), jnp.float32),
        grid=(B // bt,),
        in_specs=in_specs,
        out_specs=pl.BlockSpec((bt, phw, cout), lambda b: (b, 0, 0)),
        compiler_params=pltpu.CompilerParams(
            dimension_semantics=("parallel",),
            vmem_limit_bytes=vmem_limit),
    )(*inputs)
    return jnp.transpose(out.reshape(B, ph, pw, cout), (0, 3, 1, 2))


# ----------------------------------------------------------------------------
# Pure-JAX f32 reference (PyTorch ResBlk semantics) for validation
# ----------------------------------------------------------------------------
def resblk_reference(x, tp, *, normalize, downsample, eps=1e-5):
    def inorm(y, g, b):
        m = jnp.mean(y, axis=(2, 3), keepdims=True)
        v = jnp.mean((y - m) ** 2, axis=(2, 3), keepdims=True)
        return (y - m) / jnp.sqrt(v + eps) * g[None, :, None, None] + b[None, :, None, None]

    def conv(y, w, b=None, pad=1):
        o = lax.conv_general_dilated(y, w, (1, 1), [(pad, pad), (pad, pad)],
                                     dimension_numbers=("NCHW", "OIHW", "NCHW"))
        return o if b is None else o + b[None, :, None, None]

    def pool(y):
        n, c, h, w = y.shape
        return y.reshape(n, c, h // 2, 2, w // 2, 2).mean(axis=(3, 5))

    lrelu = lambda y: jnp.where(y >= 0.0, y, 0.2 * y)
    cout, cin = tp["conv2_w"].shape[0], tp["conv2_w"].shape[1]

    r = x
    if normalize:
        r = inorm(r, tp["n1g"], tp["n1b"])
    r = lrelu(r)
    r = conv(r, tp["conv1_w"], tp["conv1_b"], pad=1)
    if downsample:
        r = pool(r)
    if normalize:
        r = inorm(r, tp["n2g"], tp["n2b"])
    r = lrelu(r)
    r = conv(r, tp["conv2_w"], tp["conv2_b"], pad=1)

    sc = x
    if cin != cout:
        sc = conv(sc, tp["sc_w"], None, pad=0)
    if downsample:
        sc = pool(sc)
    return (sc + r) / math.sqrt(2.0)


# ----------------------------------------------------------------------------
if __name__ == "__main__":
    B, H, W = 2, 16, 16
    DIM_IN, DIM_OUT = 64, 128

    key = jax.random.PRNGKey(0)
    ks = jax.random.split(key, 16)

    def conv_init(k, co, ci, ksz):
        return jax.random.normal(k, (co, ci, ksz, ksz), jnp.float32) / np.sqrt(ci * ksz * ksz)

    x = jax.random.normal(ks[0], (B, DIM_IN, H, W), jnp.float32)

    # --- config 1: ResBlk(64, 128, normalize=True, downsample=True)  (learned 1x1 shortcut)
    tp1 = dict(
        conv1_w=conv_init(ks[1], DIM_IN, DIM_IN, 3),
        conv1_b=0.1 * jax.random.normal(ks[2], (DIM_IN,), jnp.float32),
        conv2_w=conv_init(ks[3], DIM_OUT, DIM_IN, 3),
        conv2_b=0.1 * jax.random.normal(ks[4], (DIM_OUT,), jnp.float32),
        sc_w=conv_init(ks[5], DIM_OUT, DIM_IN, 1),
        n1g=1.0 + 0.1 * jax.random.normal(ks[6], (DIM_IN,), jnp.float32),
        n1b=0.1 * jax.random.normal(ks[7], (DIM_IN,), jnp.float32),
        n2g=1.0 + 0.1 * jax.random.normal(ks[8], (DIM_IN,), jnp.float32),
        n2b=0.1 * jax.random.normal(ks[9], (DIM_IN,), jnp.float32),
    )
    prep1 = prepare_resblk_params(tp1)
    out1 = resblk_forward(x, prep1, normalize=True, downsample=True)
    out1 = jax.block_until_ready(out1)
    assert out1.shape == (B, DIM_OUT, H // 2, W // 2), out1.shape
    ref1 = resblk_reference(x, tp1, normalize=True, downsample=True)
    np.testing.assert_allclose(np.asarray(out1), np.asarray(ref1), rtol=8e-2, atol=8e-2)

    # --- config 2: ResBlk(64, 64)  (identity shortcut, no norm, no downsample)
    tp2 = dict(
        conv1_w=conv_init(ks[10], DIM_IN, DIM_IN, 3),
        conv1_b=0.1 * jax.random.normal(ks[11], (DIM_IN,), jnp.float32),
        conv2_w=conv_init(ks[12], DIM_IN, DIM_IN, 3),
        conv2_b=0.1 * jax.random.normal(ks[13], (DIM_IN,), jnp.float32),
    )
    out2 = resblk_forward(x, prepare_resblk_params(tp2), normalize=False, downsample=False)
    out2 = jax.block_until_ready(out2)
    assert out2.shape == (B, DIM_IN, H, W), out2.shape
    ref2 = resblk_reference(x, tp2, normalize=False, downsample=False)
    np.testing.assert_allclose(np.asarray(out2), np.asarray(ref2), rtol=8e-2, atol=8e-2)

    # --- config 3: B=4 exercises the multi-batch-per-grid-step path (bt=2),
    #     including per-element instance-norm statistics.
    x4 = jax.random.normal(ks[14], (4, DIM_IN, H, W), jnp.float32)
    out3 = resblk_forward(x4, prep1, normalize=True, downsample=True)
    out3 = jax.block_until_ready(out3)
    assert out3.shape == (4, DIM_OUT, H // 2, W // 2), out3.shape
    ref3 = resblk_reference(x4, tp1, normalize=True, downsample=True)
    np.testing.assert_allclose(np.asarray(out3), np.asarray(ref3), rtol=8e-2, atol=8e-2)

    assert (bool(jnp.all(jnp.isfinite(out1))) and bool(jnp.all(jnp.isfinite(out2)))
            and bool(jnp.all(jnp.isfinite(out3))))
    print("KERNEL_OK")
</pallas_src>

<mosaic_0001>
module attributes {stable_mosaic.version = 11 : i64} {
  func.func @_resblk_kernel(%arg0: i32, %arg1: memref<1x256x64xf32, #tpu.memory_space<vmem>>, %arg2: memref<64x256xbf16, #tpu.memory_space<vmem>>, %arg3: memref<1x64xf32, #tpu.memory_space<vmem>>, %arg4: memref<1x64xf32, #tpu.memory_space<vmem>>, %arg5: memref<1x64xf32, #tpu.memory_space<vmem>>, %arg6: memref<1x64xf32, #tpu.memory_space<vmem>>, %arg7: memref<576x64xbf16, #tpu.memory_space<vmem>>, %arg8: memref<1x64xf32, #tpu.memory_space<vmem>>, %arg9: memref<576x128xbf16, #tpu.memory_space<vmem>>, %arg10: memref<1x128xf32, #tpu.memory_space<vmem>>, %arg11: memref<64x128xbf16, #tpu.memory_space<vmem>>, %arg12: memref<1x64x128xf32, #tpu.memory_space<vmem>>) attributes {dimension_semantics = [#tpu.dimension_semantics<parallel>], iteration_bounds = array<i64: 2>, scalar_prefetch = 0 : i64, scratch_operands = 0 : i64, tpu.core_type = #tpu.core_type<tc>, window_params = [{transform_indices = @transform_0, window_bounds = array<i64: 1, 256, 64>}, {pipeline_mode = #tpu.pipeline_mode<synchronous>, transform_indices = @transform_1, window_bounds = array<i64: 64, 256>}, {pipeline_mode = #tpu.pipeline_mode<synchronous>, transform_indices = @transform_2, window_bounds = array<i64: 1, 64>}, {pipeline_mode = #tpu.pipeline_mode<synchronous>, transform_indices = @transform_3, window_bounds = array<i64: 1, 64>}, {pipeline_mode = #tpu.pipeline_mode<synchronous>, transform_indices = @transform_4, window_bounds = array<i64: 1, 64>}, {pipeline_mode = #tpu.pipeline_mode<synchronous>, transform_indices = @transform_5, window_bounds = array<i64: 1, 64>}, {pipeline_mode = #tpu.pipeline_mode<synchronous>, transform_indices = @transform_6, window_bounds = array<i64: 576, 64>}, {pipeline_mode = #tpu.pipeline_mode<synchronous>, transform_indices = @transform_7, window_bounds = array<i64: 1, 64>}, {pipeline_mode = #tpu.pipeline_mode<synchronous>, transform_indices = @transform_8, window_bounds = array<i64: 576, 128>}, {pipeline_mode = #tpu.pipeline_mode<synchronous>, transform_indices = @transform_9, window_bounds = array<i64: 1, 128>}, {pipeline_mode = #tpu.pipeline_mode<synchronous>, transform_indices = @transform_10, window_bounds = array<i64: 64, 128>}, {transform_indices = @transform_11, window_bounds = array<i64: 1, 64, 128>}]} {
    %c0 = arith.constant 0 : index
    %c0_0 = arith.constant 0 : index
    %c0_1 = arith.constant 0 : index
    %0 = vector.load %arg1[%c0, %c0_0, %c0_1] : memref<1x256x64xf32, #tpu.memory_space<vmem>>, vector<1x256x64xf32>
    %1 = tpu.iota {dimensions = array<i32: 0>} : vector<256x1xi32>
    %c16_i32 = arith.constant 16 : i32
    %c0_i32 = arith.constant 0 : i32
    %2 = arith.cmpi eq, %c16_i32, %c0_i32 : i32
    %c1_i32 = arith.constant 1 : i32
    %3 = arith.select %2, %c1_i32, %c16_i32 : i32
    %4 = vector.broadcast %3 : i32 to vector<256x1xi32>
    %5 = arith.remsi %1, %4 : vector<256x1xi32>
    %c0_i32_2 = arith.constant 0 : i32
    %6 = vector.broadcast %c0_i32_2 : i32 to vector<256x1xi32>
    %7 = arith.cmpi ne, %5, %6 : vector<256x1xi32>
    %c0_i32_3 = arith.constant 0 : i32
    %8 = vector.broadcast %c0_i32_3 : i32 to vector<256x1xi32>
    %9 = arith.cmpi slt, %5, %8 : vector<256x1xi32>
    %c0_i32_4 = arith.constant 0 : i32
    %10 = arith.cmpi slt, %3, %c0_i32_4 : i32
    %11 = vector.broadcast %10 : i1 to vector<256x1xi1>
    %12 = vector.broadcast %11 : vector<256x1xi1> to vector<256x1xi1>
    %13 = arith.xori %9, %12 : vector<256x1xi1>
    %14 = arith.andi %13, %7 : vector<256x1xi1>
    %15 = vector.broadcast %3 : i32 to vector<256x1xi32>
    %16 = arith.addi %5, %15 : vector<256x1xi32>
    %17 = arith.select %14, %16, %5 : vector<256x1xi1>, vector<256x1xi32>
    %c0_i32_5 = arith.constant 0 : i32
    %18 = vector.broadcast %c0_i32_5 : i32 to vector<256x1xi32>
    %19 = arith.cmpi ne, %17, %18 : vector<256x1xi32>
    %20 = arith.extui %19 : vector<256x1xi1> to vector<256x1xi32>
    %21 = arith.sitofp %20 : vector<256x1xi32> to vector<256x1xf32>
    %22 = vector.shape_cast %21 : vector<256x1xf32> to vector<256x1xf32>
    %23 = vector.broadcast %22 : vector<256x1xf32> to vector<256x64xf32>
    %c15_i32 = arith.constant 15 : i32
    %24 = vector.broadcast %c15_i32 : i32 to vector<256x1xi32>
    %25 = arith.cmpi ne, %17, %24 : vector<256x1xi32>
    %26 = arith.extui %25 : vector<256x1xi1> to vector<256x1xi32>
    %27 = arith.sitofp %26 : vector<256x1xi32> to vector<256x1xf32>
    %28 = vector.shape_cast %27 : vector<256x1xf32> to vector<256x1xf32>
    %29 = vector.broadcast %28 : vector<256x1xf32> to vector<256x64xf32>
    %30 = tpu.iota {dimensions = array<i32: 0>} : vector<64x1xi32>
    %c8_i32 = arith.constant 8 : i32
    %c0_i32_6 = arith.constant 0 : i32
    %31 = arith.cmpi eq, %c8_i32, %c0_i32_6 : i32
    %c1_i32_7 = arith.constant 1 : i32
    %32 = arith.select %31, %c1_i32_7, %c8_i32 : i32
    %33 = vector.broadcast %32 : i32 to vector<64x1xi32>
    %34 = arith.remsi %30, %33 : vector<64x1xi32>
    %c0_i32_8 = arith.constant 0 : i32
    %35 = vector.broadcast %c0_i32_8 : i32 to vector<64x1xi32>
    %36 = arith.cmpi ne, %34, %35 : vector<64x1xi32>
    %c0_i32_9 = arith.constant 0 : i32
    %37 = vector.broadcast %c0_i32_9 : i32 to vector<64x1xi32>
    %38 = arith.cmpi slt, %34, %37 : vector<64x1xi32>
    %c0_i32_10 = arith.constant 0 : i32
    %39 = arith.cmpi slt, %32, %c0_i32_10 : i32
    %40 = vector.broadcast %39 : i1 to vector<64x1xi1>
    %41 = vector.broadcast %40 : vector<64x1xi1> to vector<64x1xi1>
    %42 = arith.xori %38, %41 : vector<64x1xi1>
    %43 = arith.andi %42, %36 : vector<64x1xi1>
    %44 = vector.broadcast %32 : i32 to vector<64x1xi32>
    %45 = arith.addi %34, %44 : vector<64x1xi32>
    %46 = arith.select %43, %45, %34 : vector<64x1xi1>, vector<64x1xi32>
    %c0_i32_11 = arith.constant 0 : i32
    %47 = vector.broadcast %c0_i32_11 : i32 to vector<64x1xi32>
    %48 = arith.cmpi ne, %46, %47 : vector<64x1xi32>
    %49 = arith.extui %48 : vector<64x1xi1> to vector<64x1xi32>
    %50 = arith.sitofp %49 : vector<64x1xi32> to vector<64x1xf32>
    %51 = vector.shape_cast %50 : vector<64x1xf32> to vector<64x1xf32>
    %52 = vector.broadcast %51 : vector<64x1xf32> to vector<64x64xf32>
    %c7_i32 = arith.constant 7 : i32
    %53 = vector.broadcast %c7_i32 : i32 to vector<64x1xi32>
    %54 = arith.cmpi ne, %46, %53 : vector<64x1xi32>
    %55 = arith.extui %54 : vector<64x1xi1> to vector<64x1xi32>
    %56 = arith.sitofp %55 : vector<64x1xi32> to vector<64x1xf32>
    %57 = vector.shape_cast %56 : vector<64x1xf32> to vector<64x1xf32>
    %58 = vector.broadcast %57 : vector<64x1xf32> to vector<64x64xf32>
    %c0_12 = arith.constant 0 : index
    %c0_13 = arith.constant 0 : index
    %59 = vector.load %arg2[%c0_12, %c0_13] : memref<64x256xbf16, #tpu.memory_space<vmem>>, vector<64x256xbf16>
    %cst = arith.constant dense<0.000000e+00> : vector<1x64xf32>
    %60 = vector.multi_reduction <add>, %0, %cst [1] : vector<1x256x64xf32> to vector<1x64xf32>
    %61 = vector.shape_cast %60 : vector<1x64xf32> to vector<1x1x64xf32>
    %cst_14 = arith.constant 2.560000e+02 : f32
    %62 = vector.broadcast %cst_14 : f32 to vector<1x1x64xf32>
    %63 = arith.divf %61, %62 : vector<1x1x64xf32>
    %64 = arith.mulf %0, %0 : vector<1x256x64xf32>
    %cst_15 = arith.constant dense<0.000000e+00> : vector<1x64xf32>
    %65 = vector.multi_reduction <add>, %64, %cst_15 [1] : vector<1x256x64xf32> to vector<1x64xf32>
    %66 = vector.shape_cast %65 : vector<1x64xf32> to vector<1x1x64xf32>
    %cst_16 = arith.constant 2.560000e+02 : f32
    %67 = vector.broadcast %cst_16 : f32 to vector<1x1x64xf32>
    %68 = arith.divf %66, %67 : vector<1x1x64xf32>
    %69 = arith.mulf %63, %63 : vector<1x1x64xf32>
    %70 = arith.subf %68, %69 : vector<1x1x64xf32>
    %cst_17 = arith.constant 0.000000e+00 : f32
    %71 = vector.broadcast %cst_17 : f32 to vector<1x1x64xf32>
    %72 = arith.maximumf %70, %71 : vector<1x1x64xf32>
    %cst_18 = arith.constant 9.99999974E-6 : f32
    %73 = vector.broadcast %cst_18 : f32 to vector<1x1x64xf32>
    %74 = arith.addf %72, %73 : vector<1x1x64xf32>
    %75 = math.rsqrt %74 : vector<1x1x64xf32>
    %c0_19 = arith.constant 0 : index
    %c0_20 = arith.constant 0 : index
    %76 = vector.load %arg3[%c0_19, %c0_20] : memref<1x64xf32, #tpu.memory_space<vmem>>, vector<1x64xf32>
    %77 = vector.shape_cast %76 : vector<1x64xf32> to vector<1x1x64xf32>
    %78 = arith.mulf %75, %77 : vector<1x1x64xf32>
    %c0_21 = arith.constant 0 : index
    %c0_22 = arith.constant 0 : index
    %79 = vector.load %arg4[%c0_21, %c0_22] : memref<1x64xf32, #tpu.memory_space<vmem>>, vector<1x64xf32>
    %80 = arith.mulf %63, %78 : vector<1x1x64xf32>
    %81 = vector.shape_cast %79 : vector<1x64xf32> to vector<1x1x64xf32>
    %82 = arith.subf %81, %80 : vector<1x1x64xf32>
    %83 = vector.broadcast %78 : vector<1x1x64xf32> to vector<1x256x64xf32>
    %84 = arith.mulf %0, %83 : vector<1x256x64xf32>
    %85 = vector.broadcast %82 : vector<1x1x64xf32> to vector<1x256x64xf32>
    %86 = arith.addf %84, %85 : vector<1x256x64xf32>
    %cst_23 = arith.constant 2.000000e-01 : f32
    %87 = vector.broadcast %cst_23 : f32 to vector<1x256x64xf32>
    %88 = arith.mulf %87, %86 : vector<1x256x64xf32>
    %89 = arith.maximumf %86, %88 : vector<1x256x64xf32>
    %90 = vector.shape_cast %89 : vector<1x256x64xf32> to vector<256x64xf32>
    %cst_24 = arith.constant 0.000000e+00 : f32
    %91 = vector.broadcast %cst_24 : f32 to vector<24x64xf32>
    %92 = tpu.concatenate %91, %90, %91 in 0 : vector<24x64xf32>, vector<256x64xf32>, vector<24x64xf32> -> vector<304x64xf32>
    %93 = vector.extract_strided_slice %92 {offsets = [7, 0], sizes = [256, 64], strides = [1, 1]} : vector<304x64xf32> to vector<256x64xf32>
    %94 = arith.mulf %93, %23 : vector<256x64xf32>
    %95 = vector.extract_strided_slice %92 {offsets = [8, 0], sizes = [256, 64], strides = [1, 1]} : vector<304x64xf32> to vector<256x64xf32>
    %96 = vector.extract_strided_slice %92 {offsets = [9, 0], sizes = [256, 64], strides = [1, 1]} : vector<304x64xf32> to vector<256x64xf32>
    %97 = arith.mulf %96, %29 : vector<256x64xf32>
    %98 = vector.extract_strided_slice %92 {offsets = [23, 0], sizes = [256, 64], strides = [1, 1]} : vector<304x64xf32> to vector<256x64xf32>
    %99 = arith.mulf %98, %23 : vector<256x64xf32>
    %100 = vector.extract_strided_slice %92 {offsets = [24, 0], sizes = [256, 64], strides = [1, 1]} : vector<304x64xf32> to vector<256x64xf32>
    %101 = vector.extract_strided_slice %92 {offsets = [25, 0], sizes = [256, 64], strides = [1, 1]} : vector<304x64xf32> to vector<256x64xf32>
    %102 = arith.mulf %101, %29 : vector<256x64xf32>
    %103 = vector.extract_strided_slice %92 {offsets = [39, 0], sizes = [256, 64], strides = [1, 1]} : vector<304x64xf32> to vector<256x64xf32>
    %104 = arith.mulf %103, %23 : vector<256x64xf32>
    %105 = vector.extract_strided_slice %92 {offsets = [40, 0], sizes = [256, 64], strides = [1, 1]} : vector<304x64xf32> to vector<256x64xf32>
    %106 = vector.extract_strided_slice %92 {offsets = [41, 0], sizes = [256, 64], strides = [1, 1]} : vector<304x64xf32> to vector<256x64xf32>
    %107 = arith.mulf %106, %29 : vector<256x64xf32>
    %108 = tpu.concatenate %94, %95, %97, %99, %100, %102, %104, %105, %107 in 1 : vector<256x64xf32>, vector<256x64xf32>, vector<256x64xf32>, vector<256x64xf32>, vector<256x64xf32>, vector<256x64xf32>, vector<256x64xf32>, vector<256x64xf32>, vector<256x64xf32> -> vector<256x576xf32>
    %109 = arith.truncf %108 : vector<256x576xf32> to vector<256x576xbf16>
    %c0_25 = arith.constant 0 : index
    %c0_26 = arith.constant 0 : index
    %110 = vector.load %arg7[%c0_25, %c0_26] : memref<576x64xbf16, #tpu.memory_space<vmem>>, vector<576x64xbf16>
    %cst_27 = arith.constant dense<0.000000e+00> : vector<256x64xf32>
    %111 = tpu.matmul %109, %110, %cst_27 {dimension_numbers = #tpu.dot_dimension_numbers<[1], [0], [0], [1], [0, 0, 1, 1], [], []>} : vector<256x576xbf16>, vector<576x64xbf16>, vector<256x64xf32> -> vector<256x64xf32>
    %c0_28 = arith.constant 0 : index
    %c0_29 = arith.constant 0 : index
    %112 = vector.load %arg8[%c0_28, %c0_29] : memref<1x64xf32, #tpu.memory_space<vmem>>, vector<1x64xf32>
    %113 = vector.broadcast %112 : vector<1x64xf32> to vector<256x64xf32>
    %114 = arith.addf %111, %113 : vector<256x64xf32>
    %115 = vector.shape_cast %114 : vector<256x64xf32> to vector<1x256x64xf32>
    %116 = vector.shape_cast %115 : vector<1x256x64xf32> to vector<256x64xf32>
    %117 = arith.truncf %116 : vector<256x64xf32> to vector<256x64xbf16>
    %cst_30 = arith.constant dense<0.000000e+00> : vector<64x64xf32>
    %118 = tpu.matmul %59, %117, %cst_30 {dimension_numbers = #tpu.dot_dimension_numbers<[1], [0], [0], [1], [0, 0, 1, 1], [], []>} : vector<64x256xbf16>, vector<256x64xbf16>, vector<64x64xf32> -> vector<64x64xf32>
    %119 = vector.shape_cast %118 : vector<64x64xf32> to vector<1x64x64xf32>
    %cst_31 = arith.constant dense<0.000000e+00> : vector<1x64xf32>
    %120 = vector.multi_reduction <add>, %119, %cst_31 [1] : vector<1x64x64xf32> to vector<1x64xf32>
    %121 = vector.shape_cast %120 : vector<1x64xf32> to vector<1x1x64xf32>
    %cst_32 = arith.constant 6.400000e+01 : f32
    %122 = vector.broadcast %cst_32 : f32 to vector<1x1x64xf32>
    %123 = arith.divf %121, %122 : vector<1x1x64xf32>
    %124 = arith.mulf %119, %119 : vector<1x64x64xf32>
    %cst_33 = arith.constant dense<0.000000e+00> : vector<1x64xf32>
    %125 = vector.multi_reduction <add>, %124, %cst_33 [1] : vector<1x64x64xf32> to vector<1x64xf32>
    %126 = vector.shape_cast %125 : vector<1x64xf32> to vector<1x1x64xf32>
    %cst_34 = arith.constant 6.400000e+01 : f32
    %127 = vector.broadcast %cst_34 : f32 to vector<1x1x64xf32>
    %128 = arith.divf %126, %127 : vector<1x1x64xf32>
    %129 = arith.mulf %123, %123 : vector<1x1x64xf32>
    %130 = arith.subf %128, %129 : vector<1x1x64xf32>
    %cst_35 = arith.constant 0.000000e+00 : f32
    %131 = vector.broadcast %cst_35 : f32 to vector<1x1x64xf32>
    %132 = arith.maximumf %130, %131 : vector<1x1x64xf32>
    %cst_36 = arith.constant 9.99999974E-6 : f32
    %133 = vector.broadcast %cst_36 : f32 to vector<1x1x64xf32>
    %134 = arith.addf %132, %133 : vector<1x1x64xf32>
    %135 = math.rsqrt %134 : vector<1x1x64xf32>
    %c0_37 = arith.constant 0 : index
    %c0_38 = arith.constant 0 : index
    %136 = vector.load %arg5[%c0_37, %c0_38] : memref<1x64xf32, #tpu.memory_space<vmem>>, vector<1x64xf32>
    %137 = vector.shape_cast %136 : vector<1x64xf32> to vector<1x1x64xf32>
    %138 = arith.mulf %135, %137 : vector<1x1x64xf32>
    %c0_39 = arith.constant 0 : index
    %c0_40 = arith.constant 0 : index
    %139 = vector.load %arg6[%c0_39, %c0_40] : memref<1x64xf32, #tpu.memory_space<vmem>>, vector<1x64xf32>
    %140 = arith.mulf %123, %138 : vector<1x1x64xf32>
    %141 = vector.shape_cast %139 : vector<1x64xf32> to vector<1x1x64xf32>
    %142 = arith.subf %141, %140 : vector<1x1x64xf32>
    %143 = vector.broadcast %138 : vector<1x1x64xf32> to vector<1x64x64xf32>
    %144 = arith.mulf %119, %143 : vector<1x64x64xf32>
    %145 = vector.broadcast %142 : vector<1x1x64xf32> to vector<1x64x64xf32>
    %146 = arith.addf %144, %145 : vector<1x64x64xf32>
    %cst_41 = arith.constant 2.000000e-01 : f32
    %147 = vector.broadcast %cst_41 : f32 to vector<1x64x64xf32>
    %148 = arith.mulf %147, %146 : vector<1x64x64xf32>
    %149 = arith.maximumf %146, %148 : vector<1x64x64xf32>
    %150 = vector.shape_cast %149 : vector<1x64x64xf32> to vector<64x64xf32>
    %cst_42 = arith.constant 0.000000e+00 : f32
    %151 = vector.broadcast %cst_42 : f32 to vector<16x64xf32>
    %152 = tpu.concatenate %151, %150, %151 in 0 : vector<16x64xf32>, vector<64x64xf32>, vector<16x64xf32> -> vector<96x64xf32>
    %153 = vector.extract_strided_slice %152 {offsets = [7, 0], sizes = [64, 64], strides = [1, 1]} : vector<96x64xf32> to vector<64x64xf32>
    %154 = arith.mulf %153, %52 : vector<64x64xf32>
    %155 = vector.extract_strided_slice %152 {offsets = [8, 0], sizes = [64, 64], strides = [1, 1]} : vector<96x64xf32> to vector<64x64xf32>
    %156 = vector.extract_strided_slice %152 {offsets = [9, 0], sizes = [64, 64], strides = [1, 1]} : vector<96x64xf32> to vector<64x64xf32>
    %157 = arith.mulf %156, %58 : vector<64x64xf32>
    %158 = vector.extract_strided_slice %152 {offsets = [15, 0], sizes = [64, 64], strides = [1, 1]} : vector<96x64xf32> to vector<64x64xf32>
    %159 = arith.mulf %158, %52 : vector<64x64xf32>
    %160 = vector.extract_strided_slice %152 {offsets = [16, 0], sizes = [64, 64], strides = [1, 1]} : vector<96x64xf32> to vector<64x64xf32>
    %161 = vector.extract_strided_slice %152 {offsets = [17, 0], sizes = [64, 64], strides = [1, 1]} : vector<96x64xf32> to vector<64x64xf32>
    %162 = arith.mulf %161, %58 : vector<64x64xf32>
    %163 = vector.extract_strided_slice %152 {offsets = [23, 0], sizes = [64, 64], strides = [1, 1]} : vector<96x64xf32> to vector<64x64xf32>
    %164 = arith.mulf %163, %52 : vector<64x64xf32>
    %165 = vector.extract_strided_slice %152 {offsets = [24, 0], sizes = [64, 64], strides = [1, 1]} : vector<96x64xf32> to vector<64x64xf32>
    %166 = vector.extract_strided_slice %152 {offsets = [25, 0], sizes = [64, 64], strides = [1, 1]} : vector<96x64xf32> to vector<64x64xf32>
    %167 = arith.mulf %166, %58 : vector<64x64xf32>
    %168 = tpu.concatenate %154, %155, %157, %159, %160, %162, %164, %165, %167 in 1 : vector<64x64xf32>, vector<64x64xf32>, vector<64x64xf32>, vector<64x64xf32>, vector<64x64xf32>, vector<64x64xf32>, vector<64x64xf32>, vector<64x64xf32>, vector<64x64xf32> -> vector<64x576xf32>
    %169 = arith.truncf %168 : vector<64x576xf32> to vector<64x576xbf16>
    %c0_43 = arith.constant 0 : index
    %c0_44 = arith.constant 0 : index
    %170 = vector.load %arg9[%c0_43, %c0_44] : memref<576x128xbf16, #tpu.memory_space<vmem>>, vector<576x128xbf16>
    %cst_45 = arith.constant dense<0.000000e+00> : vector<64x128xf32>
    %171 = tpu.matmul %169, %170, %cst_45 {dimension_numbers = #tpu.dot_dimension_numbers<[1], [0], [0], [1], [0, 0, 1, 1], [], []>} : vector<64x576xbf16>, vector<576x128xbf16>, vector<64x128xf32> -> vector<64x128xf32>
    %c0_46 = arith.constant 0 : index
    %c0_47 = arith.constant 0 : index
    %172 = vector.load %arg10[%c0_46, %c0_47] : memref<1x128xf32, #tpu.memory_space<vmem>>, vector<1x128xf32>
    %173 = vector.broadcast %172 : vector<1x128xf32> to vector<64x128xf32>
    %174 = arith.addf %171, %173 : vector<64x128xf32>
    %175 = vector.shape_cast %0 : vector<1x256x64xf32> to vector<256x64xf32>
    %176 = arith.truncf %175 : vector<256x64xf32> to vector<256x64xbf16>
    %cst_48 = arith.constant dense<0.000000e+00> : vector<64x64xf32>
    %177 = tpu.matmul %59, %176, %cst_48 {dimension_numbers = #tpu.dot_dimension_numbers<[1], [0], [0], [1], [0, 0, 1, 1], [], []>} : vector<64x256xbf16>, vector<256x64xbf16>, vector<64x64xf32> -> vector<64x64xf32>
    %178 = vector.shape_cast %177 : vector<64x64xf32> to vector<1x64x64xf32>
    %179 = vector.shape_cast %178 : vector<1x64x64xf32> to vector<64x64xf32>
    %180 = arith.truncf %179 : vector<64x64xf32> to vector<64x64xbf16>
    %c0_49 = arith.constant 0 : index
    %c0_50 = arith.constant 0 : index
    %181 = vector.load %arg11[%c0_49, %c0_50] : memref<64x128xbf16, #tpu.memory_space<vmem>>, vector<64x128xbf16>
    %cst_51 = arith.constant dense<0.000000e+00> : vector<64x128xf32>
    %182 = tpu.matmul %180, %181, %cst_51 {dimension_numbers = #tpu.dot_dimension_numbers<[1], [0], [0], [1], [0, 0, 1, 1], [], []>} : vector<64x64xbf16>, vector<64x128xbf16>, vector<64x128xf32> -> vector<64x128xf32>
    %183 = arith.addf %182, %174 : vector<64x128xf32>
    %cst_52 = arith.constant 0.707106769 : f32
    %184 = vector.broadcast %cst_52 : f32 to vector<64x128xf32>
    %185 = arith.mulf %183, %184 : vector<64x128xf32>
    %186 = vector.shape_cast %185 : vector<64x128xf32> to vector<1x64x128xf32>
    %c0_53 = arith.constant 0 : index
    %c0_54 = arith.constant 0 : index
    %c0_55 = arith.constant 0 : index
    %187 = vector.load %arg12[%c0_53, %c0_54, %c0_55] : memref<1x64x128xf32, #tpu.memory_space<vmem>>, vector<1x64x128xf32>
    tpu.vector_store %arg12[%c0_53, %c0_54, %c0_55], %186 {strides = array<i32>} : memref<1x64x128xf32, #tpu.memory_space<vmem>>, vector<1x64x128xf32>,
    return
  }
  func.func @transform_0(%arg0: i32) -> (i32, i32, i32) {
    %c0_i32 = arith.constant 0 : i32
    %c0_i32_0 = arith.constant 0 : i32
    %c0_i32_1 = arith.constant 0 : i32
    return %arg0, %c0_i32, %c0_i32_0 : i32, i32, i32
  }
  func.func @transform_1(%arg0: i32) -> (i32, i32) {
    %c0_i32 = arith.constant 0 : i32
    %c0_i32_0 = arith.constant 0 : i32
    %c0_i32_1 = arith.constant 0 : i32
    return %c0_i32, %c0_i32_0 : i32, i32
  }
  func.func @transform_2(%arg0: i32) -> (i32, i32) {
    %c0_i32 = arith.constant 0 : i32
    %c0_i32_0 = arith.constant 0 : i32
    %c0_i32_1 = arith.constant 0 : i32
    return %c0_i32, %c0_i32_0 : i32, i32
  }
  func.func @transform_3(%arg0: i32) -> (i32, i32) {
    %c0_i32 = arith.constant 0 : i32
    %c0_i32_0 = arith.constant 0 : i32
    %c0_i32_1 = arith.constant 0 : i32
    return %c0_i32, %c0_i32_0 : i32, i32
  }
  func.func @transform_4(%arg0: i32) -> (i32, i32) {
    %c0_i32 = arith.constant 0 : i32
    %c0_i32_0 = arith.constant 0 : i32
    %c0_i32_1 = arith.constant 0 : i32
    return %c0_i32, %c0_i32_0 : i32, i32
  }
  func.func @transform_5(%arg0: i32) -> (i32, i32) {
    %c0_i32 = arith.constant 0 : i32
    %c0_i32_0 = arith.constant 0 : i32
    %c0_i32_1 = arith.constant 0 : i32
    return %c0_i32, %c0_i32_0 : i32, i32
  }
  func.func @transform_6(%arg0: i32) -> (i32, i32) {
    %c0_i32 = arith.constant 0 : i32
    %c0_i32_0 = arith.constant 0 : i32
    %c0_i32_1 = arith.constant 0 : i32
    return %c0_i32, %c0_i32_0 : i32, i32
  }
  func.func @transform_7(%arg0: i32) -> (i32, i32) {
    %c0_i32 = arith.constant 0 : i32
    %c0_i32_0 = arith.constant 0 : i32
    %c0_i32_1 = arith.constant 0 : i32
    return %c0_i32, %c0_i32_0 : i32, i32
  }
  func.func @transform_8(%arg0: i32) -> (i32, i32) {
    %c0_i32 = arith.constant 0 : i32
    %c0_i32_0 = arith.constant 0 : i32
    %c0_i32_1 = arith.constant 0 : i32
    return %c0_i32, %c0_i32_0 : i32, i32
  }
  func.func @transform_9(%arg0: i32) -> (i32, i32) {
    %c0_i32 = arith.constant 0 : i32
    %c0_i32_0 = arith.constant 0 : i32
    %c0_i32_1 = arith.constant 0 : i32
    return %c0_i32, %c0_i32_0 : i32, i32
  }
  func.func @transform_10(%arg0: i32) -> (i32, i32) {
    %c0_i32 = arith.constant 0 : i32
    %c0_i32_0 = arith.constant 0 : i32
    %c0_i32_1 = arith.constant 0 : i32
    return %c0_i32, %c0_i32_0 : i32, i32
  }
  func.func @transform_11(%arg0: i32) -> (i32, i32, i32) {
    %c0_i32 = arith.constant 0 : i32
    %c0_i32_0 = arith.constant 0 : i32
    %c0_i32_1 = arith.constant 0 : i32
    return %arg0, %c0_i32, %c0_i32_0 : i32, i32, i32
  }
}

</mosaic_0001>

<llo_original>
// kernel: resblk_forward.1
$region0: #{resblk_forward.1}
  #allocation0 [shape = 'u32[]', space=smem, size = 0x4, offset = 0x4, fixed_abs, tag = 'smem constant byte address 0x4 - core index']
  #allocation1 [shape = 'u32[144,128]{1,0:T(1,128)}', space=vmem, size = 0x12000, scoped, tag = 'internal scratch']
  %s0 = inlined_call_operand.hbm [shape: f32[2,256,64], index: 0, kind: input, shape index: {}]
  %s1 = inlined_call_operand.vmem [shape: bf16[64,256], index: 1, kind: input, shape index: {}]
  %s2 = inlined_call_operand.vmem [shape: f32[1,64], index: 2, kind: input, shape index: {}]
  %s3 = inlined_call_operand.vmem [shape: f32[1,64], index: 3, kind: input, shape index: {}]
  %s4 = inlined_call_operand.vmem [shape: f32[1,64], index: 4, kind: input, shape index: {}]
  %s5 = inlined_call_operand.vmem [shape: f32[1,64], index: 5, kind: input, shape index: {}]
  %s6 = inlined_call_operand.vmem [shape: bf16[576,64], index: 6, kind: input, shape index: {}]
  %s7 = inlined_call_operand.vmem [shape: f32[1,64], index: 7, kind: input, shape index: {}]
  %s8 = inlined_call_operand.vmem [shape: bf16[576,128], index: 8, kind: input, shape index: {}]
  %s9 = inlined_call_operand.vmem [shape: f32[1,128], index: 9, kind: input, shape index: {}]
  %s10 = inlined_call_operand.vmem [shape: bf16[64,128], index: 10, kind: input, shape index: {}]
  %s11 = inlined_call_operand.hbm [shape: f32[2,64,128], index: 11, kind: output, shape index: {}]
  %s12 = sld [smem:[#allocation0]]
  $region81: #{resblk_forward.1} parent=0
    _
  %s14 = ssub.s32 1, %s12
  %s15 = scalar_select 0, %s14, %s12
  $region1: #{resblk_forward.1} parent=0
    #allocation2 [shape = 'u8[262144]{0}', space=vmem, size = 0x40000, scoped, tag = 'input window, operand 0']
    #allocation3 [shape = 's32[2]{0}', space=sflag, size = 0x8, scoped, tag = 'scoped memory for resblk_forward.1']
    #allocation4 [shape = 's32[2]{0}', space=sflag, size = 0x8, scoped, tag = 'scoped memory for resblk_forward.1']
    #allocation5 [shape = 'u8[65536]{0}', space=vmem, size = 0x10000, scoped, tag = 'output window, operand 0']
    %16 = vsyncpa [#allocation3], 0
    %s17 = scalar_lea.sflag [#allocation3], 1
    %18 = vsyncpa %s17, 0
    %19 = vsyncpa [#allocation4], 0
    %s20 = scalar_lea.sflag [#allocation4], 1
    %21 = vsyncpa %s20, 0
    loop: start=0, step=1, limit=4
    $region2: #{resblk_forward.1} parent=1 // loop_pre_header
      _
    $region3: #{resblk_forward.1} parent=1 // loop_header
      %s23 = sphi 0, %s27
      %p24 = scmp.ge.s32.totalorder %s23, 4
      %s33 = sphi 0, %s35
      %s36 = sphi 0, %s33
      %s37 = sphi 0, %s36
      %s53 = sphi 0, %s37
      %s57 = sphi 0, %s57
      %s59 = sphi 0, %s57
      %s60 = sphi 0, %s59
      %s74 = sphi 0, %s60
      %s78 = sphi 0, %s78
      %s80 = sphi 0, %s78
      %s81 = sphi 0, %s80
      %s95 = sphi 0, %s81
      %s99 = sphi 0, %s99
      %s101 = sphi 0, %s99
      %s102 = sphi 0, %s101
      %s116 = sphi 0, %s102
      %s120 = sphi 0, %s120
      %s122 = sphi 0, %s120
      %s123 = sphi 0, %s122
      %s137 = sphi 0, %s123
      %s141 = sphi 0, %s141
      %s143 = sphi 0, %s141
      %s144 = sphi 0, %s143
      %s158 = sphi 0, %s144
      %s162 = sphi 0, %s162
      %s164 = sphi 0, %s162
      %s165 = sphi 0, %s164
      %s179 = sphi 0, %s165
      %s183 = sphi 0, %s183
      %s185 = sphi 0, %s183
      %s186 = sphi 0, %s185
      %s200 = sphi 0, %s186
      %s204 = sphi 0, %s204
      %s206 = sphi 0, %s204
      %s207 = sphi 0, %s206
      %s221 = sphi 0, %s207
      %s225 = sphi 0, %s225
      %s227 = sphi 0, %s225
      %s228 = sphi 0, %s227
      %s242 = sphi 0, %s228
      %s246 = sphi 0, %s246
      %s248 = sphi 0, %s246
      %s249 = sphi 0, %s248
      %s263 = sphi 0, %s249
      %s269 = sphi 0, %s271
      %s272 = sphi 0, %s269
      %s273 = sphi 0, %s272
      %s289 = sphi 0, %s273
    $region4: #{resblk_forward.1} parent=1 // loop_header_branch
      %26 = sbr.rel (%p24) target = $region8
    $region5: #{resblk_forward.1} parent=1 // loop_body
      %s28 = ssub.s32 %s23, 1
      %s29 = ssub.s32 %s23, 2
      %s30 = sadd.s32 %s23, 1
      %s31 = ssub.s32 %s23, %s30
      %p32 = scmp.eq.s32.totalorder %s31, 0
      %s34 = sadd.s32 %s33, 1
      %s35 = scalar_select %p32, %s33, %s34
      %p38 = pneg %p32
      %p39 = scmp.eq.s32.totalorder %s23, 1
      %p40 = por %p38, %p39
      %p41 = scmp.ne.s32.totalorder %s33, %s36
      %p42 = scmp.eq.s32.totalorder %s23, 0
      %p43 = por %p41, %p42
      %p44 = scmp.ne.s32.totalorder %s33, %s36
      %p45 = scmp.eq.s32.totalorder %s28, 1
      %p46 = por %p44, %p45
      %p47 = scmp.ne.s32.totalorder %s36, %s37
      %p48 = scmp.eq.s32.totalorder %s28, 0
      %p49 = por %p47, %p48
      %p50 = scmp.ne.s32.totalorder %s36, %s37
      %p51 = scmp.eq.s32.totalorder %s29, 1
      %p52 = por %p50, %p51
      %p54 = scmp.ne.s32.totalorder %s37, %s53
      %p55 = scmp.eq.s32.totalorder %s29, 0
      %p56 = por %p54, %p55
      %s58 = sadd.s32 %s57, 1
      %p61 = scmp.eq.s32.totalorder %s23, 1
      %p62 = scmp.ne.s32.totalorder %s57, %s59
      %p63 = scmp.eq.s32.totalorder %s23, 0
      %p64 = por %p62, %p63
      %p65 = scmp.ne.s32.totalorder %s57, %s59
      %p66 = scmp.eq.s32.totalorder %s28, 1
      %p67 = por %p65, %p66
      %p68 = scmp.ne.s32.totalorder %s59, %s60
      %p69 = scmp.eq.s32.totalorder %s28, 0
      %p70 = por %p68, %p69
      %p71 = scmp.ne.s32.totalorder %s59, %s60
      %p72 = scmp.eq.s32.totalorder %s29, 1
      %p73 = por %p71, %p72
      %p75 = scmp.ne.s32.totalorder %s60, %s74
      %p76 = scmp.eq.s32.totalorder %s29, 0
      %p77 = por %p75, %p76
      %s79 = sadd.s32 %s78, 1
      %p82 = scmp.eq.s32.totalorder %s23, 1
      %p83 = scmp.ne.s32.totalorder %s78, %s80
      %p84 = scmp.eq.s32.totalorder %s23, 0
      %p85 = por %p83, %p84
      %p86 = scmp.ne.s32.totalorder %s78, %s80
      %p87 = scmp.eq.s32.totalorder %s28, 1
      %p88 = por %p86, %p87
      %p89 = scmp.ne.s32.totalorder %s80, %s81
      %p90 = scmp.eq.s32.totalorder %s28, 0
      %p91 = por %p89, %p90
      %p92 = scmp.ne.s32.totalorder %s80, %s81
      %p93 = scmp.eq.s32.totalorder %s29, 1
      %p94 = por %p92, %p93
      %p96 = scmp.ne.s32.totalorder %s81, %s95
      %p97 = scmp.eq.s32.totalorder %s29, 0
      %p98 = por %p96, %p97
      %s100 = sadd.s32 %s99, 1
      %p103 = scmp.eq.s32.totalorder %s23, 1
      %p104 = scmp.ne.s32.totalorder %s99, %s101
      %p105 = scmp.eq.s32.totalorder %s23, 0
      %p106 = por %p104, %p105
      %p107 = scmp.ne.s32.totalorder %s99, %s101
      %p108 = scmp.eq.s32.totalorder %s28, 1
      %p109 = por %p107, %p108
      %p110 = scmp.ne.s32.totalorder %s101, %s102
      %p111 = scmp.eq.s32.totalorder %s28, 0
      %p112 = por %p110, %p111
      %p113 = scmp.ne.s32.totalorder %s101, %s102
      %p114 = scmp.eq.s32.totalorder %s29, 1
      %p115 = por %p113, %p114
      %p117 = scmp.ne.s32.totalorder %s102, %s116
      %p118 = scmp.eq.s32.totalorder %s29, 0
      %p119 = por %p117, %p118
      %s121 = sadd.s32 %s120, 1
      %p124 = scmp.eq.s32.totalorder %s23, 1
      %p125 = scmp.ne.s32.totalorder %s120, %s122
      %p126 = scmp.eq.s32.totalorder %s23, 0
      %p127 = por %p125, %p126
      %p128 = scmp.ne.s32.totalorder %s120, %s122
      %p129 = scmp.eq.s32.totalorder %s28, 1
      %p130 = por %p128, %p129
      %p131 = scmp.ne.s32.totalorder %s122, %s123
      %p132 = scmp.eq.s32.totalorder %s28, 0
      %p133 = por %p131, %p132
      %p134 = scmp.ne.s32.totalorder %s122, %s123
      %p135 = scmp.eq.s32.totalorder %s29, 1
      %p136 = por %p134, %p135
      %p138 = scmp.ne.s32.totalorder %s123, %s137
      %p139 = scmp.eq.s32.totalorder %s29, 0
      %p140 = por %p138, %p139
      %s142 = sadd.s32 %s141, 1
      %p145 = scmp.eq.s32.totalorder %s23, 1
      %p146 = scmp.ne.s32.totalorder %s141, %s143
      %p147 = scmp.eq.s32.totalorder %s23, 0
      %p148 = por %p146, %p147
      %p149 = scmp.ne.s32.totalorder %s141, %s143
      %p150 = scmp.eq.s32.totalorder %s28, 1
      %p151 = por %p149, %p150
      %p152 = scmp.ne.s32.totalorder %s143, %s144
      %p153 = scmp.eq.s32.totalorder %s28, 0
      %p154 = por %p152, %p153
      %p155 = scmp.ne.s32.totalorder %s143, %s144
      %p156 = scmp.eq.s32.totalorder %s29, 1
      %p157 = por %p155, %p156
      %p159 = scmp.ne.s32.totalorder %s144, %s158
      %p160 = scmp.eq.s32.totalorder %s29, 0
      %p161 = por %p159, %p160
      %s163 = sadd.s32 %s162, 1
      %p166 = scmp.eq.s32.totalorder %s23, 1
      %p167 = scmp.ne.s32.totalorder %s162, %s164
      %p168 = scmp.eq.s32.totalorder %s23, 0
      %p169 = por %p167, %p168
      %p170 = scmp.ne.s32.totalorder %s162, %s164
      %p171 = scmp.eq.s32.totalorder %s28, 1
      %p172 = por %p170, %p171
      %p173 = scmp.ne.s32.totalorder %s164, %s165
      %p174 = scmp.eq.s32.totalorder %s28, 0
      %p175 = por %p173, %p174
      %p176 = scmp.ne.s32.totalorder %s164, %s165
      %p177 = scmp.eq.s32.totalorder %s29, 1
      %p178 = por %p176, %p177
      %p180 = scmp.ne.s32.totalorder %s165, %s179
      %p181 = scmp.eq.s32.totalorder %s29, 0
      %p182 = por %p180, %p181
      %s184 = sadd.s32 %s183, 1
      %p187 = scmp.eq.s32.totalorder %s23, 1
      %p188 = scmp.ne.s32.totalorder %s183, %s185
      %p189 = scmp.eq.s32.totalorder %s23, 0
      %p190 = por %p188, %p189
      %p191 = scmp.ne.s32.totalorder %s183, %s185
      %p192 = scmp.eq.s32.totalorder %s28, 1
      %p193 = por %p191, %p192
      %p194 = scmp.ne.s32.totalorder %s185, %s186
      %p195 = scmp.eq.s32.totalorder %s28, 0
      %p196 = por %p194, %p195
      %p197 = scmp.ne.s32.totalorder %s185, %s186
      %p198 = scmp.eq.s32.totalorder %s29, 1
      %p199 = por %p197, %p198
      %p201 = scmp.ne.s32.totalorder %s186, %s200
      %p202 = scmp.eq.s32.totalorder %s29, 0
      %p203 = por %p201, %p202
      %s205 = sadd.s32 %s204, 1
      %p208 = scmp.eq.s32.totalorder %s23, 1
      %p209 = scmp.ne.s32.totalorder %s204, %s206
      %p210 = scmp.eq.s32.totalorder %s23, 0
      %p211 = por %p209, %p210
      %p212 = scmp.ne.s32.totalorder %s204, %s206
      %p213 = scmp.eq.s32.totalorder %s28, 1
      %p214 = por %p212, %p213
      %p215 = scmp.ne.s32.totalorder %s206, %s207
      %p216 = scmp.eq.s32.totalorder %s28, 0
      %p217 = por %p215, %p216
      %p218 = scmp.ne.s32.totalorder %s206, %s207
      %p219 = scmp.eq.s32.totalorder %s29, 1
      %p220 = por %p218, %p219
      %p222 = scmp.ne.s32.totalorder %s207, %s221
      %p223 = scmp.eq.s32.totalorder %s29, 0
      %p224 = por %p222, %p223
      %s226 = sadd.s32 %s225, 1
      %p229 = scmp.eq.s32.totalorder %s23, 1
      %p230 = scmp.ne.s32.totalorder %s225, %s227
      %p231 = scmp.eq.s32.totalorder %s23, 0
      %p232 = por %p230, %p231
      %p233 = scmp.ne.s32.totalorder %s225, %s227
      %p234 = scmp.eq.s32.totalorder %s28, 1
      %p235 = por %p233, %p234
      %p236 = scmp.ne.s32.totalorder %s227, %s228
      %p237 = scmp.eq.s32.totalorder %s28, 0
      %p238 = por %p236, %p237
      %p239 = scmp.ne.s32.totalorder %s227, %s228
      %p240 = scmp.eq.s32.totalorder %s29, 1
      %p241 = por %p239, %p240
      %p243 = scmp.ne.s32.totalorder %s228, %s242
      %p244 = scmp.eq.s32.totalorder %s29, 0
      %p245 = por %p243, %p244
      %s247 = sadd.s32 %s246, 1
      %p250 = scmp.eq.s32.totalorder %s23, 1
      %p251 = scmp.ne.s32.totalorder %s246, %s248
      %p252 = scmp.eq.s32.totalorder %s23, 0
      %p253 = por %p251, %p252
      %p254 = scmp.ne.s32.totalorder %s246, %s248
      %p255 = scmp.eq.s32.totalorder %s28, 1
      %p256 = por %p254, %p255
      %p257 = scmp.ne.s32.totalorder %s248, %s249
      %p258 = scmp.eq.s32.totalorder %s28, 0
      %p259 = por %p257, %p258
      %p260 = scmp.ne.s32.totalorder %s248, %s249
      %p261 = scmp.eq.s32.totalorder %s29, 1
      %p262 = por %p260, %p261
      %p264 = scmp.ne.s32.totalorder %s249, %s263
      %p265 = scmp.eq.s32.totalorder %s29, 0
      %p266 = por %p264, %p265
      %s267 = ssub.s32 %s23, %s30
      %p268 = scmp.eq.s32.totalorder %s267, 0
      %s270 = sadd.s32 %s269, 1
      %s271 = scalar_select %p268, %s269, %s270
      %p274 = pneg %p268
      %p275 = scmp.eq.s32.totalorder %s23, 1
      %p276 = por %p274, %p275
      %p277 = scmp.ne.s32.totalorder %s269, %s272
      %p278 = scmp.eq.s32.totalorder %s23, 0
      %p279 = por %p277, %p278
      %p280 = scmp.ne.s32.totalorder %s269, %s272
      %p281 = scmp.eq.s32.totalorder %s28, 1
      %p282 = por %p280, %p281
      %p283 = scmp.ne.s32.totalorder %s272, %s273
      %p284 = scmp.eq.s32.totalorder %s28, 0
      %p285 = por %p283, %p284
      %p286 = scmp.ne.s32.totalorder %s272, %s273
      %p287 = scmp.eq.s32.totalorder %s29, 1
      %p288 = por %p286, %p287
      %p290 = scmp.ne.s32.totalorder %s273, %s289
      %p291 = scmp.eq.s32.totalorder %s29, 0
      %p292 = por %p290, %p291
      %p293 = scmp.le.s32.totalorder 1, %s23
      %p294 = scmp.lt.s32.totalorder %s23, 3
      %p295 = pnand %p293, %p294
      %p296 = pneg %p295
      // Predicated region
      $region9: #{resblk_forward.1} parent=5 // pred_check
        _
      $region10: #{resblk_forward.1} parent=5 // pred_check_branch
        %298 = sbr.rel (%p295) target = $region12
      $region11: #{resblk_forward.1} parent=5 // pred_region
        %s299 = ssub.s32 %s23, 1
        // Predicated region
        $region13: #{resblk_forward.1} parent=11 // pred_check
          %p300 = pneg %p70
        $region14: #{resblk_forward.1} parent=11 // pred_check_branch
          %302 = sbr.rel (%p300) target = $region16
        $region15: #{resblk_forward.1} parent=11 // pred_region
          _
        $region16: #{resblk_forward.1} parent=11 // pred_fallthru
          _
        // Predicated region
        $region17: #{resblk_forward.1} parent=11 // pred_check
          %p303 = pneg %p91
        $region18: #{resblk_forward.1} parent=11 // pred_check_branch
          %305 = sbr.rel (%p303) target = $region20
        $region19: #{resblk_forward.1} parent=11 // pred_region
          _
        $region20: #{resblk_forward.1} parent=11 // pred_fallthru
          _
        // Predicated region
        $region21: #{resblk_forward.1} parent=11 // pred_check
          %p306 = pneg %p112
        $region22: #{resblk_forward.1} parent=11 // pred_check_branch
          %308 = sbr.rel (%p306) target = $region24
        $region23: #{resblk_forward.1} parent=11 // pred_region
          _
        $region24: #{resblk_forward.1} parent=11 // pred_fallthru
          _
        // Predicated region
        $region25: #{resblk_forward.1} parent=11 // pred_check
          %p309 = pneg %p133
        $region26: #{resblk_forward.1} parent=11 // pred_check_branch
          %311 = sbr.rel (%p309) target = $region28
        $region27: #{resblk_forward.1} parent=11 // pred_region
          _
        $region28: #{resblk_forward.1} parent=11 // pred_fallthru
          _
        // Predicated region
        $region29: #{resblk_forward.1} parent=11 // pred_check
          %p312 = pneg %p154
        $region30: #{resblk_forward.1} parent=11 // pred_check_branch
          %314 = sbr.rel (%p312) target = $region32
        $region31: #{resblk_forward.1} parent=11 // pred_region
          _
        $region32: #{resblk_forward.1} parent=11 // pred_fallthru
          _
        // Predicated region
        $region33: #{resblk_forward.1} parent=11 // pred_check
          %p315 = pneg %p175
        $region34: #{resblk_forward.1} parent=11 // pred_check_branch
          %317 = sbr.rel (%p315) target = $region36
        $region35: #{resblk_forward.1} parent=11 // pred_region
          _
        $region36: #{resblk_forward.1} parent=11 // pred_fallthru
          _
        // Predicated region
        $region37: #{resblk_forward.1} parent=11 // pred_check
          %p318 = pneg %p196
        $region38: #{resblk_forward.1} parent=11 // pred_check_branch
          %320 = sbr.rel (%p318) target = $region40
        $region39: #{resblk_forward.1} parent=11 // pred_region
          _
        $region40: #{resblk_forward.1} parent=11 // pred_fallthru
          _
        // Predicated region
        $region41: #{resblk_forward.1} parent=11 // pred_check
          %p321 = pneg %p217
        $region42: #{resblk_forward.1} parent=11 // pred_check_branch
          %323 = sbr.rel (%p321) target = $region44
        $region43: #{resblk_forward.1} parent=11 // pred_region
          _
        $region44: #{resblk_forward.1} parent=11 // pred_fallthru
          _
        // Predicated region
        $region45: #{resblk_forward.1} parent=11 // pred_check
          %p324 = pneg %p238
        $region46: #{resblk_forward.1} parent=11 // pred_check_branch
          %326 = sbr.rel (%p324) target = $region48
        $region47: #{resblk_forward.1} parent=11 // pred_region
          _
        $region48: #{resblk_forward.1} parent=11 // pred_fallthru
          _
        // Predicated region
        $region49: #{resblk_forward.1} parent=11 // pred_check
          %p327 = pneg %p259
        $region50: #{resblk_forward.1} parent=11 // pred_check_branch
          %329 = sbr.rel (%p327) target = $region52
        $region51: #{resblk_forward.1} parent=11 // pred_region
          _
        $region52: #{resblk_forward.1} parent=11 // pred_fallthru
          _
      $region12: #{resblk_forward.1} parent=5 // pred_fallthru
        _
      %p330 = scmp.lt.s32.totalorder %s23, 2
      // Predicated region
      $region53: #{resblk_forward.1} parent=5 // pred_check
        %p331 = pneg %p330
      $region54: #{resblk_forward.1} parent=5 // pred_check_branch
        %333 = sbr.rel (%p331) target = $region56
      $region55: #{resblk_forward.1} parent=5 // pred_region
        // Predicated region
        $region57: #{resblk_forward.1} parent=55 // pred_check
          %p334 = pneg %p43
        $region58: #{resblk_forward.1} parent=55 // pred_check_branch
          %336 = sbr.rel (%p334) target = $region60
        $region59: #{resblk_forward.1} parent=55 // pred_region
          %s337 = sand.u32 %s33, 1
          %s338 = scalar_lea.sflag [#allocation3], %s337
          %s339 = sand.u32 %s33, 1
          %s340 = smul.addr %s339, 256
          %s341 = scalar_lea.vmem [#allocation2], %s340
          %s343 = ssub.s32 4096, 4096
          %344 = vsyncadd %s338, %s343
          %s345 = smul.addr %s23, 32
          %s346 = smul.addr %s345, 128
          %s347 = scalar_lea.hbm %s0, %s346
          %s348 = sshll.u32 %s341, 4
          %s349 = int_to_ptr.vmem [resolvable:$true] %s348
          %354 = dma.hbm_to_vmem [thread:$0]  %s347, 4096, %s349, %s338, 128, 128, 8
        $region60: #{resblk_forward.1} parent=55 // pred_fallthru
          _
      $region56: #{resblk_forward.1} parent=5 // pred_fallthru
        _
      %p355 = scmp.le.s32.totalorder 1, %s23
      %p356 = scmp.lt.s32.totalorder %s23, 3
      %p357 = pnand %p355, %p356
      %p358 = pneg %p357
      // Predicated region
      $region61: #{resblk_forward.1} parent=5 // pred_check
        _
      $region62: #{resblk_forward.1} parent=5 // pred_check_branch
        %360 = sbr.rel (%p357) target = $region64
      $region63: #{resblk_forward.1} parent=5 // pred_region
        %s361 = ssub.s32 %s23, 1
        %s362 = sand.u32 %s36, 1
        %s363 = scalar_lea.sflag [#allocation3], %s362
        %s364 = sand.u32 %s36, 1
        %s365 = smul.addr %s364, 256
        %s366 = scalar_lea.vmem [#allocation2], %s365
        // Predicated region
        $region65: #{resblk_forward.1} parent=63 // pred_check
          %p367 = pneg %p49
        $region66: #{resblk_forward.1} parent=63 // pred_check_branch
          %369 = sbr.rel (%p367) target = $region68
        $region67: #{resblk_forward.1} parent=63 // pred_region
          %370 = dma.done %s363, 4096
        $region68: #{resblk_forward.1} parent=63 // pred_fallthru
          _
        %s371 = sand.u32 %s36, 1
        %s372 = scalar_lea.sflag [#allocation3], %s371
        %s373 = sand.u32 %s36, 1
        %s374 = smul.addr %s373, 256
        %s375 = scalar_lea.vmem [#allocation2], %s374
        %p376 = pneg %p49
        %p377 = pneg %p46
        %p378 = pneg %p70
        %p379 = pneg %p67
        %p380 = pneg %p91
        %p381 = pneg %p88
        %p382 = pneg %p112
        %p383 = pneg %p109
        %p384 = pneg %p133
        %p385 = pneg %p130
        %p386 = pneg %p154
        %p387 = pneg %p151
        %p388 = pneg %p175
        %p389 = pneg %p172
        %p390 = pneg %p196
        %p391 = pneg %p193
        %p392 = pneg %p217
        %p393 = pneg %p214
        %p394 = pneg %p238
        %p395 = pneg %p235
        %p396 = pneg %p259
        %p397 = pneg %p256
        %p398 = pneg %p285
        %p399 = pneg %p282
        %s400 = sand.u32 %s272, 1
        %s401 = scalar_lea.sflag [#allocation4], %s400
        %s402 = sand.u32 %s272, 1
        %s403 = smul.addr %s402, 64
        %s404 = scalar_lea.vmem [#allocation5], %s403
        %v406 = vld [vmem:[%s366] sm:$0xff]
        %v407 = vld [vmem:[%s366 + $0x8] sm:$0xff]
        %v408 = vld [vmem:[%s366 + $0x10] sm:$0xff]
        %v409 = vld [vmem:[%s366 + $0x18] sm:$0xff]
        %v410 = vld [vmem:[%s366 + $0x20] sm:$0xff]
        %v411 = vld [vmem:[%s366 + $0x28] sm:$0xff]
        %v412 = vld [vmem:[%s366 + $0x30] sm:$0xff]
        %v413 = vld [vmem:[%s366 + $0x38] sm:$0xff]
        %v414 = vld [vmem:[%s366 + $0x40] sm:$0xff]
        %v415 = vld [vmem:[%s366 + $0x48] sm:$0xff]
        %v416 = vld [vmem:[%s366 + $0x50] sm:$0xff]
        %v417 = vld [vmem:[%s366 + $0x58] sm:$0xff]
        %v418 = vld [vmem:[%s366 + $0x60] sm:$0xff]
        %v419 = vld [vmem:[%s366 + $0x68] sm:$0xff]
        %v420 = vld [vmem:[%s366 + $0x70] sm:$0xff]
        %v421 = vld [vmem:[%s366 + $0x78] sm:$0xff]
        %v422 = vld [vmem:[%s366 + $0x80] sm:$0xff]
        %v423 = vld [vmem:[%s366 + $0x88] sm:$0xff]
        %v424 = vld [vmem:[%s366 + $0x90] sm:$0xff]
        %v425 = vld [vmem:[%s366 + $0x98] sm:$0xff]
        %v426 = vld [vmem:[%s366 + $0xa0] sm:$0xff]
        %v427 = vld [vmem:[%s366 + $0xa8] sm:$0xff]
        %v428 = vld [vmem:[%s366 + $0xb0] sm:$0xff]
        %v429 = vld [vmem:[%s366 + $0xb8] sm:$0xff]
        %v430 = vld [vmem:[%s366 + $0xc0] sm:$0xff]
        %v431 = vld [vmem:[%s366 + $0xc8] sm:$0xff]
        %v432 = vld [vmem:[%s366 + $0xd0] sm:$0xff]
        %v433 = vld [vmem:[%s366 + $0xd8] sm:$0xff]
        %v434 = vld [vmem:[%s366 + $0xe0] sm:$0xff]
        %v435 = vld [vmem:[%s366 + $0xe8] sm:$0xff]
        %v436 = vld [vmem:[%s366 + $0xf0] sm:$0xff]
        %v437 = vld [vmem:[%s366 + $0xf8] sm:$0xff]
        %v438 = vlaneseq
        %v439 = vshrl.u32 %v438, 7
        %v440 = vadd.s32 %v439, 8
        %v441 = vadd.s32 %v439, 16
        %v442 = vadd.s32 %v439, 24
        %v443 = vadd.s32 %v439, 32
        %v444 = vadd.s32 %v439, 40
        %v445 = vadd.s32 %v439, 48
        %v446 = vadd.s32 %v439, 56
        %v447 = vadd.s32 %v439, 64
        %v448 = vadd.s32 %v439, 72
        %v449 = vadd.s32 %v439, 80
        %v450 = vadd.s32 %v439, 88
        %v451 = vadd.s32 %v439, 96
        %v452 = vadd.s32 %v439, 104
        %v453 = vadd.s32 %v439, 112
        %v454 = vadd.s32 %v439, 120
        %v455 = vadd.s32 %v439, 128
        %v456 = vadd.s32 %v439, 136
        %v457 = vadd.s32 %v439, 144
        %v458 = vadd.s32 %v439, 152
        %v459 = vadd.s32 %v439, 160
        %v460 = vadd.s32 %v439, 168
        %v461 = vadd.s32 %v439, 176
        %v462 = vadd.s32 %v439, 184
        %v463 = vadd.s32 %v439, 192
        %v464 = vadd.s32 %v439, 200
        %v465 = vadd.s32 %v439, 208
        %v466 = vadd.s32 %v439, 216
        %v467 = vadd.s32 %v439, 224
        %v468 = vadd.s32 %v439, 232
        %v469 = vadd.s32 %v439, 240
        %v470 = vadd.s32 %v439, 248
        %vm471 = vcmp.lt.s32.totalorder %v439, 0
        %v472 = vsub.s32 0, %v439
        %v473 = vsel %vm471, %v472, %v439
        %v474 = vshrl.u32 %v473, 4
        %v475 = vand.u32 %v473, 15
        %v476 = vsub.s32 0, %v475
        %v477 = vsel %vm471, %v476, %v475
        %vm478 = vcmp.lt.s32.totalorder %v440, 0
        %v479 = vsub.s32 0, %v440
        %v480 = vsel %vm478, %v479, %v440
        %v481 = vshrl.u32 %v480, 4
        %v482 = vand.u32 %v480, 15
        %v483 = vsub.s32 0, %v482
        %v484 = vsel %vm478, %v483, %v482
        %vm485 = vcmp.lt.s32.totalorder %v441, 0
        %v486 = vsub.s32 0, %v441
        %v487 = vsel %vm485, %v486, %v441
        %v488 = vshrl.u32 %v487, 4
        %v489 = vand.u32 %v487, 15
        %v490 = vsub.s32 0, %v489
        %v491 = vsel %vm485, %v490, %v489
        %vm492 = vcmp.lt.s32.totalorder %v442, 0
        %v493 = vsub.s32 0, %v442
        %v494 = vsel %vm492, %v493, %v442
        %v495 = vshrl.u32 %v494, 4
        %v496 = vand.u32 %v494, 15
        %v497 = vsub.s32 0, %v496
        %v498 = vsel %vm492, %v497, %v496
        %vm499 = vcmp.lt.s32.totalorder %v443, 0
        %v500 = vsub.s32 0, %v443
        %v501 = vsel %vm499, %v500, %v443
        %v502 = vshrl.u32 %v501, 4
        %v503 = vand.u32 %v501, 15
        %v504 = vsub.s32 0, %v503
        %v505 = vsel %vm499, %v504, %v503
        %vm506 = vcmp.lt.s32.totalorder %v444, 0
        %v507 = vsub.s32 0, %v444
        %v508 = vsel %vm506, %v507, %v444
        %v509 = vshrl.u32 %v508, 4
        %v510 = vand.u32 %v508, 15
        %v511 = vsub.s32 0, %v510
        %v512 = vsel %vm506, %v511, %v510
        %vm513 = vcmp.lt.s32.totalorder %v445, 0
        %v514 = vsub.s32 0, %v445
        %v515 = vsel %vm513, %v514, %v445
        %v516 = vshrl.u32 %v515, 4
        %v517 = vand.u32 %v515, 15
        %v518 = vsub.s32 0, %v517
        %v519 = vsel %vm513, %v518, %v517
        %vm520 = vcmp.lt.s32.totalorder %v446, 0
        %v521 = vsub.s32 0, %v446
        %v522 = vsel %vm520, %v521, %v446
        %v523 = vshrl.u32 %v522, 4
        %v524 = vand.u32 %v522, 15
        %v525 = vsub.s32 0, %v524
        %v526 = vsel %vm520, %v525, %v524
        %vm527 = vcmp.lt.s32.totalorder %v447, 0
        %v528 = vsub.s32 0, %v447
        %v529 = vsel %vm527, %v528, %v447
        %v530 = vshrl.u32 %v529, 4
        %v531 = vand.u32 %v529, 15
        %v532 = vsub.s32 0, %v531
        %v533 = vsel %vm527, %v532, %v531
        %vm534 = vcmp.lt.s32.totalorder %v448, 0
        %v535 = vsub.s32 0, %v448
        %v536 = vsel %vm534, %v535, %v448
        %v537 = vshrl.u32 %v536, 4
        %v538 = vand.u32 %v536, 15
        %v539 = vsub.s32 0, %v538
        %v540 = vsel %vm534, %v539, %v538
        %vm541 = vcmp.lt.s32.totalorder %v449, 0
        %v542 = vsub.s32 0, %v449
        %v543 = vsel %vm541, %v542, %v449
        %v544 = vshrl.u32 %v543, 4
        %v545 = vand.u32 %v543, 15
        %v546 = vsub.s32 0, %v545
        %v547 = vsel %vm541, %v546, %v545
        %vm548 = vcmp.lt.s32.totalorder %v450, 0
        %v549 = vsub.s32 0, %v450
        %v550 = vsel %vm548, %v549, %v450
        %v551 = vshrl.u32 %v550, 4
        %v552 = vand.u32 %v550, 15
        %v553 = vsub.s32 0, %v552
        %v554 = vsel %vm548, %v553, %v552
        %vm555 = vcmp.lt.s32.totalorder %v451, 0
        %v556 = vsub.s32 0, %v451
        %v557 = vsel %vm555, %v556, %v451
        %v558 = vshrl.u32 %v557, 4
        %v559 = vand.u32 %v557, 15
        %v560 = vsub.s32 0, %v559
        %v561 = vsel %vm555, %v560, %v559
        %vm562 = vcmp.lt.s32.totalorder %v452, 0
        %v563 = vsub.s32 0, %v452
        %v564 = vsel %vm562, %v563, %v452
        %v565 = vshrl.u32 %v564, 4
        %v566 = vand.u32 %v564, 15
        %v567 = vsub.s32 0, %v566
        %v568 = vsel %vm562, %v567, %v566
        %vm569 = vcmp.lt.s32.totalorder %v453, 0
        %v570 = vsub.s32 0, %v453
        %v571 = vsel %vm569, %v570, %v453
        %v572 = vshrl.u32 %v571, 4
        %v573 = vand.u32 %v571, 15
        %v574 = vsub.s32 0, %v573
        %v575 = vsel %vm569, %v574, %v573
        %vm576 = vcmp.lt.s32.totalorder %v454, 0
        %v577 = vsub.s32 0, %v454
        %v578 = vsel %vm576, %v577, %v454
        %v579 = vshrl.u32 %v578, 4
        %v580 = vand.u32 %v578, 15
        %v581 = vsub.s32 0, %v580
        %v582 = vsel %vm576, %v581, %v580
        %vm583 = vcmp.lt.s32.totalorder %v455, 0
        %v584 = vsub.s32 0, %v455
        %v585 = vsel %vm583, %v584, %v455
        %v586 = vshrl.u32 %v585, 4
        %v587 = vand.u32 %v585, 15
        %v588 = vsub.s32 0, %v587
        %v589 = vsel %vm583, %v588, %v587
        %vm590 = vcmp.lt.s32.totalorder %v456, 0
        %v591 = vsub.s32 0, %v456
        %v592 = vsel %vm590, %v591, %v456
        %v593 = vshrl.u32 %v592, 4
        %v594 = vand.u32 %v592, 15
        %v595 = vsub.s32 0, %v594
        %v596 = vsel %vm590, %v595, %v594
        %vm597 = vcmp.lt.s32.totalorder %v457, 0
        %v598 = vsub.s32 0, %v457
        %v599 = vsel %vm597, %v598, %v457
        %v600 = vshrl.u32 %v599, 4
        %v601 = vand.u32 %v599, 15
        %v602 = vsub.s32 0, %v601
        %v603 = vsel %vm597, %v602, %v601
        %vm604 = vcmp.lt.s32.totalorder %v458, 0
        %v605 = vsub.s32 0, %v458
        %v606 = vsel %vm604, %v605, %v458
        %v607 = vshrl.u32 %v606, 4
        %v608 = vand.u32 %v606, 15
        %v609 = vsub.s32 0, %v608
        %v610 = vsel %vm604, %v609, %v608
        %vm611 = vcmp.lt.s32.totalorder %v459, 0
        %v612 = vsub.s32 0, %v459
        %v613 = vsel %vm611, %v612, %v459
        %v614 = vshrl.u32 %v613, 4
        %v615 = vand.u32 %v613, 15
        %v616 = vsub.s32 0, %v615
        %v617 = vsel %vm611, %v616, %v615
        %vm618 = vcmp.lt.s32.totalorder %v460, 0
        %v619 = vsub.s32 0, %v460
        %v620 = vsel %vm618, %v619, %v460
        %v621 = vshrl.u32 %v620, 4
        %v622 = vand.u32 %v620, 15
        %v623 = vsub.s32 0, %v622
        %v624 = vsel %vm618, %v623, %v622
        %vm625 = vcmp.lt.s32.totalorder %v461, 0
        %v626 = vsub.s32 0, %v461
        %v627 = vsel %vm625, %v626, %v461
        %v628 = vshrl.u32 %v627, 4
        %v629 = vand.u32 %v627, 15
        %v630 = vsub.s32 0, %v629
        %v631 = vsel %vm625, %v630, %v629
        %vm632 = vcmp.lt.s32.totalorder %v462, 0
        %v633 = vsub.s32 0, %v462
        %v634 = vsel %vm632, %v633, %v462
        %v635 = vshrl.u32 %v634, 4
        %v636 = vand.u32 %v634, 15
        %v637 = vsub.s32 0, %v636
        %v638 = vsel %vm632, %v637, %v636
        %vm639 = vcmp.lt.s32.totalorder %v463, 0
        %v640 = vsub.s32 0, %v463
        %v641 = vsel %vm639, %v640, %v463
        %v642 = vshrl.u32 %v641, 4
        %v643 = vand.u32 %v641, 15
        %v644 = vsub.s32 0, %v643
        %v645 = vsel %vm639, %v644, %v643
        %vm646 = vcmp.lt.s32.totalorder %v464, 0
        %v647 = vsub.s32 0, %v464
        %v648 = vsel %vm646, %v647, %v464
        %v649 = vshrl.u32 %v648, 4
        %v650 = vand.u32 %v648, 15
        %v651 = vsub.s32 0, %v650
        %v652 = vsel %vm646, %v651, %v650
        %vm653 = vcmp.lt.s32.totalorder %v465, 0
        %v654 = vsub.s32 0, %v465
        %v655 = vsel %vm653, %v654, %v465
        %v656 = vshrl.u32 %v655, 4
        %v657 = vand.u32 %v655, 15
        %v658 = vsub.s32 0, %v657
        %v659 = vsel %vm653, %v658, %v657
        %vm660 = vcmp.lt.s32.totalorder %v466, 0
        %v661 = vsub.s32 0, %v466
        %v662 = vsel %vm660, %v661, %v466
        %v663 = vshrl.u32 %v662, 4
        %v664 = vand.u32 %v662, 15
        %v665 = vsub.s32 0, %v664
        %v666 = vsel %vm660, %v665, %v664
        %vm667 = vcmp.lt.s32.totalorder %v467, 0
        %v668 = vsub.s32 0, %v467
        %v669 = vsel %vm667, %v668, %v467
        %v670 = vshrl.u32 %v669, 4
        %v671 = vand.u32 %v669, 15
        %v672 = vsub.s32 0, %v671
        %v673 = vsel %vm667, %v672, %v671
        %vm674 = vcmp.lt.s32.totalorder %v468, 0
        %v675 = vsub.s32 0, %v468
        %v676 = vsel %vm674, %v675, %v468
        %v677 = vshrl.u32 %v676, 4
        %v678 = vand.u32 %v676, 15
        %v679 = vsub.s32 0, %v678
        %v680 = vsel %vm674, %v679, %v678
        %vm681 = vcmp.lt.s32.totalorder %v469, 0
        %v682 = vsub.s32 0, %v469
        %v683 = vsel %vm681, %v682, %v469
        %v684 = vshrl.u32 %v683, 4
        %v685 = vand.u32 %v683, 15
        %v686 = vsub.s32 0, %v685
        %v687 = vsel %vm681, %v686, %v685
        %vm688 = vcmp.lt.s32.totalorder %v470, 0
        %v689 = vsub.s32 0, %v470
        %v690 = vsel %vm688, %v689, %v470
        %v691 = vshrl.u32 %v690, 4
        %v692 = vand.u32 %v690, 15
        %v693 = vsub.s32 0, %v692
        %v694 = vsel %vm688, %v693, %v692
        %vm695 = vcmp.ne.s32.totalorder %v477, 0
        %vm696 = vcmp.ne.s32.totalorder %v484, 0
        %vm697 = vcmp.ne.s32.totalorder %v491, 0
        %vm698 = vcmp.ne.s32.totalorder %v498, 0
        %vm699 = vcmp.ne.s32.totalorder %v505, 0
        %vm700 = vcmp.ne.s32.totalorder %v512, 0
        %vm701 = vcmp.ne.s32.totalorder %v519, 0
        %vm702 = vcmp.ne.s32.totalorder %v526, 0
        %vm703 = vcmp.ne.s32.totalorder %v533, 0
        %vm704 = vcmp.ne.s32.totalorder %v540, 0
        %vm705 = vcmp.ne.s32.totalorder %v547, 0
        %vm706 = vcmp.ne.s32.totalorder %v554, 0
        %vm707 = vcmp.ne.s32.totalorder %v561, 0
        %vm708 = vcmp.ne.s32.totalorder %v568, 0
        %vm709 = vcmp.ne.s32.totalorder %v575, 0
        %vm710 = vcmp.ne.s32.totalorder %v582, 0
        %vm711 = vcmp.ne.s32.totalorder %v589, 0
        %vm712 = vcmp.ne.s32.totalorder %v596, 0
        %vm713 = vcmp.ne.s32.totalorder %v603, 0
        %vm714 = vcmp.ne.s32.totalorder %v610, 0
        %vm715 = vcmp.ne.s32.totalorder %v617, 0
        %vm716 = vcmp.ne.s32.totalorder %v624, 0
        %vm717 = vcmp.ne.s32.totalorder %v631, 0
        %vm718 = vcmp.ne.s32.totalorder %v638, 0
        %vm719 = vcmp.ne.s32.totalorder %v645, 0
        %vm720 = vcmp.ne.s32.totalorder %v652, 0
        %vm721 = vcmp.ne.s32.totalorder %v659, 0
        %vm722 = vcmp.ne.s32.totalorder %v666, 0
        %vm723 = vcmp.ne.s32.totalorder %v673, 0
        %vm724 = vcmp.ne.s32.totalorder %v680, 0
        %vm725 = vcmp.ne.s32.totalorder %v687, 0
        %vm726 = vcmp.ne.s32.totalorder %v694, 0
        %vm727 = vcmp.lt.s32.totalorder %v477, 0
        %vm728 = vcmp.lt.s32.totalorder %v484, 0
        %vm729 = vcmp.lt.s32.totalorder %v491, 0
        %vm730 = vcmp.lt.s32.totalorder %v498, 0
        %vm731 = vcmp.lt.s32.totalorder %v505, 0
        %vm732 = vcmp.lt.s32.totalorder %v512, 0
        %vm733 = vcmp.lt.s32.totalorder %v519, 0
        %vm734 = vcmp.lt.s32.totalorder %v526, 0
        %vm735 = vcmp.lt.s32.totalorder %v533, 0
        %vm736 = vcmp.lt.s32.totalorder %v540, 0
        %vm737 = vcmp.lt.s32.totalorder %v547, 0
        %vm738 = vcmp.lt.s32.totalorder %v554, 0
        %vm739 = vcmp.lt.s32.totalorder %v561, 0
        %vm740 = vcmp.lt.s32.totalorder %v568, 0
        %vm741 = vcmp.lt.s32.totalorder %v575, 0
        %vm742 = vcmp.lt.s32.totalorder %v582, 0
        %vm743 = vcmp.lt.s32.totalorder %v589, 0
        %vm744 = vcmp.lt.s32.totalorder %v596, 0
        %vm745 = vcmp.lt.s32.totalorder %v603, 0
        %vm746 = vcmp.lt.s32.totalorder %v610, 0
        %vm747 = vcmp.lt.s32.totalorder %v617, 0
        %vm748 = vcmp.lt.s32.totalorder %v624, 0
        %vm749 = vcmp.lt.s32.totalorder %v631, 0
        %vm750 = vcmp.lt.s32.totalorder %v638, 0
        %vm751 = vcmp.lt.s32.totalorder %v645, 0
        %vm752 = vcmp.lt.s32.totalorder %v652, 0
        %vm753 = vcmp.lt.s32.totalorder %v659, 0
        %vm754 = vcmp.lt.s32.totalorder %v666, 0
        %vm755 = vcmp.lt.s32.totalorder %v673, 0
        %vm756 = vcmp.lt.s32.totalorder %v680, 0
        %vm757 = vcmp.lt.s32.totalorder %v687, 0
        %vm758 = vcmp.lt.s32.totalorder %v694, 0
        %vm759 = vmand %vm727, %vm695
        %vm760 = vmand %vm728, %vm696
        %vm761 = vmand %vm729, %vm697
        %vm762 = vmand %vm730, %vm698
        %vm763 = vmand %vm731, %vm699
        %vm764 = vmand %vm732, %vm700
        %vm765 = vmand %vm733, %vm701
        %vm766 = vmand %vm734, %vm702
        %vm767 = vmand %vm735, %vm703
        %vm768 = vmand %vm736, %vm704
        %vm769 = vmand %vm737, %vm705
        %vm770 = vmand %vm738, %vm706
        %vm771 = vmand %vm739, %vm707
        %vm772 = vmand %vm740, %vm708
        %vm773 = vmand %vm741, %vm709
        %vm774 = vmand %vm742, %vm710
        %vm775 = vmand %vm743, %vm711
        %vm776 = vmand %vm744, %vm712
        %vm777 = vmand %vm745, %vm713
        %vm778 = vmand %vm746, %vm714
        %vm779 = vmand %vm747, %vm715
        %vm780 = vmand %vm748, %vm716
        %vm781 = vmand %vm749, %vm717
        %vm782 = vmand %vm750, %vm718
        %vm783 = vmand %vm751, %vm719
        %vm784 = vmand %vm752, %vm720
        %vm785 = vmand %vm753, %vm721
        %vm786 = vmand %vm754, %vm722
        %vm787 = vmand %vm755, %vm723
        %vm788 = vmand %vm756, %vm724
        %vm789 = vmand %vm757, %vm725
        %vm790 = vmand %vm758, %vm726
        %v791 = vadd.s32 %v477, 16
        %v792 = vadd.s32 %v484, 16
        %v793 = vadd.s32 %v491, 16
        %v794 = vadd.s32 %v498, 16
        %v795 = vadd.s32 %v505, 16
        %v796 = vadd.s32 %v512, 16
        %v797 = vadd.s32 %v519, 16
        %v798 = vadd.s32 %v526, 16
        %v799 = vadd.s32 %v533, 16
        %v800 = vadd.s32 %v540, 16
        %v801 = vadd.s32 %v547, 16
        %v802 = vadd.s32 %v554, 16
        %v803 = vadd.s32 %v561, 16
        %v804 = vadd.s32 %v568, 16
        %v805 = vadd.s32 %v575, 16
        %v806 = vadd.s32 %v582, 16
        %v807 = vadd.s32 %v589, 16
        %v808 = vadd.s32 %v596, 16
        %v809 = vadd.s32 %v603, 16
        %v810 = vadd.s32 %v610, 16
        %v811 = vadd.s32 %v617, 16
        %v812 = vadd.s32 %v624, 16
        %v813 = vadd.s32 %v631, 16
        %v814 = vadd.s32 %v638, 16
        %v815 = vadd.s32 %v645, 16
        %v816 = vadd.s32 %v652, 16
        %v817 = vadd.s32 %v659, 16
        %v818 = vadd.s32 %v666, 16
        %v819 = vadd.s32 %v673, 16
        %v820 = vadd.s32 %v680, 16
        %v821 = vadd.s32 %v687, 16
        %v822 = vadd.s32 %v694, 16
        %v823 = vsel %vm759, %v791, %v477
        %v824 = vsel %vm760, %v792, %v484
        %v825 = vsel %vm761, %v793, %v491
        %v826 = vsel %vm762, %v794, %v498
        %v827 = vsel %vm763, %v795, %v505
        %v828 = vsel %vm764, %v796, %v512
        %v829 = vsel %vm765, %v797, %v519
        %v830 = vsel %vm766, %v798, %v526
        %v831 = vsel %vm767, %v799, %v533
        %v832 = vsel %vm768, %v800, %v540
        %v833 = vsel %vm769, %v801, %v547
        %v834 = vsel %vm770, %v802, %v554
        %v835 = vsel %vm771, %v803, %v561
        %v836 = vsel %vm772, %v804, %v568
        %v837 = vsel %vm773, %v805, %v575
        %v838 = vsel %vm774, %v806, %v582
        %v839 = vsel %vm775, %v807, %v589
        %v840 = vsel %vm776, %v808, %v596
        %v841 = vsel %vm777, %v809, %v603
        %v842 = vsel %vm778, %v810, %v610
        %v843 = vsel %vm779, %v811, %v617
        %v844 = vsel %vm780, %v812, %v624
        %v845 = vsel %vm781, %v813, %v631
        %v846 = vsel %vm782, %v814, %v638
        %v847 = vsel %vm783, %v815, %v645
        %v848 = vsel %vm784, %v816, %v652
        %v849 = vsel %vm785, %v817, %v659
        %v850 = vsel %vm786, %v818, %v666
        %v851 = vsel %vm787, %v819, %v673
        %v852 = vsel %vm788, %v820, %v680
        %v853 = vsel %vm789, %v821, %v687
        %v854 = vsel %vm790, %v822, %v694
        %vm855 = vcmp.ne.s32.totalorder %v823, 0
        %vm856 = vcmp.ne.s32.totalorder %v824, 0
        %vm857 = vcmp.ne.s32.totalorder %v825, 0
        %vm858 = vcmp.ne.s32.totalorder %v826, 0
        %vm859 = vcmp.ne.s32.totalorder %v827, 0
        %vm860 = vcmp.ne.s32.totalorder %v828, 0
        %vm861 = vcmp.ne.s32.totalorder %v829, 0
        %vm862 = vcmp.ne.s32.totalorder %v830, 0
        %vm863 = vcmp.ne.s32.totalorder %v831, 0
        %vm864 = vcmp.ne.s32.totalorder %v832, 0
        %vm865 = vcmp.ne.s32.totalorder %v833, 0
        %vm866 = vcmp.ne.s32.totalorder %v834, 0
        %vm867 = vcmp.ne.s32.totalorder %v835, 0
        %vm868 = vcmp.ne.s32.totalorder %v836, 0
        %vm869 = vcmp.ne.s32.totalorder %v837, 0
        %vm870 = vcmp.ne.s32.totalorder %v838, 0
        %vm871 = vcmp.ne.s32.totalorder %v839, 0
        %vm872 = vcmp.ne.s32.totalorder %v840, 0
        %vm873 = vcmp.ne.s32.totalorder %v841, 0
        %vm874 = vcmp.ne.s32.totalorder %v842, 0
        %vm875 = vcmp.ne.s32.totalorder %v843, 0
        %vm876 = vcmp.ne.s32.totalorder %v844, 0
        %vm877 = vcmp.ne.s32.totalorder %v845, 0
        %vm878 = vcmp.ne.s32.totalorder %v846, 0
        %vm879 = vcmp.ne.s32.totalorder %v847, 0
        %vm880 = vcmp.ne.s32.totalorder %v848, 0
        %vm881 = vcmp.ne.s32.totalorder %v849, 0
        %vm882 = vcmp.ne.s32.totalorder %v850, 0
        %vm883 = vcmp.ne.s32.totalorder %v851, 0
        %vm884 = vcmp.ne.s32.totalorder %v852, 0
        %vm885 = vcmp.ne.s32.totalorder %v853, 0
        %vm886 = vcmp.ne.s32.totalorder %v854, 0
        %v887 = vsel %vm855, 1, 0
        %v888 = vsel %vm856, 1, 0
        %v889 = vsel %vm857, 1, 0
        %v890 = vsel %vm858, 1, 0
        %v891 = vsel %vm859, 1, 0
        %v892 = vsel %vm860, 1, 0
        %v893 = vsel %vm861, 1, 0
        %v894 = vsel %vm862, 1, 0
        %v895 = vsel %vm863, 1, 0
        %v896 = vsel %vm864, 1, 0
        %v897 = vsel %vm865, 1, 0
        %v898 = vsel %vm866, 1, 0
        %v899 = vsel %vm867, 1, 0
        %v900 = vsel %vm868, 1, 0
        %v901 = vsel %vm869, 1, 0
        %v902 = vsel %vm870, 1, 0
        %v903 = vsel %vm871, 1, 0
        %v904 = vsel %vm872, 1, 0
        %v905 = vsel %vm873, 1, 0
        %v906 = vsel %vm874, 1, 0
        %v907 = vsel %vm875, 1, 0
        %v908 = vsel %vm876, 1, 0
        %v909 = vsel %vm877, 1, 0
        %v910 = vsel %vm878, 1, 0
        %v911 = vsel %vm879, 1, 0
        %v912 = vsel %vm880, 1, 0
        %v913 = vsel %vm881, 1, 0
        %v914 = vsel %vm882, 1, 0
        %v915 = vsel %vm883, 1, 0
        %v916 = vsel %vm884, 1, 0
        %v917 = vsel %vm885, 1, 0
        %v918 = vsel %vm886, 1, 0
        %v919 = vcvt.s32.f32 %v887
        %v920 = vcvt.s32.f32 %v888
        %v921 = vcvt.s32.f32 %v889
        %v922 = vcvt.s32.f32 %v890
        %v923 = vcvt.s32.f32 %v891
        %v924 = vcvt.s32.f32 %v892
        %v925 = vcvt.s32.f32 %v893
        %v926 = vcvt.s32.f32 %v894
        %v927 = vcvt.s32.f32 %v895
        %v928 = vcvt.s32.f32 %v896
        %v929 = vcvt.s32.f32 %v897
        %v930 = vcvt.s32.f32 %v898
        %v931 = vcvt.s32.f32 %v899
        %v932 = vcvt.s32.f32 %v900
        %v933 = vcvt.s32.f32 %v901
        %v934 = vcvt.s32.f32 %v902
        %v935 = vcvt.s32.f32 %v903
        %v936 = vcvt.s32.f32 %v904
        %v937 = vcvt.s32.f32 %v905
        %v938 = vcvt.s32.f32 %v906
        %v939 = vcvt.s32.f32 %v907
        %v940 = vcvt.s32.f32 %v908
        %v941 = vcvt.s32.f32 %v909
        %v942 = vcvt.s32.f32 %v910
        %v943 = vcvt.s32.f32 %v911
        %v944 = vcvt.s32.f32 %v912
        %v945 = vcvt.s32.f32 %v913
        %v946 = vcvt.s32.f32 %v914
        %v947 = vcvt.s32.f32 %v915
        %v948 = vcvt.s32.f32 %v916
        %v949 = vcvt.s32.f32 %v917
        %v950 = vcvt.s32.f32 %v918
        %vm951 = vcmp.ne.s32.totalorder %v823, 15
        %vm952 = vcmp.ne.s32.totalorder %v824, 15
        %vm953 = vcmp.ne.s32.totalorder %v825, 15
        %vm954 = vcmp.ne.s32.totalorder %v826, 15
        %vm955 = vcmp.ne.s32.totalorder %v827, 15
        %vm956 = vcmp.ne.s32.totalorder %v828, 15
        %vm957 = vcmp.ne.s32.totalorder %v829, 15
        %vm958 = vcmp.ne.s32.totalorder %v830, 15
        %vm959 = vcmp.ne.s32.totalorder %v831, 15
        %vm960 = vcmp.ne.s32.totalorder %v832, 15
        %vm961 = vcmp.ne.s32.totalorder %v833, 15
        %vm962 = vcmp.ne.s32.totalorder %v834, 15
        %vm963 = vcmp.ne.s32.totalorder %v835, 15
        %vm964 = vcmp.ne.s32.totalorder %v836, 15
        %vm965 = vcmp.ne.s32.totalorder %v837, 15
        %vm966 = vcmp.ne.s32.totalorder %v838, 15
        %vm967 = vcmp.ne.s32.totalorder %v839, 15
        %vm968 = vcmp.ne.s32.totalorder %v840, 15
        %vm969 = vcmp.ne.s32.totalorder %v841, 15
        %vm970 = vcmp.ne.s32.totalorder %v842, 15
        %vm971 = vcmp.ne.s32.totalorder %v843, 15
        %vm972 = vcmp.ne.s32.totalorder %v844, 15
        %vm973 = vcmp.ne.s32.totalorder %v845, 15
        %vm974 = vcmp.ne.s32.totalorder %v846, 15
        %vm975 = vcmp.ne.s32.totalorder %v847, 15
        %vm976 = vcmp.ne.s32.totalorder %v848, 15
        %vm977 = vcmp.ne.s32.totalorder %v849, 15
        %vm978 = vcmp.ne.s32.totalorder %v850, 15
        %vm979 = vcmp.ne.s32.totalorder %v851, 15
        %vm980 = vcmp.ne.s32.totalorder %v852, 15
        %vm981 = vcmp.ne.s32.totalorder %v853, 15
        %vm982 = vcmp.ne.s32.totalorder %v854, 15
        %v983 = vsel %vm951, 1, 0
        %v984 = vsel %vm952, 1, 0
        %v985 = vsel %vm953, 1, 0
        %v986 = vsel %vm954, 1, 0
        %v987 = vsel %vm955, 1, 0
        %v988 = vsel %vm956, 1, 0
        %v989 = vsel %vm957, 1, 0
        %v990 = vsel %vm958, 1, 0
        %v991 = vsel %vm959, 1, 0
        %v992 = vsel %vm960, 1, 0
        %v993 = vsel %vm961, 1, 0
        %v994 = vsel %vm962, 1, 0
        %v995 = vsel %vm963, 1, 0
        %v996 = vsel %vm964, 1, 0
        %v997 = vsel %vm965, 1, 0
        %v998 = vsel %vm966, 1, 0
        %v999 = vsel %vm967, 1, 0
        %v1000 = vsel %vm968, 1, 0
        %v1001 = vsel %vm969, 1, 0
        %v1002 = vsel %vm970, 1, 0
        %v1003 = vsel %vm971, 1, 0
        %v1004 = vsel %vm972, 1, 0
        %v1005 = vsel %vm973, 1, 0
        %v1006 = vsel %vm974, 1, 0
        %v1007 = vsel %vm975, 1, 0
        %v1008 = vsel %vm976, 1, 0
        %v1009 = vsel %vm977, 1, 0
        %v1010 = vsel %vm978, 1, 0
        %v1011 = vsel %vm979, 1, 0
        %v1012 = vsel %vm980, 1, 0
        %v1013 = vsel %vm981, 1, 0
        %v1014 = vsel %vm982, 1, 0
        %v1015 = vcvt.s32.f32 %v983
        %v1016 = vcvt.s32.f32 %v984
        %v1017 = vcvt.s32.f32 %v985
        %v1018 = vcvt.s32.f32 %v986
        %v1019 = vcvt.s32.f32 %v987
        %v1020 = vcvt.s32.f32 %v988
        %v1021 = vcvt.s32.f32 %v989
        %v1022 = vcvt.s32.f32 %v990
        %v1023 = vcvt.s32.f32 %v991
        %v1024 = vcvt.s32.f32 %v992
        %v1025 = vcvt.s32.f32 %v993
        %v1026 = vcvt.s32.f32 %v994
        %v1027 = vcvt.s32.f32 %v995
        %v1028 = vcvt.s32.f32 %v996
        %v1029 = vcvt.s32.f32 %v997
        %v1030 = vcvt.s32.f32 %v998
        %v1031 = vcvt.s32.f32 %v999
        %v1032 = vcvt.s32.f32 %v1000
        %v1033 = vcvt.s32.f32 %v1001
        %v1034 = vcvt.s32.f32 %v1002
        %v1035 = vcvt.s32.f32 %v1003
        %v1036 = vcvt.s32.f32 %v1004
        %v1037 = vcvt.s32.f32 %v1005
        %v1038 = vcvt.s32.f32 %v1006
        %v1039 = vcvt.s32.f32 %v1007
        %v1040 = vcvt.s32.f32 %v1008
        %v1041 = vcvt.s32.f32 %v1009
        %v1042 = vcvt.s32.f32 %v1010
        %v1043 = vcvt.s32.f32 %v1011
        %v1044 = vcvt.s32.f32 %v1012
        %v1045 = vcvt.s32.f32 %v1013
        %v1046 = vcvt.s32.f32 %v1014
        %vm1047 = vcmp.lt.s32.totalorder %v439, 0
        %v1048 = vsub.s32 0, %v439
        %v1049 = vsel %vm1047, %v1048, %v439
        %v1050 = vshrl.u32 %v1049, 3
        %v1051 = vand.u32 %v1049, 7
        %v1052 = vsub.s32 0, %v1051
        %v1053 = vsel %vm1047, %v1052, %v1051
        %vm1054 = vcmp.lt.s32.totalorder %v440, 0
        %v1055 = vsub.s32 0, %v440
        %v1056 = vsel %vm1054, %v1055, %v440
        %v1057 = vshrl.u32 %v1056, 3
        %v1058 = vand.u32 %v1056, 7
        %v1059 = vsub.s32 0, %v1058
        %v1060 = vsel %vm1054, %v1059, %v1058
        %vm1061 = vcmp.lt.s32.totalorder %v441, 0
        %v1062 = vsub.s32 0, %v441
        %v1063 = vsel %vm1061, %v1062, %v441
        %v1064 = vshrl.u32 %v1063, 3
        %v1065 = vand.u32 %v1063, 7
        %v1066 = vsub.s32 0, %v1065
        %v1067 = vsel %vm1061, %v1066, %v1065
        %vm1068 = vcmp.lt.s32.totalorder %v442, 0
        %v1069 = vsub.s32 0, %v442
        %v1070 = vsel %vm1068, %v1069, %v442
        %v1071 = vshrl.u32 %v1070, 3
        %v1072 = vand.u32 %v1070, 7
        %v1073 = vsub.s32 0, %v1072
        %v1074 = vsel %vm1068, %v1073, %v1072
        %vm1075 = vcmp.lt.s32.totalorder %v443, 0
        %v1076 = vsub.s32 0, %v443
        %v1077 = vsel %vm1075, %v1076, %v443
        %v1078 = vshrl.u32 %v1077, 3
        %v1079 = vand.u32 %v1077, 7
        %v1080 = vsub.s32 0, %v1079
        %v1081 = vsel %vm1075, %v1080, %v1079
        %vm1082 = vcmp.lt.s32.totalorder %v444, 0
        %v1083 = vsub.s32 0, %v444
        %v1084 = vsel %vm1082, %v1083, %v444
        %v1085 = vshrl.u32 %v1084, 3
        %v1086 = vand.u32 %v1084, 7
        %v1087 = vsub.s32 0, %v1086
        %v1088 = vsel %vm1082, %v1087, %v1086
        %vm1089 = vcmp.lt.s32.totalorder %v445, 0
        %v1090 = vsub.s32 0, %v445
        %v1091 = vsel %vm1089, %v1090, %v445
        %v1092 = vshrl.u32 %v1091, 3
        %v1093 = vand.u32 %v1091, 7
        %v1094 = vsub.s32 0, %v1093
        %v1095 = vsel %vm1089, %v1094, %v1093
        %vm1096 = vcmp.lt.s32.totalorder %v446, 0
        %v1097 = vsub.s32 0, %v446
        %v1098 = vsel %vm1096, %v1097, %v446
        %v1099 = vshrl.u32 %v1098, 3
        %v1100 = vand.u32 %v1098, 7
        %v1101 = vsub.s32 0, %v1100
        %v1102 = vsel %vm1096, %v1101, %v1100
        %vm1103 = vcmp.ne.s32.totalorder %v1053, 0
        %vm1104 = vcmp.ne.s32.totalorder %v1060, 0
        %vm1105 = vcmp.ne.s32.totalorder %v1067, 0
        %vm1106 = vcmp.ne.s32.totalorder %v1074, 0
        %vm1107 = vcmp.ne.s32.totalorder %v1081, 0
        %vm1108 = vcmp.ne.s32.totalorder %v1088, 0
        %vm1109 = vcmp.ne.s32.totalorder %v1095, 0
        %vm1110 = vcmp.ne.s32.totalorder %v1102, 0
        %vm1111 = vcmp.lt.s32.totalorder %v1053, 0
        %vm1112 = vcmp.lt.s32.totalorder %v1060, 0
        %vm1113 = vcmp.lt.s32.totalorder %v1067, 0
        %vm1114 = vcmp.lt.s32.totalorder %v1074, 0
        %vm1115 = vcmp.lt.s32.totalorder %v1081, 0
        %vm1116 = vcmp.lt.s32.totalorder %v1088, 0
        %vm1117 = vcmp.lt.s32.totalorder %v1095, 0
        %vm1118 = vcmp.lt.s32.totalorder %v1102, 0
        %vm1119 = vmand %vm1111, %vm1103
        %vm1120 = vmand %vm1112, %vm1104
        %vm1121 = vmand %vm1113, %vm1105
        %vm1122 = vmand %vm1114, %vm1106
        %vm1123 = vmand %vm1115, %vm1107
        %vm1124 = vmand %vm1116, %vm1108
        %vm1125 = vmand %vm1117, %vm1109
        %vm1126 = vmand %vm1118, %vm1110
        %v1127 = vadd.s32 %v1053, 8
        %v1128 = vadd.s32 %v1060, 8
        %v1129 = vadd.s32 %v1067, 8
        %v1130 = vadd.s32 %v1074, 8
        %v1131 = vadd.s32 %v1081, 8
        %v1132 = vadd.s32 %v1088, 8
        %v1133 = vadd.s32 %v1095, 8
        %v1134 = vadd.s32 %v1102, 8
        %v1135 = vsel %vm1119, %v1127, %v1053
        %v1136 = vsel %vm1120, %v1128, %v1060
        %v1137 = vsel %vm1121, %v1129, %v1067
        %v1138 = vsel %vm1122, %v1130, %v1074
        %v1139 = vsel %vm1123, %v1131, %v1081
        %v1140 = vsel %vm1124, %v1132, %v1088
        %v1141 = vsel %vm1125, %v1133, %v1095
        %v1142 = vsel %vm1126, %v1134, %v1102
        %vm1143 = vcmp.ne.s32.totalorder %v1135, 0
        %vm1144 = vcmp.ne.s32.totalorder %v1136, 0
        %vm1145 = vcmp.ne.s32.totalorder %v1137, 0
        %vm1146 = vcmp.ne.s32.totalorder %v1138, 0
        %vm1147 = vcmp.ne.s32.totalorder %v1139, 0
        %vm1148 = vcmp.ne.s32.totalorder %v1140, 0
        %vm1149 = vcmp.ne.s32.totalorder %v1141, 0
        %vm1150 = vcmp.ne.s32.totalorder %v1142, 0
        %v1151 = vsel %vm1143, 1, 0
        %v1152 = vsel %vm1144, 1, 0
        %v1153 = vsel %vm1145, 1, 0
        %v1154 = vsel %vm1146, 1, 0
        %v1155 = vsel %vm1147, 1, 0
        %v1156 = vsel %vm1148, 1, 0
        %v1157 = vsel %vm1149, 1, 0
        %v1158 = vsel %vm1150, 1, 0
        %v1159 = vcvt.s32.f32 %v1151
        %v1160 = vcvt.s32.f32 %v1152
        %v1161 = vcvt.s32.f32 %v1153
        %v1162 = vcvt.s32.f32 %v1154
        %v1163 = vcvt.s32.f32 %v1155
        %v1164 = vcvt.s32.f32 %v1156
        %v1165 = vcvt.s32.f32 %v1157
        %v1166 = vcvt.s32.f32 %v1158
        %vm1167 = vcmp.ne.s32.totalorder %v1135, 7
        %vm1168 = vcmp.ne.s32.totalorder %v1136, 7
        %vm1169 = vcmp.ne.s32.totalorder %v1137, 7
        %vm1170 = vcmp.ne.s32.totalorder %v1138, 7
        %vm1171 = vcmp.ne.s32.totalorder %v1139, 7
        %vm1172 = vcmp.ne.s32.totalorder %v1140, 7
        %vm1173 = vcmp.ne.s32.totalorder %v1141, 7
        %vm1174 = vcmp.ne.s32.totalorder %v1142, 7
        %v1175 = vsel %vm1167, 1, 0
        %v1176 = vsel %vm1168, 1, 0
        %v1177 = vsel %vm1169, 1, 0
        %v1178 = vsel %vm1170, 1, 0
        %v1179 = vsel %vm1171, 1, 0
        %v1180 = vsel %vm1172, 1, 0
        %v1181 = vsel %vm1173, 1, 0
        %v1182 = vsel %vm1174, 1, 0
        %v1183 = vcvt.s32.f32 %v1175
        %v1184 = vcvt.s32.f32 %v1176
        %v1185 = vcvt.s32.f32 %v1177
        %v1186 = vcvt.s32.f32 %v1178
        %v1187 = vcvt.s32.f32 %v1179
        %v1188 = vcvt.s32.f32 %v1180
        %v1189 = vcvt.s32.f32 %v1181
        %v1190 = vcvt.s32.f32 %v1182
        %v1191 = vld [vmem:[%s1] sm:$0xff]
        %v1192 = vld [vmem:[%s1 + $0x8] sm:$0xff]
        %v1193 = vld [vmem:[%s1 + $0x10] sm:$0xff]
        %v1194 = vld [vmem:[%s1 + $0x18] sm:$0xff]
        %v1195 = vld [vmem:[%s1 + $0x20] sm:$0xff]
        %v1196 = vld [vmem:[%s1 + $0x28] sm:$0xff]
        %v1197 = vld [vmem:[%s1 + $0x30] sm:$0xff]
        %v1198 = vld [vmem:[%s1 + $0x38] sm:$0xff]
        %vm1199 = vcmask 523264
        %v1200 = vsel %vm1199, %v406, 0.0
        %v1201 = vsel %vm1199, %v407, 0.0
        %v1202 = vadd.f32 %v1200, %v1201
        %v1203 = vsel %vm1199, %v408, 0.0
        %v1204 = vadd.f32 %v1202, %v1203
        %v1205 = vsel %vm1199, %v409, 0.0
        %v1206 = vadd.f32 %v1204, %v1205
        %v1207 = vsel %vm1199, %v410, 0.0
        %v1208 = vadd.f32 %v1206, %v1207
        %v1209 = vsel %vm1199, %v411, 0.0
        %v1210 = vadd.f32 %v1208, %v1209
        %v1211 = vsel %vm1199, %v412, 0.0
        %v1212 = vadd.f32 %v1210, %v1211
        %v1213 = vsel %vm1199, %v413, 0.0
        %v1214 = vadd.f32 %v1212, %v1213
        %v1215 = vsel %vm1199, %v414, 0.0
        %v1216 = vadd.f32 %v1214, %v1215
        %v1217 = vsel %vm1199, %v415, 0.0
        %v1218 = vadd.f32 %v1216, %v1217
        %v1219 = vsel %vm1199, %v416, 0.0
        %v1220 = vadd.f32 %v1218, %v1219
        %v1221 = vsel %vm1199, %v417, 0.0
        %v1222 = vadd.f32 %v1220, %v1221
        %v1223 = vsel %vm1199, %v418, 0.0
        %v1224 = vadd.f32 %v1222, %v1223
        %v1225 = vsel %vm1199, %v419, 0.0
        %v1226 = vadd.f32 %v1224, %v1225
        %v1227 = vsel %vm1199, %v420, 0.0
        %v1228 = vadd.f32 %v1226, %v1227
        %v1229 = vsel %vm1199, %v421, 0.0
        %v1230 = vadd.f32 %v1228, %v1229
        %v1231 = vsel %vm1199, %v422, 0.0
        %v1232 = vadd.f32 %v1230, %v1231
        %v1233 = vsel %vm1199, %v423, 0.0
        %v1234 = vadd.f32 %v1232, %v1233
        %v1235 = vsel %vm1199, %v424, 0.0
        %v1236 = vadd.f32 %v1234, %v1235
        %v1237 = vsel %vm1199, %v425, 0.0
        %v1238 = vadd.f32 %v1236, %v1237
        %v1239 = vsel %vm1199, %v426, 0.0
        %v1240 = vadd.f32 %v1238, %v1239
        %v1241 = vsel %vm1199, %v427, 0.0
        %v1242 = vadd.f32 %v1240, %v1241
        %v1243 = vsel %vm1199, %v428, 0.0
        %v1244 = vadd.f32 %v1242, %v1243
        %v1245 = vsel %vm1199, %v429, 0.0
        %v1246 = vadd.f32 %v1244, %v1245
        %v1247 = vsel %vm1199, %v430, 0.0
        %v1248 = vadd.f32 %v1246, %v1247
        %v1249 = vsel %vm1199, %v431, 0.0
        %v1250 = vadd.f32 %v1248, %v1249
        %v1251 = vsel %vm1199, %v432, 0.0
        %v1252 = vadd.f32 %v1250, %v1251
        %v1253 = vsel %vm1199, %v433, 0.0
        %v1254 = vadd.f32 %v1252, %v1253
        %v1255 = vsel %vm1199, %v434, 0.0
        %v1256 = vadd.f32 %v1254, %v1255
        %v1257 = vsel %vm1199, %v435, 0.0
        %v1258 = vadd.f32 %v1256, %v1257
        %v1259 = vsel %vm1199, %v436, 0.0
        %v1260 = vadd.f32 %v1258, %v1259
        %v1261 = vsel %vm1199, %v437, 0.0
        %v1262 = vadd.f32 %v1260, %v1261
        %v1263 = vrot.slane %v1262, 4
        %v1264 = vadd.f32 %v1262, %v1263
        %v1265 = vrot.slane %v1264, 2
        %v1266 = vadd.f32 %v1264, %v1265
        %v1267 = vrot.slane %v1266, 1
        %v1268 = vadd.f32 %v1266, %v1267
        %v1269 = vrcp.pop 256.0
        %v1270 = vmul.f32 %v1268, %v1269
        %v1271 = vmul.f32 %v406, %v406
        %v1272 = vmul.f32 %v407, %v407
        %v1273 = vmul.f32 %v408, %v408
        %v1274 = vmul.f32 %v409, %v409
        %v1275 = vmul.f32 %v410, %v410
        %v1276 = vmul.f32 %v411, %v411
        %v1277 = vmul.f32 %v412, %v412
        %v1278 = vmul.f32 %v413, %v413
        %v1279 = vmul.f32 %v414, %v414
        %v1280 = vmul.f32 %v415, %v415
        %v1281 = vmul.f32 %v416, %v416
        %v1282 = vmul.f32 %v417, %v417
        %v1283 = vmul.f32 %v418, %v418
        %v1284 = vmul.f32 %v419, %v419
        %v1285 = vmul.f32 %v420, %v420
        %v1286 = vmul.f32 %v421, %v421
        %v1287 = vmul.f32 %v422, %v422
        %v1288 = vmul.f32 %v423, %v423
        %v1289 = vmul.f32 %v424, %v424
        %v1290 = vmul.f32 %v425, %v425
        %v1291 = vmul.f32 %v426, %v426
        %v1292 = vmul.f32 %v427, %v427
        %v1293 = vmul.f32 %v428, %v428
        %v1294 = vmul.f32 %v429, %v429
        %v1295 = vmul.f32 %v430, %v430
        %v1296 = vmul.f32 %v431, %v431
        %v1297 = vmul.f32 %v432, %v432
        %v1298 = vmul.f32 %v433, %v433
        %v1299 = vmul.f32 %v434, %v434
        %v1300 = vmul.f32 %v435, %v435
        %v1301 = vmul.f32 %v436, %v436
        %v1302 = vmul.f32 %v437, %v437
        %v1303 = vsel %vm1199, %v1271, 0.0
        %v1304 = vsel %vm1199, %v1272, 0.0
        %v1305 = vadd.f32 %v1303, %v1304
        %v1306 = vsel %vm1199, %v1273, 0.0
        %v1307 = vadd.f32 %v1305, %v1306
        %v1308 = vsel %vm1199, %v1274, 0.0
        %v1309 = vadd.f32 %v1307, %v1308
        %v1310 = vsel %vm1199, %v1275, 0.0
        %v1311 = vadd.f32 %v1309, %v1310
        %v1312 = vsel %vm1199, %v1276, 0.0
        %v1313 = vadd.f32 %v1311, %v1312
        %v1314 = vsel %vm1199, %v1277, 0.0
        %v1315 = vadd.f32 %v1313, %v1314
        %v1316 = vsel %vm1199, %v1278, 0.0
        %v1317 = vadd.f32 %v1315, %v1316
        %v1318 = vsel %vm1199, %v1279, 0.0
        %v1319 = vadd.f32 %v1317, %v1318
        %v1320 = vsel %vm1199, %v1280, 0.0
        %v1321 = vadd.f32 %v1319, %v1320
        %v1322 = vsel %vm1199, %v1281, 0.0
        %v1323 = vadd.f32 %v1321, %v1322
        %v1324 = vsel %vm1199, %v1282, 0.0
        %v1325 = vadd.f32 %v1323, %v1324
        %v1326 = vsel %vm1199, %v1283, 0.0
        %v1327 = vadd.f32 %v1325, %v1326
        %v1328 = vsel %vm1199, %v1284, 0.0
        %v1329 = vadd.f32 %v1327, %v1328
        %v1330 = vsel %vm1199, %v1285, 0.0
        %v1331 = vadd.f32 %v1329, %v1330
        %v1332 = vsel %vm1199, %v1286, 0.0
        %v1333 = vadd.f32 %v1331, %v1332
        %v1334 = vsel %vm1199, %v1287, 0.0
        %v1335 = vadd.f32 %v1333, %v1334
        %v1336 = vsel %vm1199, %v1288, 0.0
        %v1337 = vadd.f32 %v1335, %v1336
        %v1338 = vsel %vm1199, %v1289, 0.0
        %v1339 = vadd.f32 %v1337, %v1338
        %v1340 = vsel %vm1199, %v1290, 0.0
        %v1341 = vadd.f32 %v1339, %v1340
        %v1342 = vsel %vm1199, %v1291, 0.0
        %v1343 = vadd.f32 %v1341, %v1342
        %v1344 = vsel %vm1199, %v1292, 0.0
        %v1345 = vadd.f32 %v1343, %v1344
        %v1346 = vsel %vm1199, %v1293, 0.0
        %v1347 = vadd.f32 %v1345, %v1346
        %v1348 = vsel %vm1199, %v1294, 0.0
        %v1349 = vadd.f32 %v1347, %v1348
        %v1350 = vsel %vm1199, %v1295, 0.0
        %v1351 = vadd.f32 %v1349, %v1350
        %v1352 = vsel %vm1199, %v1296, 0.0
        %v1353 = vadd.f32 %v1351, %v1352
        %v1354 = vsel %vm1199, %v1297, 0.0
        %v1355 = vadd.f32 %v1353, %v1354
        %v1356 = vsel %vm1199, %v1298, 0.0
        %v1357 = vadd.f32 %v1355, %v1356
        %v1358 = vsel %vm1199, %v1299, 0.0
        %v1359 = vadd.f32 %v1357, %v1358
        %v1360 = vsel %vm1199, %v1300, 0.0
        %v1361 = vadd.f32 %v1359, %v1360
        %v1362 = vsel %vm1199, %v1301, 0.0
        %v1363 = vadd.f32 %v1361, %v1362
        %v1364 = vsel %vm1199, %v1302, 0.0
        %v1365 = vadd.f32 %v1363, %v1364
        %v1366 = vrot.slane %v1365, 4
        %v1367 = vadd.f32 %v1365, %v1366
        %v1368 = vrot.slane %v1367, 2
        %v1369 = vadd.f32 %v1367, %v1368
        %v1370 = vrot.slane %v1369, 1
        %v1371 = vadd.f32 %v1369, %v1370
        %v1372 = vmul.f32 %v1371, %v1269
        %v1373 = vmul.f32 %v1270, %v1270
        %v1374 = vsub.f32 %v1372, %v1373
        %v1375 = vmax.f32 %v1374, 0.0
        %v1376 = vadd.f32 %v1375, 1e-05
        %v1377 = vrsqrt.pop %v1376
        %v1378 = vld [vmem:[%s2] sm:$0x1]
        %v1379 = vmul.f32 %v1377, %v1378
        %v1380 = vld [vmem:[%s3] sm:$0x1]
        %v1381 = vmul.f32 %v1270, %v1379
        %v1382 = vsub.f32 %v1380, %v1381
        %v1383 = vlaneseq
        %v1384 = vshrl.u32 %v1383, 7
        %v1385 = vsub.s32 0, %v1384
        %v1386 = vrot.slane %v1379, %v1385
        %v1387 = vmul.f32 %v406, %v1386
        %v1388 = vmul.f32 %v407, %v1386
        %v1389 = vmul.f32 %v408, %v1386
        %v1390 = vmul.f32 %v409, %v1386
        %v1391 = vmul.f32 %v410, %v1386
        %v1392 = vmul.f32 %v411, %v1386
        %v1393 = vmul.f32 %v412, %v1386
        %v1394 = vmul.f32 %v413, %v1386
        %v1395 = vmul.f32 %v414, %v1386
        %v1396 = vmul.f32 %v415, %v1386
        %v1397 = vmul.f32 %v416, %v1386
        %v1398 = vmul.f32 %v417, %v1386
        %v1399 = vmul.f32 %v418, %v1386
        %v1400 = vmul.f32 %v419, %v1386
        %v1401 = vmul.f32 %v420, %v1386
        %v1402 = vmul.f32 %v421, %v1386
        %v1403 = vmul.f32 %v422, %v1386
        %v1404 = vmul.f32 %v423, %v1386
        %v1405 = vmul.f32 %v424, %v1386
        %v1406 = vmul.f32 %v425, %v1386
        %v1407 = vmul.f32 %v426, %v1386
        %v1408 = vmul.f32 %v427, %v1386
        %v1409 = vmul.f32 %v428, %v1386
        %v1410 = vmul.f32 %v429, %v1386
        %v1411 = vmul.f32 %v430, %v1386
        %v1412 = vmul.f32 %v431, %v1386
        %v1413 = vmul.f32 %v432, %v1386
        %v1414 = vmul.f32 %v433, %v1386
        %v1415 = vmul.f32 %v434, %v1386
        %v1416 = vmul.f32 %v435, %v1386
        %v1417 = vmul.f32 %v436, %v1386
        %v1418 = vmul.f32 %v437, %v1386
        %v1420 = vlaneseq
        %v1421 = vshrl.u32 %v1420, 7
        %v1422 = vsub.s32 0, %v1421
        %v1423 = vrot.slane %v1382, %v1422
        %v1425 = vadd.f32 %v1387, %v1423
        %v1426 = vadd.f32 %v1388, %v1423
        %v1427 = vadd.f32 %v1389, %v1423
        %v1428 = vadd.f32 %v1390, %v1423
        %v1429 = vadd.f32 %v1391, %v1423
        %v1430 = vadd.f32 %v1392, %v1423
        %v1431 = vadd.f32 %v1393, %v1423
        %v1432 = vadd.f32 %v1394, %v1423
        %v1433 = vadd.f32 %v1395, %v1423
        %v1434 = vadd.f32 %v1396, %v1423
        %v1435 = vadd.f32 %v1397, %v1423
        %v1436 = vadd.f32 %v1398, %v1423
        %v1437 = vadd.f32 %v1399, %v1423
        %v1438 = vadd.f32 %v1400, %v1423
        %v1439 = vadd.f32 %v1401, %v1423
        %v1440 = vadd.f32 %v1402, %v1423
        %v1441 = vadd.f32 %v1403, %v1423
        %v1442 = vadd.f32 %v1404, %v1423
        %v1443 = vadd.f32 %v1405, %v1423
        %v1444 = vadd.f32 %v1406, %v1423
        %v1445 = vadd.f32 %v1407, %v1423
        %v1446 = vadd.f32 %v1408, %v1423
        %v1447 = vadd.f32 %v1409, %v1423
        %v1448 = vadd.f32 %v1410, %v1423
        %v1449 = vadd.f32 %v1411, %v1423
        %v1450 = vadd.f32 %v1412, %v1423
        %v1451 = vadd.f32 %v1413, %v1423
        %v1452 = vadd.f32 %v1414, %v1423
        %v1453 = vadd.f32 %v1415, %v1423
        %v1454 = vadd.f32 %v1416, %v1423
        %v1455 = vadd.f32 %v1417, %v1423
        %v1456 = vadd.f32 %v1418, %v1423
        %v1457 = vmul.f32 %v1425, 0.2
        %v1458 = vmul.f32 %v1426, 0.2
        %v1459 = vmul.f32 %v1427, 0.2
        %v1460 = vmul.f32 %v1428, 0.2
        %v1461 = vmul.f32 %v1429, 0.2
        %v1462 = vmul.f32 %v1430, 0.2
        %v1463 = vmul.f32 %v1431, 0.2
        %v1464 = vmul.f32 %v1432, 0.2
        %v1465 = vmul.f32 %v1433, 0.2
        %v1466 = vmul.f32 %v1434, 0.2
        %v1467 = vmul.f32 %v1435, 0.2
        %v1468 = vmul.f32 %v1436, 0.2
        %v1469 = vmul.f32 %v1437, 0.2
        %v1470 = vmul.f32 %v1438, 0.2
        %v1471 = vmul.f32 %v1439, 0.2
        %v1472 = vmul.f32 %v1440, 0.2
        %v1473 = vmul.f32 %v1441, 0.2
        %v1474 = vmul.f32 %v1442, 0.2
        %v1475 = vmul.f32 %v1443, 0.2
        %v1476 = vmul.f32 %v1444, 0.2
        %v1477 = vmul.f32 %v1445, 0.2
        %v1478 = vmul.f32 %v1446, 0.2
        %v1479 = vmul.f32 %v1447, 0.2
        %v1480 = vmul.f32 %v1448, 0.2
        %v1481 = vmul.f32 %v1449, 0.2
        %v1482 = vmul.f32 %v1450, 0.2
        %v1483 = vmul.f32 %v1451, 0.2
        %v1484 = vmul.f32 %v1452, 0.2
        %v1485 = vmul.f32 %v1453, 0.2
        %v1486 = vmul.f32 %v1454, 0.2
        %v1487 = vmul.f32 %v1455, 0.2
        %v1488 = vmul.f32 %v1456, 0.2
        %v1489 = vmax.f32 %v1425, %v1457
        %v1490 = vmax.f32 %v1426, %v1458
        %v1491 = vmax.f32 %v1427, %v1459
        %v1492 = vmax.f32 %v1428, %v1460
        %v1493 = vmax.f32 %v1429, %v1461
        %v1494 = vmax.f32 %v1430, %v1462
        %v1495 = vmax.f32 %v1431, %v1463
        %v1496 = vmax.f32 %v1432, %v1464
        %v1497 = vmax.f32 %v1433, %v1465
        %v1498 = vmax.f32 %v1434, %v1466
        %v1499 = vmax.f32 %v1435, %v1467
        %v1500 = vmax.f32 %v1436, %v1468
        %v1501 = vmax.f32 %v1437, %v1469
        %v1502 = vmax.f32 %v1438, %v1470
        %v1503 = vmax.f32 %v1439, %v1471
        %v1504 = vmax.f32 %v1440, %v1472
        %v1505 = vmax.f32 %v1441, %v1473
        %v1506 = vmax.f32 %v1442, %v1474
        %v1507 = vmax.f32 %v1443, %v1475
        %v1508 = vmax.f32 %v1444, %v1476
        %v1509 = vmax.f32 %v1445, %v1477
        %v1510 = vmax.f32 %v1446, %v1478
        %v1511 = vmax.f32 %v1447, %v1479
        %v1512 = vmax.f32 %v1448, %v1480
        %v1513 = vmax.f32 %v1449, %v1481
        %v1514 = vmax.f32 %v1450, %v1482
        %v1515 = vmax.f32 %v1451, %v1483
        %v1516 = vmax.f32 %v1452, %v1484
        %v1517 = vmax.f32 %v1453, %v1485
        %v1518 = vmax.f32 %v1454, %v1486
        %v1519 = vmax.f32 %v1455, %v1487
        %v1520 = vmax.f32 %v1456, %v1488
        %vm1553 = vcmask 1046528
        %v1554 = vrot.slane %v919, 1
        %v1555 = vrot.slane %v920, 1
        %v1556 = vsel %vm1553, %v1554, %v1555
        %v1557 = vrot.slane %v921, 1
        %v1558 = vsel %vm1553, %v1555, %v1557
        %v1559 = vrot.slane %v922, 1
        %v1560 = vsel %vm1553, %v1557, %v1559
        %v1561 = vrot.slane %v923, 1
        %v1562 = vsel %vm1553, %v1559, %v1561
        %v1563 = vrot.slane %v924, 1
        %v1564 = vsel %vm1553, %v1561, %v1563
        %v1565 = vrot.slane %v925, 1
        %v1566 = vsel %vm1553, %v1563, %v1565
        %v1567 = vrot.slane %v926, 1
        %v1568 = vsel %vm1553, %v1565, %v1567
        %v1569 = vrot.slane %v927, 1
        %v1570 = vsel %vm1553, %v1567, %v1569
        %v1571 = vrot.slane %v928, 1
        %v1572 = vsel %vm1553, %v1569, %v1571
        %v1573 = vrot.slane %v929, 1
        %v1574 = vsel %vm1553, %v1571, %v1573
        %v1575 = vrot.slane %v930, 1
        %v1576 = vsel %vm1553, %v1573, %v1575
        %v1577 = vrot.slane %v931, 1
        %v1578 = vsel %vm1553, %v1575, %v1577
        %v1579 = vrot.slane %v932, 1
        %v1580 = vsel %vm1553, %v1577, %v1579
        %v1581 = vrot.slane %v933, 1
        %v1582 = vsel %vm1553, %v1579, %v1581
        %v1583 = vrot.slane %v934, 1
        %v1584 = vsel %vm1553, %v1581, %v1583
        %v1585 = vrot.slane %v935, 1
        %v1586 = vsel %vm1553, %v1583, %v1585
        %v1587 = vrot.slane %v936, 1
        %v1588 = vsel %vm1553, %v1585, %v1587
        %v1589 = vrot.slane %v937, 1
        %v1590 = vsel %vm1553, %v1587, %v1589
        %v1591 = vrot.slane %v938, 1
        %v1592 = vsel %vm1553, %v1589, %v1591
        %v1593 = vrot.slane %v939, 1
        %v1594 = vsel %vm1553, %v1591, %v1593
        %v1595 = vrot.slane %v940, 1
        %v1596 = vsel %vm1553, %v1593, %v1595
        %v1597 = vrot.slane %v941, 1
        %v1598 = vsel %vm1553, %v1595, %v1597
        %v1599 = vrot.slane %v942, 1
        %v1600 = vsel %vm1553, %v1597, %v1599
        %v1601 = vrot.slane %v943, 1
        %v1602 = vsel %vm1553, %v1599, %v1601
        %v1603 = vrot.slane %v944, 1
        %v1604 = vsel %vm1553, %v1601, %v1603
        %v1605 = vrot.slane %v945, 1
        %v1606 = vsel %vm1553, %v1603, %v1605
        %v1607 = vrot.slane %v946, 1
        %v1608 = vsel %vm1553, %v1605, %v1607
        %v1609 = vrot.slane %v947, 1
        %v1610 = vsel %vm1553, %v1607, %v1609
        %v1611 = vrot.slane %v948, 1
        %v1612 = vsel %vm1553, %v1609, %v1611
        %v1613 = vrot.slane %v949, 1
        %v1614 = vsel %vm1553, %v1611, %v1613
        %v1615 = vrot.slane %v950, 1
        %v1616 = vsel %vm1553, %v1613, %v1615
        %v1650 = vmul.f32 %v1554, 0.0
        %v1651 = vmul.f32 %v1556, 0.0
        %v1652 = vmul.f32 %v1558, 0.0
        %v1653 = vmul.f32 %v1489, %v1560
        %v1654 = vmul.f32 %v1490, %v1562
        %v1655 = vmul.f32 %v1491, %v1564
        %v1656 = vmul.f32 %v1492, %v1566
        %v1657 = vmul.f32 %v1493, %v1568
        %v1658 = vmul.f32 %v1494, %v1570
        %v1659 = vmul.f32 %v1495, %v1572
        %v1660 = vmul.f32 %v1496, %v1574
        %v1661 = vmul.f32 %v1497, %v1576
        %v1662 = vmul.f32 %v1498, %v1578
        %v1663 = vmul.f32 %v1499, %v1580
        %v1664 = vmul.f32 %v1500, %v1582
        %v1665 = vmul.f32 %v1501, %v1584
        %v1666 = vmul.f32 %v1502, %v1586
        %v1667 = vmul.f32 %v1503, %v1588
        %v1668 = vmul.f32 %v1504, %v1590
        %v1669 = vmul.f32 %v1505, %v1592
        %v1670 = vmul.f32 %v1506, %v1594
        %v1671 = vmul.f32 %v1507, %v1596
        %v1672 = vmul.f32 %v1508, %v1598
        %v1673 = vmul.f32 %v1509, %v1600
        %v1674 = vmul.f32 %v1510, %v1602
        %v1675 = vmul.f32 %v1511, %v1604
        %v1676 = vmul.f32 %v1512, %v1606
        %v1677 = vmul.f32 %v1513, %v1608
        %v1678 = vmul.f32 %v1514, %v1610
        %v1679 = vmul.f32 %v1515, %v1612
        %v1680 = vmul.f32 %v1516, %v1614
        %v1681 = vmul.f32 %v1517, %v1616
        %v1682 = vmul.f32 %v1518, %v1615
        %vm1715 = vcmask 1040384
        %v1716 = vrot.slane %v1015, 7
        %v1717 = vrot.slane %v1016, 7
        %v1718 = vsel %vm1715, %v1716, %v1717
        %v1719 = vrot.slane %v1017, 7
        %v1720 = vsel %vm1715, %v1717, %v1719
        %v1721 = vrot.slane %v1018, 7
        %v1722 = vsel %vm1715, %v1719, %v1721
        %v1723 = vrot.slane %v1019, 7
        %v1724 = vsel %vm1715, %v1721, %v1723
        %v1725 = vrot.slane %v1020, 7
        %v1726 = vsel %vm1715, %v1723, %v1725
        %v1727 = vrot.slane %v1021, 7
        %v1728 = vsel %vm1715, %v1725, %v1727
        %v1729 = vrot.slane %v1022, 7
        %v1730 = vsel %vm1715, %v1727, %v1729
        %v1731 = vrot.slane %v1023, 7
        %v1732 = vsel %vm1715, %v1729, %v1731
        %v1733 = vrot.slane %v1024, 7
        %v1734 = vsel %vm1715, %v1731, %v1733
        %v1735 = vrot.slane %v1025, 7
        %v1736 = vsel %vm1715, %v1733, %v1735
        %v1737 = vrot.slane %v1026, 7
        %v1738 = vsel %vm1715, %v1735, %v1737
        %v1739 = vrot.slane %v1027, 7
        %v1740 = vsel %vm1715, %v1737, %v1739
        %v1741 = vrot.slane %v1028, 7
        %v1742 = vsel %vm1715, %v1739, %v1741
        %v1743 = vrot.slane %v1029, 7
        %v1744 = vsel %vm1715, %v1741, %v1743
        %v1745 = vrot.slane %v1030, 7
        %v1746 = vsel %vm1715, %v1743, %v1745
        %v1747 = vrot.slane %v1031, 7
        %v1748 = vsel %vm1715, %v1745, %v1747
        %v1749 = vrot.slane %v1032, 7
        %v1750 = vsel %vm1715, %v1747, %v1749
        %v1751 = vrot.slane %v1033, 7
        %v1752 = vsel %vm1715, %v1749, %v1751
        %v1753 = vrot.slane %v1034, 7
        %v1754 = vsel %vm1715, %v1751, %v1753
        %v1755 = vrot.slane %v1035, 7
        %v1756 = vsel %vm1715, %v1753, %v1755
        %v1757 = vrot.slane %v1036, 7
        %v1758 = vsel %vm1715, %v1755, %v1757
        %v1759 = vrot.slane %v1037, 7
        %v1760 = vsel %vm1715, %v1757, %v1759
        %v1761 = vrot.slane %v1038, 7
        %v1762 = vsel %vm1715, %v1759, %v1761
        %v1763 = vrot.slane %v1039, 7
        %v1764 = vsel %vm1715, %v1761, %v1763
        %v1765 = vrot.slane %v1040, 7
        %v1766 = vsel %vm1715, %v1763, %v1765
        %v1767 = vrot.slane %v1041, 7
        %v1768 = vsel %vm1715, %v1765, %v1767
        %v1769 = vrot.slane %v1042, 7
        %v1770 = vsel %vm1715, %v1767, %v1769
        %v1771 = vrot.slane %v1043, 7
        %v1772 = vsel %vm1715, %v1769, %v1771
        %v1773 = vrot.slane %v1044, 7
        %v1774 = vsel %vm1715, %v1771, %v1773
        %v1775 = vrot.slane %v1045, 7
        %v1776 = vsel %vm1715, %v1773, %v1775
        %v1777 = vrot.slane %v1046, 7
        %v1778 = vsel %vm1715, %v1775, %v1777
        %v1812 = vmul.f32 %v1716, 0.0
        %v1813 = vmul.f32 %v1718, 0.0
        %v1814 = vmul.f32 %v1489, %v1720
        %v1815 = vmul.f32 %v1490, %v1722
        %v1816 = vmul.f32 %v1491, %v1724
        %v1817 = vmul.f32 %v1492, %v1726
        %v1818 = vmul.f32 %v1493, %v1728
        %v1819 = vmul.f32 %v1494, %v1730
        %v1820 = vmul.f32 %v1495, %v1732
        %v1821 = vmul.f32 %v1496, %v1734
        %v1822 = vmul.f32 %v1497, %v1736
        %v1823 = vmul.f32 %v1498, %v1738
        %v1824 = vmul.f32 %v1499, %v1740
        %v1825 = vmul.f32 %v1500, %v1742
        %v1826 = vmul.f32 %v1501, %v1744
        %v1827 = vmul.f32 %v1502, %v1746
        %v1828 = vmul.f32 %v1503, %v1748
        %v1829 = vmul.f32 %v1504, %v1750
        %v1830 = vmul.f32 %v1505, %v1752
        %v1831 = vmul.f32 %v1506, %v1754
        %v1832 = vmul.f32 %v1507, %v1756
        %v1833 = vmul.f32 %v1508, %v1758
        %v1834 = vmul.f32 %v1509, %v1760
        %v1835 = vmul.f32 %v1510, %v1762
        %v1836 = vmul.f32 %v1511, %v1764
        %v1837 = vmul.f32 %v1512, %v1766
        %v1838 = vmul.f32 %v1513, %v1768
        %v1839 = vmul.f32 %v1514, %v1770
        %v1840 = vmul.f32 %v1515, %v1772
        %v1841 = vmul.f32 %v1516, %v1774
        %v1842 = vmul.f32 %v1517, %v1776
        %v1843 = vmul.f32 %v1518, %v1778
        %v1844 = vmul.f32 %v1519, %v1777
        %v1845 = vmul.f32 %v1489, %v1556
        %v1846 = vmul.f32 %v1490, %v1558
        %v1847 = vmul.f32 %v1491, %v1560
        %v1848 = vmul.f32 %v1492, %v1562
        %v1849 = vmul.f32 %v1493, %v1564
        %v1850 = vmul.f32 %v1494, %v1566
        %v1851 = vmul.f32 %v1495, %v1568
        %v1852 = vmul.f32 %v1496, %v1570
        %v1853 = vmul.f32 %v1497, %v1572
        %v1854 = vmul.f32 %v1498, %v1574
        %v1855 = vmul.f32 %v1499, %v1576
        %v1856 = vmul.f32 %v1500, %v1578
        %v1857 = vmul.f32 %v1501, %v1580
        %v1858 = vmul.f32 %v1502, %v1582
        %v1859 = vmul.f32 %v1503, %v1584
        %v1860 = vmul.f32 %v1504, %v1586
        %v1861 = vmul.f32 %v1505, %v1588
        %v1862 = vmul.f32 %v1506, %v1590
        %v1863 = vmul.f32 %v1507, %v1592
        %v1864 = vmul.f32 %v1508, %v1594
        %v1865 = vmul.f32 %v1509, %v1596
        %v1866 = vmul.f32 %v1510, %v1598
        %v1867 = vmul.f32 %v1511, %v1600
        %v1868 = vmul.f32 %v1512, %v1602
        %v1869 = vmul.f32 %v1513, %v1604
        %v1870 = vmul.f32 %v1514, %v1606
        %v1871 = vmul.f32 %v1515, %v1608
        %v1872 = vmul.f32 %v1516, %v1610
        %v1873 = vmul.f32 %v1517, %v1612
        %v1874 = vmul.f32 %v1518, %v1614
        %v1875 = vmul.f32 %v1519, %v1616
        %v1876 = vmul.f32 %v1520, %v1615
        %v1877 = vmul.f32 %v1489, %v1716
        %v1878 = vmul.f32 %v1490, %v1718
        %v1879 = vmul.f32 %v1491, %v1720
        %v1880 = vmul.f32 %v1492, %v1722
        %v1881 = vmul.f32 %v1493, %v1724
        %v1882 = vmul.f32 %v1494, %v1726
        %v1883 = vmul.f32 %v1495, %v1728
        %v1884 = vmul.f32 %v1496, %v1730
        %v1885 = vmul.f32 %v1497, %v1732
        %v1886 = vmul.f32 %v1498, %v1734
        %v1887 = vmul.f32 %v1499, %v1736
        %v1888 = vmul.f32 %v1500, %v1738
        %v1889 = vmul.f32 %v1501, %v1740
        %v1890 = vmul.f32 %v1502, %v1742
        %v1891 = vmul.f32 %v1503, %v1744
        %v1892 = vmul.f32 %v1504, %v1746
        %v1893 = vmul.f32 %v1505, %v1748
        %v1894 = vmul.f32 %v1506, %v1750
        %v1895 = vmul.f32 %v1507, %v1752
        %v1896 = vmul.f32 %v1508, %v1754
        %v1897 = vmul.f32 %v1509, %v1756
        %v1898 = vmul.f32 %v1510, %v1758
        %v1899 = vmul.f32 %v1511, %v1760
        %v1900 = vmul.f32 %v1512, %v1762
        %v1901 = vmul.f32 %v1513, %v1764
        %v1902 = vmul.f32 %v1514, %v1766
        %v1903 = vmul.f32 %v1515, %v1768
        %v1904 = vmul.f32 %v1516, %v1770
        %v1905 = vmul.f32 %v1517, %v1772
        %v1906 = vmul.f32 %v1518, %v1774
        %v1907 = vmul.f32 %v1519, %v1776
        %v1908 = vmul.f32 %v1520, %v1778
        %v1909 = vmul.f32 %v1777, 0.0
        %v1910 = vmul.f32 %v1490, %v1554
        %v1911 = vmul.f32 %v1491, %v1556
        %v1912 = vmul.f32 %v1492, %v1558
        %v1913 = vmul.f32 %v1493, %v1560
        %v1914 = vmul.f32 %v1494, %v1562
        %v1915 = vmul.f32 %v1495, %v1564
        %v1916 = vmul.f32 %v1496, %v1566
        %v1917 = vmul.f32 %v1497, %v1568
        %v1918 = vmul.f32 %v1498, %v1570
        %v1919 = vmul.f32 %v1499, %v1572
        %v1920 = vmul.f32 %v1500, %v1574
        %v1921 = vmul.f32 %v1501, %v1576
        %v1922 = vmul.f32 %v1502, %v1578
        %v1923 = vmul.f32 %v1503, %v1580
        %v1924 = vmul.f32 %v1504, %v1582
        %v1925 = vmul.f32 %v1505, %v1584
        %v1926 = vmul.f32 %v1506, %v1586
        %v1927 = vmul.f32 %v1507, %v1588
        %v1928 = vmul.f32 %v1508, %v1590
        %v1929 = vmul.f32 %v1509, %v1592
        %v1930 = vmul.f32 %v1510, %v1594
        %v1931 = vmul.f32 %v1511, %v1596
        %v1932 = vmul.f32 %v1512, %v1598
        %v1933 = vmul.f32 %v1513, %v1600
        %v1934 = vmul.f32 %v1514, %v1602
        %v1935 = vmul.f32 %v1515, %v1604
        %v1936 = vmul.f32 %v1516, %v1606
        %v1937 = vmul.f32 %v1517, %v1608
        %v1938 = vmul.f32 %v1518, %v1610
        %v1939 = vmul.f32 %v1519, %v1612
        %v1940 = vmul.f32 %v1520, %v1614
        %v1941 = vmul.f32 %v1616, 0.0
        %v1942 = vmul.f32 %v1615, 0.0
        %v1943 = vmul.f32 %v1491, %v1716
        %v1944 = vmul.f32 %v1492, %v1718
        %v1945 = vmul.f32 %v1493, %v1720
        %v1946 = vmul.f32 %v1494, %v1722
        %v1947 = vmul.f32 %v1495, %v1724
        %v1948 = vmul.f32 %v1496, %v1726
        %v1949 = vmul.f32 %v1497, %v1728
        %v1950 = vmul.f32 %v1498, %v1730
        %v1951 = vmul.f32 %v1499, %v1732
        %v1952 = vmul.f32 %v1500, %v1734
        %v1953 = vmul.f32 %v1501, %v1736
        %v1954 = vmul.f32 %v1502, %v1738
        %v1955 = vmul.f32 %v1503, %v1740
        %v1956 = vmul.f32 %v1504, %v1742
        %v1957 = vmul.f32 %v1505, %v1744
        %v1958 = vmul.f32 %v1506, %v1746
        %v1959 = vmul.f32 %v1507, %v1748
        %v1960 = vmul.f32 %v1508, %v1750
        %v1961 = vmul.f32 %v1509, %v1752
        %v1962 = vmul.f32 %v1510, %v1754
        %v1963 = vmul.f32 %v1511, %v1756
        %v1964 = vmul.f32 %v1512, %v1758
        %v1965 = vmul.f32 %v1513, %v1760
        %v1966 = vmul.f32 %v1514, %v1762
        %v1967 = vmul.f32 %v1515, %v1764
        %v1968 = vmul.f32 %v1516, %v1766
        %v1969 = vmul.f32 %v1517, %v1768
        %v1970 = vmul.f32 %v1518, %v1770
        %v1971 = vmul.f32 %v1519, %v1772
        %v1972 = vmul.f32 %v1520, %v1774
        %v1973 = vmul.f32 %v1776, 0.0
        %v1974 = vmul.f32 %v1778, 0.0
        %v2006 = vrot.slane 0.0, 1
        %v2007 = vsel %vm1553, %v2006, %v2006
        %v2008 = vrot.slane %v1489, 1
        %v2009 = vsel %vm1553, %v2006, %v2008
        %v2010 = vrot.slane %v1490, 1
        %v2011 = vsel %vm1553, %v2008, %v2010
        %v2012 = vrot.slane %v1491, 1
        %v2013 = vsel %vm1553, %v2010, %v2012
        %v2014 = vrot.slane %v1492, 1
        %v2015 = vsel %vm1553, %v2012, %v2014
        %v2016 = vrot.slane %v1493, 1
        %v2017 = vsel %vm1553, %v2014, %v2016
        %v2018 = vrot.slane %v1494, 1
        %v2019 = vsel %vm1553, %v2016, %v2018
        %v2020 = vrot.slane %v1495, 1
        %v2021 = vsel %vm1553, %v2018, %v2020
        %v2022 = vrot.slane %v1496, 1
        %v2023 = vsel %vm1553, %v2020, %v2022
        %v2024 = vrot.slane %v1497, 1
        %v2025 = vsel %vm1553, %v2022, %v2024
        %v2026 = vrot.slane %v1498, 1
        %v2027 = vsel %vm1553, %v2024, %v2026
        %v2028 = vrot.slane %v1499, 1
        %v2029 = vsel %vm1553, %v2026, %v2028
        %v2030 = vrot.slane %v1500, 1
        %v2031 = vsel %vm1553, %v2028, %v2030
        %v2032 = vrot.slane %v1501, 1
        %v2033 = vsel %vm1553, %v2030, %v2032
        %v2034 = vrot.slane %v1502, 1
        %v2035 = vsel %vm1553, %v2032, %v2034
        %v2036 = vrot.slane %v1503, 1
        %v2037 = vsel %vm1553, %v2034, %v2036
        %v2038 = vrot.slane %v1504, 1
        %v2039 = vsel %vm1553, %v2036, %v2038
        %v2040 = vrot.slane %v1505, 1
        %v2041 = vsel %vm1553, %v2038, %v2040
        %v2042 = vrot.slane %v1506, 1
        %v2043 = vsel %vm1553, %v2040, %v2042
        %v2044 = vrot.slane %v1507, 1
        %v2045 = vsel %vm1553, %v2042, %v2044
        %v2046 = vrot.slane %v1508, 1
        %v2047 = vsel %vm1553, %v2044, %v2046
        %v2048 = vrot.slane %v1509, 1
        %v2049 = vsel %vm1553, %v2046, %v2048
        %v2050 = vrot.slane %v1510, 1
        %v2051 = vsel %vm1553, %v2048, %v2050
        %v2052 = vrot.slane %v1511, 1
        %v2053 = vsel %vm1553, %v2050, %v2052
        %v2054 = vrot.slane %v1512, 1
        %v2055 = vsel %vm1553, %v2052, %v2054
        %v2056 = vrot.slane %v1513, 1
        %v2057 = vsel %vm1553, %v2054, %v2056
        %v2058 = vrot.slane %v1514, 1
        %v2059 = vsel %vm1553, %v2056, %v2058
        %v2060 = vrot.slane %v1515, 1
        %v2061 = vsel %vm1553, %v2058, %v2060
        %v2062 = vrot.slane %v1516, 1
        %v2063 = vsel %vm1553, %v2060, %v2062
        %v2064 = vrot.slane %v1517, 1
        %v2065 = vsel %vm1553, %v2062, %v2064
        %v2066 = vrot.slane %v1518, 1
        %v2067 = vsel %vm1553, %v2064, %v2066
        %2068 = vrot.lane.b32.xlu0 %v2006, 64
        %v2069 = vpop.permute.xlu0 %2068
        %2070 = vrot.lane.b32.xlu0 %v2007, 64
        %v2071 = vpop.permute.xlu0 %2070
        %2072 = vrot.lane.b32.xlu0 %v2009, 64
        %v2073 = vpop.permute.xlu0 %2072
        %2074 = vrot.lane.b32.xlu0 %v2011, 64
        %v2075 = vpop.permute.xlu0 %2074
        %2076 = vrot.lane.b32.xlu0 %v2013, 64
        %v2077 = vpop.permute.xlu0 %2076
        %2078 = vrot.lane.b32.xlu0 %v2015, 64
        %v2079 = vpop.permute.xlu0 %2078
        %2080 = vrot.lane.b32.xlu0 %v2017, 64
        %v2081 = vpop.permute.xlu0 %2080
        %2082 = vrot.lane.b32.xlu0 %v2019, 64
        %v2083 = vpop.permute.xlu0 %2082
        %2084 = vrot.lane.b32.xlu0 %v2021, 64
        %v2085 = vpop.permute.xlu0 %2084
        %2086 = vrot.lane.b32.xlu0 %v2023, 64
        %v2087 = vpop.permute.xlu0 %2086
        %2088 = vrot.lane.b32.xlu0 %v2025, 64
        %v2089 = vpop.permute.xlu0 %2088
        %2090 = vrot.lane.b32.xlu0 %v2027, 64
        %v2091 = vpop.permute.xlu0 %2090
        %2092 = vrot.lane.b32.xlu0 %v2029, 64
        %v2093 = vpop.permute.xlu0 %2092
        %2094 = vrot.lane.b32.xlu0 %v2031, 64
        %v2095 = vpop.permute.xlu0 %2094
        %2096 = vrot.lane.b32.xlu0 %v2033, 64
        %v2097 = vpop.permute.xlu0 %2096
        %2098 = vrot.lane.b32.xlu0 %v2035, 64
        %v2099 = vpop.permute.xlu0 %2098
        %2100 = vrot.lane.b32.xlu0 %v2037, 64
        %v2101 = vpop.permute.xlu0 %2100
        %2102 = vrot.lane.b32.xlu0 %v2039, 64
        %v2103 = vpop.permute.xlu0 %2102
        %2104 = vrot.lane.b32.xlu0 %v2041, 64
        %v2105 = vpop.permute.xlu0 %2104
        %2106 = vrot.lane.b32.xlu0 %v2043, 64
        %v2107 = vpop.permute.xlu0 %2106
        %2108 = vrot.lane.b32.xlu0 %v2045, 64
        %v2109 = vpop.permute.xlu0 %2108
        %2110 = vrot.lane.b32.xlu0 %v2047, 64
        %v2111 = vpop.permute.xlu0 %2110
        %2112 = vrot.lane.b32.xlu0 %v2049, 64
        %v2113 = vpop.permute.xlu0 %2112
        %2114 = vrot.lane.b32.xlu0 %v2051, 64
        %v2115 = vpop.permute.xlu0 %2114
        %2116 = vrot.lane.b32.xlu0 %v2053, 64
        %v2117 = vpop.permute.xlu0 %2116
        %2118 = vrot.lane.b32.xlu0 %v2055, 64
        %v2119 = vpop.permute.xlu0 %2118
        %2120 = vrot.lane.b32.xlu0 %v2057, 64
        %v2121 = vpop.permute.xlu0 %2120
        %2122 = vrot.lane.b32.xlu0 %v2059, 64
        %v2123 = vpop.permute.xlu0 %2122
        %2124 = vrot.lane.b32.xlu0 %v2061, 64
        %v2125 = vpop.permute.xlu0 %2124
        %2126 = vrot.lane.b32.xlu0 %v2063, 64
        %v2127 = vpop.permute.xlu0 %2126
        %2128 = vrot.lane.b32.xlu0 %v2065, 64
        %v2129 = vpop.permute.xlu0 %2128
        %2130 = vrot.lane.b32.xlu0 %v2067, 64
        %v2131 = vpop.permute.xlu0 %2130
        %2132 = vrot.lane.b32.xlu0 %v2066, 64
        %v2133 = vpop.permute.xlu0 %2132
        %vm2200 = vcmask 1045504
        %v2201 = vrot.slane %v1812, 2
        %v2202 = vrot.slane %v1813, 2
        %v2203 = vsel %vm2200, %v2201, %v2202
        %v2204 = vrot.slane %v1814, 2
        %v2205 = vsel %vm2200, %v2202, %v2204
        %v2206 = vrot.slane %v1815, 2
        %v2207 = vsel %vm2200, %v2204, %v2206
        %v2208 = vrot.slane %v1816, 2
        %v2209 = vsel %vm2200, %v2206, %v2208
        %v2210 = vrot.slane %v1817, 2
        %v2211 = vsel %vm2200, %v2208, %v2210
        %v2212 = vrot.slane %v1818, 2
        %v2213 = vsel %vm2200, %v2210, %v2212
        %v2214 = vrot.slane %v1819, 2
        %v2215 = vsel %vm2200, %v2212, %v2214
        %v2216 = vrot.slane %v1820, 2
        %v2217 = vsel %vm2200, %v2214, %v2216
        %v2218 = vrot.slane %v1821, 2
        %v2219 = vsel %vm2200, %v2216, %v2218
        %v2220 = vrot.slane %v1822, 2
        %v2221 = vsel %vm2200, %v2218, %v2220
        %v2222 = vrot.slane %v1823, 2
        %v2223 = vsel %vm2200, %v2220, %v2222
        %v2224 = vrot.slane %v1824, 2
        %v2225 = vsel %vm2200, %v2222, %v2224
        %v2226 = vrot.slane %v1825, 2
        %v2227 = vsel %vm2200, %v2224, %v2226
        %v2228 = vrot.slane %v1826, 2
        %v2229 = vsel %vm2200, %v2226, %v2228
        %v2230 = vrot.slane %v1827, 2
        %v2231 = vsel %vm2200, %v2228, %v2230
        %v2232 = vrot.slane %v1828, 2
        %v2233 = vsel %vm2200, %v2230, %v2232
        %v2234 = vrot.slane %v1829, 2
        %v2235 = vsel %vm2200, %v2232, %v2234
        %v2236 = vrot.slane %v1830, 2
        %v2237 = vsel %vm2200, %v2234, %v2236
        %v2238 = vrot.slane %v1831, 2
        %v2239 = vsel %vm2200, %v2236, %v2238
        %v2240 = vrot.slane %v1832, 2
        %v2241 = vsel %vm2200, %v2238, %v2240
        %v2242 = vrot.slane %v1833, 2
        %v2243 = vsel %vm2200, %v2240, %v2242
        %v2244 = vrot.slane %v1834, 2
        %v2245 = vsel %vm2200, %v2242, %v2244
        %v2246 = vrot.slane %v1835, 2
        %v2247 = vsel %vm2200, %v2244, %v2246
        %v2248 = vrot.slane %v1836, 2
        %v2249 = vsel %vm2200, %v2246, %v2248
        %v2250 = vrot.slane %v1837, 2
        %v2251 = vsel %vm2200, %v2248, %v2250
        %v2252 = vrot.slane %v1838, 2
        %v2253 = vsel %vm2200, %v2250, %v2252
        %v2254 = vrot.slane %v1839, 2
        %v2255 = vsel %vm2200, %v2252, %v2254
        %v2256 = vrot.slane %v1840, 2
        %v2257 = vsel %vm2200, %v2254, %v2256
        %v2258 = vrot.slane %v1841, 2
        %v2259 = vsel %vm2200, %v2256, %v2258
        %v2260 = vrot.slane %v1842, 2
        %v2261 = vsel %vm2200, %v2258, %v2260
        %v2262 = vrot.slane %v1843, 2
        %v2263 = vsel %vm2200, %v2260, %v2262
        %v2264 = vrot.slane %v1844, 2
        %v2265 = vsel %vm2200, %v2262, %v2264
        %2332 = vrot.lane.b32.xlu0 %v1650, 64
        %v2333 = vpop.permute.xlu0 %2332
        %2334 = vrot.lane.b32.xlu0 %v1845, 64
        %v2335 = vpop.permute.xlu0 %2334
        %2336 = vrot.lane.b32.xlu0 %v1846, 64
        %v2337 = vpop.permute.xlu0 %2336
        %2338 = vrot.lane.b32.xlu0 %v1847, 64
        %v2339 = vpop.permute.xlu0 %2338
        %2340 = vrot.lane.b32.xlu0 %v1848, 64
        %v2341 = vpop.permute.xlu0 %2340
        %2342 = vrot.lane.b32.xlu0 %v1849, 64
        %v2343 = vpop.permute.xlu0 %2342
        %2344 = vrot.lane.b32.xlu0 %v1850, 64
        %v2345 = vpop.permute.xlu0 %2344
        %2346 = vrot.lane.b32.xlu0 %v1851, 64
        %v2347 = vpop.permute.xlu0 %2346
        %2348 = vrot.lane.b32.xlu0 %v1852, 64
        %v2349 = vpop.permute.xlu0 %2348
        %2350 = vrot.lane.b32.xlu0 %v1853, 64
        %v2351 = vpop.permute.xlu0 %2350
        %2352 = vrot.lane.b32.xlu0 %v1854, 64
        %v2353 = vpop.permute.xlu0 %2352
        %2354 = vrot.lane.b32.xlu0 %v1855, 64
        %v2355 = vpop.permute.xlu0 %2354
        %2356 = vrot.lane.b32.xlu0 %v1856, 64
        %v2357 = vpop.permute.xlu0 %2356
        %2358 = vrot.lane.b32.xlu0 %v1857, 64
        %v2359 = vpop.permute.xlu0 %2358
        %2360 = vrot.lane.b32.xlu0 %v1858, 64
        %v2361 = vpop.permute.xlu0 %2360
        %2362 = vrot.lane.b32.xlu0 %v1859, 64
        %v2363 = vpop.permute.xlu0 %2362
        %2364 = vrot.lane.b32.xlu0 %v1860, 64
        %v2365 = vpop.permute.xlu0 %2364
        %2366 = vrot.lane.b32.xlu0 %v1861, 64
        %v2367 = vpop.permute.xlu0 %2366
        %2368 = vrot.lane.b32.xlu0 %v1862, 64
        %v2369 = vpop.permute.xlu0 %2368
        %2370 = vrot.lane.b32.xlu0 %v1863, 64
        %v2371 = vpop.permute.xlu0 %2370
        %2372 = vrot.lane.b32.xlu0 %v1864, 64
        %v2373 = vpop.permute.xlu0 %2372
        %2374 = vrot.lane.b32.xlu0 %v1865, 64
        %v2375 = vpop.permute.xlu0 %2374
        %2376 = vrot.lane.b32.xlu0 %v1866, 64
        %v2377 = vpop.permute.xlu0 %2376
        %2378 = vrot.lane.b32.xlu0 %v1867, 64
        %v2379 = vpop.permute.xlu0 %2378
        %2380 = vrot.lane.b32.xlu0 %v1868, 64
        %v2381 = vpop.permute.xlu0 %2380
        %2382 = vrot.lane.b32.xlu0 %v1869, 64
        %v2383 = vpop.permute.xlu0 %2382
        %2384 = vrot.lane.b32.xlu0 %v1870, 64
        %v2385 = vpop.permute.xlu0 %2384
        %2386 = vrot.lane.b32.xlu0 %v1871, 64
        %v2387 = vpop.permute.xlu0 %2386
        %2388 = vrot.lane.b32.xlu0 %v1872, 64
        %v2389 = vpop.permute.xlu0 %2388
        %2390 = vrot.lane.b32.xlu0 %v1873, 64
        %v2391 = vpop.permute.xlu0 %2390
        %2392 = vrot.lane.b32.xlu0 %v1874, 64
        %v2393 = vpop.permute.xlu0 %2392
        %2394 = vrot.lane.b32.xlu0 %v1875, 64
        %v2395 = vpop.permute.xlu0 %2394
        %2396 = vrot.lane.b32.xlu0 %v1876, 64
        %v2397 = vpop.permute.xlu0 %2396
        %v2433 = vrot.slane %v1519, 1
        %v2434 = vsel %vm1553, %v2066, %v2433
        %v2435 = vrot.slane %v1520, 1
        %v2436 = vsel %vm1553, %v2433, %v2435
        %v2503 = vrot.slane %v1877, 2
        %v2504 = vrot.slane %v1878, 2
        %v2505 = vsel %vm2200, %v2503, %v2504
        %v2506 = vrot.slane %v1879, 2
        %v2507 = vsel %vm2200, %v2504, %v2506
        %v2508 = vrot.slane %v1880, 2
        %v2509 = vsel %vm2200, %v2506, %v2508
        %v2510 = vrot.slane %v1881, 2
        %v2511 = vsel %vm2200, %v2508, %v2510
        %v2512 = vrot.slane %v1882, 2
        %v2513 = vsel %vm2200, %v2510, %v2512
        %v2514 = vrot.slane %v1883, 2
        %v2515 = vsel %vm2200, %v2512, %v2514
        %v2516 = vrot.slane %v1884, 2
        %v2517 = vsel %vm2200, %v2514, %v2516
        %v2518 = vrot.slane %v1885, 2
        %v2519 = vsel %vm2200, %v2516, %v2518
        %v2520 = vrot.slane %v1886, 2
        %v2521 = vsel %vm2200, %v2518, %v2520
        %v2522 = vrot.slane %v1887, 2
        %v2523 = vsel %vm2200, %v2520, %v2522
        %v2524 = vrot.slane %v1888, 2
        %v2525 = vsel %vm2200, %v2522, %v2524
        %v2526 = vrot.slane %v1889, 2
        %v2527 = vsel %vm2200, %v2524, %v2526
        %v2528 = vrot.slane %v1890, 2
        %v2529 = vsel %vm2200, %v2526, %v2528
        %v2530 = vrot.slane %v1891, 2
        %v2531 = vsel %vm2200, %v2528, %v2530
        %v2532 = vrot.slane %v1892, 2
        %v2533 = vsel %vm2200, %v2530, %v2532
        %v2534 = vrot.slane %v1893, 2
        %v2535 = vsel %vm2200, %v2532, %v2534
        %v2536 = vrot.slane %v1894, 2
        %v2537 = vsel %vm2200, %v2534, %v2536
        %v2538 = vrot.slane %v1895, 2
        %v2539 = vsel %vm2200, %v2536, %v2538
        %v2540 = vrot.slane %v1896, 2
        %v2541 = vsel %vm2200, %v2538, %v2540
        %v2542 = vrot.slane %v1897, 2
        %v2543 = vsel %vm2200, %v2540, %v2542
        %v2544 = vrot.slane %v1898, 2
        %v2545 = vsel %vm2200, %v2542, %v2544
        %v2546 = vrot.slane %v1899, 2
        %v2547 = vsel %vm2200, %v2544, %v2546
        %v2548 = vrot.slane %v1900, 2
        %v2549 = vsel %vm2200, %v2546, %v2548
        %v2550 = vrot.slane %v1901, 2
        %v2551 = vsel %vm2200, %v2548, %v2550
        %v2552 = vrot.slane %v1902, 2
        %v2553 = vsel %vm2200, %v2550, %v2552
        %v2554 = vrot.slane %v1903, 2
        %v2555 = vsel %vm2200, %v2552, %v2554
        %v2556 = vrot.slane %v1904, 2
        %v2557 = vsel %vm2200, %v2554, %v2556
        %v2558 = vrot.slane %v1905, 2
        %v2559 = vsel %vm2200, %v2556, %v2558
        %v2560 = vrot.slane %v1906, 2
        %v2561 = vsel %vm2200, %v2558, %v2560
        %v2562 = vrot.slane %v1907, 2
        %v2563 = vsel %vm2200, %v2560, %v2562
        %v2564 = vrot.slane %v1908, 2
        %v2565 = vsel %vm2200, %v2562, %v2564
        %v2566 = vrot.slane %v1909, 2
        %v2567 = vsel %vm2200, %v2564, %v2566
        %2568 = vrot.lane.b32.xlu0 %v2503, 64
        %v2569 = vpop.permute.xlu0 %2568
        %2570 = vrot.lane.b32.xlu0 %v2505, 64
        %v2571 = vpop.permute.xlu0 %2570
        %2572 = vrot.lane.b32.xlu0 %v2507, 64
        %v2573 = vpop.permute.xlu0 %2572
        %2574 = vrot.lane.b32.xlu0 %v2509, 64
        %v2575 = vpop.permute.xlu0 %2574
        %2576 = vrot.lane.b32.xlu0 %v2511, 64
        %v2577 = vpop.permute.xlu0 %2576
        %2578 = vrot.lane.b32.xlu0 %v2513, 64
        %v2579 = vpop.permute.xlu0 %2578
        %2580 = vrot.lane.b32.xlu0 %v2515, 64
        %v2581 = vpop.permute.xlu0 %2580
        %2582 = vrot.lane.b32.xlu0 %v2517, 64
        %v2583 = vpop.permute.xlu0 %2582
        %2584 = vrot.lane.b32.xlu0 %v2519, 64
        %v2585 = vpop.permute.xlu0 %2584
        %2586 = vrot.lane.b32.xlu0 %v2521, 64
        %v2587 = vpop.permute.xlu0 %2586
        %2588 = vrot.lane.b32.xlu0 %v2523, 64
        %v2589 = vpop.permute.xlu0 %2588
        %2590 = vrot.lane.b32.xlu0 %v2525, 64
        %v2591 = vpop.permute.xlu0 %2590
        %2592 = vrot.lane.b32.xlu0 %v2527, 64
        %v2593 = vpop.permute.xlu0 %2592
        %2594 = vrot.lane.b32.xlu0 %v2529, 64
        %v2595 = vpop.permute.xlu0 %2594
        %2596 = vrot.lane.b32.xlu0 %v2531, 64
        %v2597 = vpop.permute.xlu0 %2596
        %2598 = vrot.lane.b32.xlu0 %v2533, 64
        %v2599 = vpop.permute.xlu0 %2598
        %2600 = vrot.lane.b32.xlu0 %v2535, 64
        %v2601 = vpop.permute.xlu0 %2600
        %2602 = vrot.lane.b32.xlu0 %v2537, 64
        %v2603 = vpop.permute.xlu0 %2602
        %2604 = vrot.lane.b32.xlu0 %v2539, 64
        %v2605 = vpop.permute.xlu0 %2604
        %2606 = vrot.lane.b32.xlu0 %v2541, 64
        %v2607 = vpop.permute.xlu0 %2606
        %2608 = vrot.lane.b32.xlu0 %v2543, 64
        %v2609 = vpop.permute.xlu0 %2608
        %2610 = vrot.lane.b32.xlu0 %v2545, 64
        %v2611 = vpop.permute.xlu0 %2610
        %2612 = vrot.lane.b32.xlu0 %v2547, 64
        %v2613 = vpop.permute.xlu0 %2612
        %2614 = vrot.lane.b32.xlu0 %v2549, 64
        %v2615 = vpop.permute.xlu0 %2614
        %2616 = vrot.lane.b32.xlu0 %v2551, 64
        %v2617 = vpop.permute.xlu0 %2616
        %2618 = vrot.lane.b32.xlu0 %v2553, 64
        %v2619 = vpop.permute.xlu0 %2618
        %2620 = vrot.lane.b32.xlu0 %v2555, 64
        %v2621 = vpop.permute.xlu0 %2620
        %2622 = vrot.lane.b32.xlu0 %v2557, 64
        %v2623 = vpop.permute.xlu0 %2622
        %2624 = vrot.lane.b32.xlu0 %v2559, 64
        %v2625 = vpop.permute.xlu0 %2624
        %2626 = vrot.lane.b32.xlu0 %v2561, 64
        %v2627 = vpop.permute.xlu0 %2626
        %2628 = vrot.lane.b32.xlu0 %v2563, 64
        %v2629 = vpop.permute.xlu0 %2628
        %2630 = vrot.lane.b32.xlu0 %v2565, 64
        %v2631 = vpop.permute.xlu0 %2630
        %2632 = vrot.lane.b32.xlu0 %v2567, 64
        %v2633 = vpop.permute.xlu0 %2632
        %v2667 = vsel %vm1553, %v2435, %v2006
        %2668 = vrot.lane.b32.xlu0 %v2012, 64
        %v2669 = vpop.permute.xlu0 %2668
        %2670 = vrot.lane.b32.xlu0 %v2434, 64
        %v2671 = vpop.permute.xlu0 %2670
        %2672 = vrot.lane.b32.xlu0 %v2436, 64
        %v2673 = vpop.permute.xlu0 %2672
        %2674 = vrot.lane.b32.xlu0 %v2667, 64
        %v2675 = vpop.permute.xlu0 %2674
        %v2712 = vrot.slane %v1943, 2
        %v2713 = vrot.slane %v1944, 2
        %v2714 = vsel %vm2200, %v2712, %v2713
        %v2715 = vrot.slane %v1945, 2
        %v2716 = vsel %vm2200, %v2713, %v2715
        %v2717 = vrot.slane %v1946, 2
        %v2718 = vsel %vm2200, %v2715, %v2717
        %v2719 = vrot.slane %v1947, 2
        %v2720 = vsel %vm2200, %v2717, %v2719
        %v2721 = vrot.slane %v1948, 2
        %v2722 = vsel %vm2200, %v2719, %v2721
        %v2723 = vrot.slane %v1949, 2
        %v2724 = vsel %vm2200, %v2721, %v2723
        %v2725 = vrot.slane %v1950, 2
        %v2726 = vsel %vm2200, %v2723, %v2725
        %v2727 = vrot.slane %v1951, 2
        %v2728 = vsel %vm2200, %v2725, %v2727
        %v2729 = vrot.slane %v1952, 2
        %v2730 = vsel %vm2200, %v2727, %v2729
        %v2731 = vrot.slane %v1953, 2
        %v2732 = vsel %vm2200, %v2729, %v2731
        %v2733 = vrot.slane %v1954, 2
        %v2734 = vsel %vm2200, %v2731, %v2733
        %v2735 = vrot.slane %v1955, 2
        %v2736 = vsel %vm2200, %v2733, %v2735
        %v2737 = vrot.slane %v1956, 2
        %v2738 = vsel %vm2200, %v2735, %v2737
        %v2739 = vrot.slane %v1957, 2
        %v2740 = vsel %vm2200, %v2737, %v2739
        %v2741 = vrot.slane %v1958, 2
        %v2742 = vsel %vm2200, %v2739, %v2741
        %v2743 = vrot.slane %v1959, 2
        %v2744 = vsel %vm2200, %v2741, %v2743
        %v2745 = vrot.slane %v1960, 2
        %v2746 = vsel %vm2200, %v2743, %v2745
        %v2747 = vrot.slane %v1961, 2
        %v2748 = vsel %vm2200, %v2745, %v2747
        %v2749 = vrot.slane %v1962, 2
        %v2750 = vsel %vm2200, %v2747, %v2749
        %v2751 = vrot.slane %v1963, 2
        %v2752 = vsel %vm2200, %v2749, %v2751
        %v2753 = vrot.slane %v1964, 2
        %v2754 = vsel %vm2200, %v2751, %v2753
        %v2755 = vrot.slane %v1965, 2
        %v2756 = vsel %vm2200, %v2753, %v2755
        %v2757 = vrot.slane %v1966, 2
        %v2758 = vsel %vm2200, %v2755, %v2757
        %v2759 = vrot.slane %v1967, 2
        %v2760 = vsel %vm2200, %v2757, %v2759
        %v2761 = vrot.slane %v1968, 2
        %v2762 = vsel %vm2200, %v2759, %v2761
        %v2763 = vrot.slane %v1969, 2
        %v2764 = vsel %vm2200, %v2761, %v2763
        %v2765 = vrot.slane %v1970, 2
        %v2766 = vsel %vm2200, %v2763, %v2765
        %v2767 = vrot.slane %v1971, 2
        %v2768 = vsel %vm2200, %v2765, %v2767
        %v2769 = vrot.slane %v1972, 2
        %v2770 = vsel %vm2200, %v2767, %v2769
        %v2771 = vrot.slane %v1973, 2
        %v2772 = vsel %vm2200, %v2769, %v2771
        %v2773 = vrot.slane %v1974, 2
        %v2774 = vsel %vm2200, %v2771, %v2773
        %v2775 = vsel %vm2200, %v2773, %v2566
        %v2809 = vsel %vm1199, %v1650, %v2069
        %v2810 = vsel %vm1199, %v1651, %v2071
        %v2811 = vsel %vm1199, %v1652, %v2073
        %v2812 = vsel %vm1199, %v1653, %v2075
        %v2813 = vsel %vm1199, %v1654, %v2077
        %v2814 = vsel %vm1199, %v1655, %v2079
        %v2815 = vsel %vm1199, %v1656, %v2081
        %v2816 = vsel %vm1199, %v1657, %v2083
        %v2817 = vsel %vm1199, %v1658, %v2085
        %v2818 = vsel %vm1199, %v1659, %v2087
        %v2819 = vsel %vm1199, %v1660, %v2089
        %v2820 = vsel %vm1199, %v1661, %v2091
        %v2821 = vsel %vm1199, %v1662, %v2093
        %v2822 = vsel %vm1199, %v1663, %v2095
        %v2823 = vsel %vm1199, %v1664, %v2097
        %v2824 = vsel %vm1199, %v1665, %v2099
        %v2825 = vsel %vm1199, %v1666, %v2101
        %v2826 = vsel %vm1199, %v1667, %v2103
        %v2827 = vsel %vm1199, %v1668, %v2105
        %v2828 = vsel %vm1199, %v1669, %v2107
        %v2829 = vsel %vm1199, %v1670, %v2109
        %v2830 = vsel %vm1199, %v1671, %v2111
        %v2831 = vsel %vm1199, %v1672, %v2113
        %v2832 = vsel %vm1199, %v1673, %v2115
        %v2833 = vsel %vm1199, %v1674, %v2117
        %v2834 = vsel %vm1199, %v1675, %v2119
        %v2835 = vsel %vm1199, %v1676, %v2121
        %v2836 = vsel %vm1199, %v1677, %v2123
        %v2837 = vsel %vm1199, %v1678, %v2125
        %v2838 = vsel %vm1199, %v1679, %v2127
        %v2839 = vsel %vm1199, %v1680, %v2129
        %v2840 = vsel %vm1199, %v1681, %v2131
        %v2841 = vsel %vm1199, %v1682, %v2133
        %v2842 = vsel %vm1199, %v2201, %v2333
        %v2843 = vsel %vm1199, %v2203, %v2335
        %v2844 = vsel %vm1199, %v2205, %v2337
        %v2845 = vsel %vm1199, %v2207, %v2339
        %v2846 = vsel %vm1199, %v2209, %v2341
        %v2847 = vsel %vm1199, %v2211, %v2343
        %v2848 = vsel %vm1199, %v2213, %v2345
        %v2849 = vsel %vm1199, %v2215, %v2347
        %v2850 = vsel %vm1199, %v2217, %v2349
        %v2851 = vsel %vm1199, %v2219, %v2351
        %v2852 = vsel %vm1199, %v2221, %v2353
        %v2853 = vsel %vm1199, %v2223, %v2355
        %v2854 = vsel %vm1199, %v2225, %v2357
        %v2855 = vsel %vm1199, %v2227, %v2359
        %v2856 = vsel %vm1199, %v2229, %v2361
        %v2857 = vsel %vm1199, %v2231, %v2363
        %v2858 = vsel %vm1199, %v2233, %v2365
        %v2859 = vsel %vm1199, %v2235, %v2367
        %v2860 = vsel %vm1199, %v2237, %v2369
        %v2861 = vsel %vm1199, %v2239, %v2371
        %v2862 = vsel %vm1199, %v2241, %v2373
        %v2863 = vsel %vm1199, %v2243, %v2375
        %v2864 = vsel %vm1199, %v2245, %v2377
        %v2865 = vsel %vm1199, %v2247, %v2379
        %v2866 = vsel %vm1199, %v2249, %v2381
        %v2867 = vsel %vm1199, %v2251, %v2383
        %v2868 = vsel %vm1199, %v2253, %v2385
        %v2869 = vsel %vm1199, %v2255, %v2387
        %v2870 = vsel %vm1199, %v2257, %v2389
        %v2871 = vsel %vm1199, %v2259, %v2391
        %v2872 = vsel %vm1199, %v2261, %v2393
        %v2873 = vsel %vm1199, %v2263, %v2395
        %v2874 = vsel %vm1199, %v2265, %v2397
        %v2875 = vsel %vm1199, %v2008, %v2569
        %v2876 = vsel %vm1199, %v2011, %v2571
        %v2877 = vsel %vm1199, %v2013, %v2573
        %v2878 = vsel %vm1199, %v2015, %v2575
        %v2879 = vsel %vm1199, %v2017, %v2577
        %v2880 = vsel %vm1199, %v2019, %v2579
        %v2881 = vsel %vm1199, %v2021, %v2581
        %v2882 = vsel %vm1199, %v2023, %v2583
        %v2883 = vsel %vm1199, %v2025, %v2585
        %v2884 = vsel %vm1199, %v2027, %v2587
        %v2885 = vsel %vm1199, %v2029, %v2589
        %v2886 = vsel %vm1199, %v2031, %v2591
        %v2887 = vsel %vm1199, %v2033, %v2593
        %v2888 = vsel %vm1199, %v2035, %v2595
        %v2889 = vsel %vm1199, %v2037, %v2597
        %v2890 = vsel %vm1199, %v2039, %v2599
        %v2891 = vsel %vm1199, %v2041, %v2601
        %v2892 = vsel %vm1199, %v2043, %v2603
        %v2893 = vsel %vm1199, %v2045, %v2605
        %v2894 = vsel %vm1199, %v2047, %v2607
        %v2895 = vsel %vm1199, %v2049, %v2609
        %v2896 = vsel %vm1199, %v2051, %v2611
        %v2897 = vsel %vm1199, %v2053, %v2613
        %v2898 = vsel %vm1199, %v2055, %v2615
        %v2899 = vsel %vm1199, %v2057, %v2617
        %v2900 = vsel %vm1199, %v2059, %v2619
        %v2901 = vsel %vm1199, %v2061, %v2621
        %v2902 = vsel %vm1199, %v2063, %v2623
        %v2903 = vsel %vm1199, %v2065, %v2625
        %v2904 = vsel %vm1199, %v2067, %v2627
        %v2905 = vsel %vm1199, %v2434, %v2629
        %v2906 = vsel %vm1199, %v2436, %v2631
        %v2907 = vsel %vm1199, %v2435, %v2633
        %v2908 = vsel %vm1199, %v1910, %v2669
        %v2909 = vsel %vm1199, %v1911, %v2079
        %v2910 = vsel %vm1199, %v1912, %v2081
        %v2911 = vsel %vm1199, %v1913, %v2083
        %v2912 = vsel %vm1199, %v1914, %v2085
        %v2913 = vsel %vm1199, %v1915, %v2087
        %v2914 = vsel %vm1199, %v1916, %v2089
        %v2915 = vsel %vm1199, %v1917, %v2091
        %v2916 = vsel %vm1199, %v1918, %v2093
        %v2917 = vsel %vm1199, %v1919, %v2095
        %v2918 = vsel %vm1199, %v1920, %v2097
        %v2919 = vsel %vm1199, %v1921, %v2099
        %v2920 = vsel %vm1199, %v1922, %v2101
        %v2921 = vsel %vm1199, %v1923, %v2103
        %v2922 = vsel %vm1199, %v1924, %v2105
        %v2923 = vsel %vm1199, %v1925, %v2107
        %v2924 = vsel %vm1199, %v1926, %v2109
        %v2925 = vsel %vm1199, %v1927, %v2111
        %v2926 = vsel %vm1199, %v1928, %v2113
        %v2927 = vsel %vm1199, %v1929, %v2115
        %v2928 = vsel %vm1199, %v1930, %v2117
        %v2929 = vsel %vm1199, %v1931, %v2119
        %v2930 = vsel %vm1199, %v1932, %v2121
        %v2931 = vsel %vm1199, %v1933, %v2123
        %v2932 = vsel %vm1199, %v1934, %v2125
        %v2933 = vsel %vm1199, %v1935, %v2127
        %v2934 = vsel %vm1199, %v1936, %v2129
        %v2935 = vsel %vm1199, %v1937, %v2131
        %v2936 = vsel %vm1199, %v1938, %v2671
        %v2937 = vsel %vm1199, %v1939, %v2673
        %v2938 = vsel %vm1199, %v1940, %v2675
        %v2939 = vsel %vm1199, %v1941, %v2071
        %v2940 = vsel %vm1199, %v1942, %v2069
        %v2941 = vpack.c.bf16 %v2810, %v2809
        %v2942 = vpack.c.bf16 %v2843, %v2842
        %v2943 = vpack.c.bf16 %v2876, %v2875
        %v2944 = vpack.c.bf16 %v2909, %v2908
        %v2945 = vpack.c.bf16 %v2714, %v2712
        %v2946 = vpack.c.bf16 %v2812, %v2811
        %v2947 = vpack.c.bf16 %v2845, %v2844
        %v2948 = vpack.c.bf16 %v2878, %v2877
        %v2949 = vpack.c.bf16 %v2911, %v2910
        %v2950 = vpack.c.bf16 %v2718, %v2716
        %v2951 = vpack.c.bf16 %v2814, %v2813
        %v2952 = vpack.c.bf16 %v2847, %v2846
        %v2953 = vpack.c.bf16 %v2880, %v2879
        %v2954 = vpack.c.bf16 %v2913, %v2912
        %v2955 = vpack.c.bf16 %v2722, %v2720
        %v2956 = vpack.c.bf16 %v2816, %v2815
        %v2957 = vpack.c.bf16 %v2849, %v2848
        %v2958 = vpack.c.bf16 %v2882, %v2881
        %v2959 = vpack.c.bf16 %v2915, %v2914
        %v2960 = vpack.c.bf16 %v2726, %v2724
        %v2961 = vpack.c.bf16 %v2818, %v2817
        %v2962 = vpack.c.bf16 %v2851, %v2850
        %v2963 = vpack.c.bf16 %v2884, %v2883
        %v2964 = vpack.c.bf16 %v2917, %v2916
        %v2965 = vpack.c.bf16 %v2730, %v2728
        %v2966 = vpack.c.bf16 %v2820, %v2819
        %v2967 = vpack.c.bf16 %v2853, %v2852
        %v2968 = vpack.c.bf16 %v2886, %v2885
        %v2969 = vpack.c.bf16 %v2919, %v2918
        %v2970 = vpack.c.bf16 %v2734, %v2732
        %v2971 = vpack.c.bf16 %v2822, %v2821
        %v2972 = vpack.c.bf16 %v2855, %v2854
        %v2973 = vpack.c.bf16 %v2888, %v2887
        %v2974 = vpack.c.bf16 %v2921, %v2920
        %v2975 = vpack.c.bf16 %v2738, %v2736
        %v2976 = vpack.c.bf16 %v2824, %v2823
        %v2977 = vpack.c.bf16 %v2857, %v2856
        %v2978 = vpack.c.bf16 %v2890, %v2889
        %v2979 = vpack.c.bf16 %v2923, %v2922
        %v2980 = vpack.c.bf16 %v2742, %v2740
        %v2981 = vpack.c.bf16 %v2826, %v2825
        %v2982 = vpack.c.bf16 %v2859, %v2858
        %v2983 = vpack.c.bf16 %v2892, %v2891
        %v2984 = vpack.c.bf16 %v2925, %v2924
        %v2985 = vpack.c.bf16 %v2746, %v2744
        %v2986 = vpack.c.bf16 %v2828, %v2827
        %v2987 = vpack.c.bf16 %v2861, %v2860
        %v2988 = vpack.c.bf16 %v2894, %v2893
        %v2989 = vpack.c.bf16 %v2927, %v2926
        %v2990 = vpack.c.bf16 %v2750, %v2748
        %v2991 = vpack.c.bf16 %v2830, %v2829
        %v2992 = vpack.c.bf16 %v2863, %v2862
        %v2993 = vpack.c.bf16 %v2896, %v2895
        %v2994 = vpack.c.bf16 %v2929, %v2928
        %v2995 = vpack.c.bf16 %v2754, %v2752
        %v2996 = vpack.c.bf16 %v2832, %v2831
        %v2997 = vpack.c.bf16 %v2865, %v2864
        %v2998 = vpack.c.bf16 %v2898, %v2897
        %v2999 = vpack.c.bf16 %v2931, %v2930
        %v3000 = vpack.c.bf16 %v2758, %v2756
        %v3001 = vpack.c.bf16 %v2834, %v2833
        %v3002 = vpack.c.bf16 %v2867, %v2866
        %v3003 = vpack.c.bf16 %v2900, %v2899
        %v3004 = vpack.c.bf16 %v2933, %v2932
        %v3005 = vpack.c.bf16 %v2762, %v2760
        %v3006 = vpack.c.bf16 %v2836, %v2835
        %v3007 = vpack.c.bf16 %v2869, %v2868
        %v3008 = vpack.c.bf16 %v2902, %v2901
        %v3009 = vpack.c.bf16 %v2935, %v2934
        %v3010 = vpack.c.bf16 %v2766, %v2764
        %v3011 = vpack.c.bf16 %v2838, %v2837
        %v3012 = vpack.c.bf16 %v2871, %v2870
        %v3013 = vpack.c.bf16 %v2904, %v2903
        %v3014 = vpack.c.bf16 %v2937, %v2936
        %v3015 = vpack.c.bf16 %v2770, %v2768
        %v3016 = vpack.c.bf16 %v2840, %v2839
        %v3017 = vpack.c.bf16 %v2873, %v2872
        %v3018 = vpack.c.bf16 %v2906, %v2905
        %v3019 = vpack.c.bf16 %v2939, %v2938
        %v3020 = vpack.c.bf16 %v2774, %v2772
        %v3021 = vpack.c.bf16 %v2841, %v2841
        %v3022 = vpack.c.bf16 %v2874, %v2874
        %v3023 = vpack.c.bf16 %v2907, %v2907
        %v3024 = vpack.c.bf16 %v2940, %v2940
        %v3025 = vpack.c.bf16 %v2775, %v2775
        %v3026 = vld [vmem:[%s6] sm:$0xf]
        %v3027 = vld [vmem:[%s6 + $0x4] sm:$0xf]
        %v3028 = vld [vmem:[%s6 + $0x8] sm:$0xf]
        %v3029 = vld [vmem:[%s6 + $0xc] sm:$0xf]
        %v3030 = vld [vmem:[%s6 + $0x10] sm:$0xf]
        %v3031 = vld [vmem:[%s6 + $0x14] sm:$0xf]
        %v3032 = vld [vmem:[%s6 + $0x18] sm:$0xf]
        %v3033 = vld [vmem:[%s6 + $0x1c] sm:$0xf]
        %v3034 = vld [vmem:[%s6 + $0x20] sm:$0xf]
        %v3035 = vld [vmem:[%s6 + $0x24] sm:$0xf]
        %v3036 = vld [vmem:[%s6 + $0x28] sm:$0xf]
        %v3037 = vld [vmem:[%s6 + $0x2c] sm:$0xf]
        %v3038 = vld [vmem:[%s6 + $0x30] sm:$0xf]
        %v3039 = vld [vmem:[%s6 + $0x34] sm:$0xf]
        %v3040 = vld [vmem:[%s6 + $0x38] sm:$0xf]
        %v3041 = vld [vmem:[%s6 + $0x3c] sm:$0xf]
        %v3042 = vld [vmem:[%s6 + $0x40] sm:$0xf]
        %v3043 = vld [vmem:[%s6 + $0x44] sm:$0xf]
        %v3044 = vld [vmem:[%s6 + $0x48] sm:$0xf]
        %v3045 = vld [vmem:[%s6 + $0x4c] sm:$0xf]
        %v3046 = vld [vmem:[%s6 + $0x50] sm:$0xf]
        %v3047 = vld [vmem:[%s6 + $0x54] sm:$0xf]
        %v3048 = vld [vmem:[%s6 + $0x58] sm:$0xf]
        %v3049 = vld [vmem:[%s6 + $0x5c] sm:$0xf]
        %v3050 = vld [vmem:[%s6 + $0x60] sm:$0xf]
        %v3051 = vld [vmem:[%s6 + $0x64] sm:$0xf]
        %v3052 = vld [vmem:[%s6 + $0x68] sm:$0xf]
        %v3053 = vld [vmem:[%s6 + $0x6c] sm:$0xf]
        %v3054 = vld [vmem:[%s6 + $0x70] sm:$0xf]
        %v3055 = vld [vmem:[%s6 + $0x74] sm:$0xf]
        %v3056 = vld [vmem:[%s6 + $0x78] sm:$0xf]
        %v3057 = vld [vmem:[%s6 + $0x7c] sm:$0xf]
        %v3058 = vld [vmem:[%s6 + $0x80] sm:$0xf]
        %v3059 = vld [vmem:[%s6 + $0x84] sm:$0xf]
        %v3060 = vld [vmem:[%s6 + $0x88] sm:$0xf]
        %v3061 = vld [vmem:[%s6 + $0x8c] sm:$0xf]
        %v3062 = vld [vmem:[%s6 + $0x90] sm:$0xf]
        %v3063 = vld [vmem:[%s6 + $0x94] sm:$0xf]
        %v3064 = vld [vmem:[%s6 + $0x98] sm:$0xf]
        %v3065 = vld [vmem:[%s6 + $0x9c] sm:$0xf]
        %v3066 = vld [vmem:[%s6 + $0xa0] sm:$0xf]
        %v3067 = vld [vmem:[%s6 + $0xa4] sm:$0xf]
        %v3068 = vld [vmem:[%s6 + $0xa8] sm:$0xf]
        %v3069 = vld [vmem:[%s6 + $0xac] sm:$0xf]
        %v3070 = vld [vmem:[%s6 + $0xb0] sm:$0xf]
        %v3071 = vld [vmem:[%s6 + $0xb4] sm:$0xf]
        %v3072 = vld [vmem:[%s6 + $0xb8] sm:$0xf]
        %v3073 = vld [vmem:[%s6 + $0xbc] sm:$0xf]
        %v3074 = vld [vmem:[%s6 + $0xc0] sm:$0xf]
        %v3075 = vld [vmem:[%s6 + $0xc4] sm:$0xf]
        %v3076 = vld [vmem:[%s6 + $0xc8] sm:$0xf]
        %v3077 = vld [vmem:[%s6 + $0xcc] sm:$0xf]
        %v3078 = vld [vmem:[%s6 + $0xd0] sm:$0xf]
        %v3079 = vld [vmem:[%s6 + $0xd4] sm:$0xf]
        %v3080 = vld [vmem:[%s6 + $0xd8] sm:$0xf]
        %v3081 = vld [vmem:[%s6 + $0xdc] sm:$0xf]
        %v3082 = vld [vmem:[%s6 + $0xe0] sm:$0xf]
        %v3083 = vld [vmem:[%s6 + $0xe4] sm:$0xf]
        %v3084 = vld [vmem:[%s6 + $0xe8] sm:$0xf]
        %v3085 = vld [vmem:[%s6 + $0xec] sm:$0xf]
        %v3086 = vld [vmem:[%s6 + $0xf0] sm:$0xf]
        %v3087 = vld [vmem:[%s6 + $0xf4] sm:$0xf]
        %v3088 = vld [vmem:[%s6 + $0xf8] sm:$0xf]
        %v3089 = vld [vmem:[%s6 + $0xfc] sm:$0xf]
        %v3090 = vld [vmem:[%s6 + $0x100] sm:$0xf]
        %v3091 = vld [vmem:[%s6 + $0x104] sm:$0xf]
        %v3092 = vld [vmem:[%s6 + $0x108] sm:$0xf]
        %v3093 = vld [vmem:[%s6 + $0x10c] sm:$0xf]
        %v3094 = vld [vmem:[%s6 + $0x110] sm:$0xf]
        %v3095 = vld [vmem:[%s6 + $0x114] sm:$0xf]
        %v3096 = vld [vmem:[%s6 + $0x118] sm:$0xf]
        %v3097 = vld [vmem:[%s6 + $0x11c] sm:$0xf]
        %v3098 = vld [vmem:[%s7] sm:$0x1]
        %v3100 = vlaneseq
        %v3101 = vshrl.u32 %v3100, 7
        %v3102 = vsub.s32 0, %v3101
        %v3103 = vrot.slane %v3098, %v3102
        %vm3105 = vsmask.f32 4352
        %v3107 = vshrl.u32 %v2941, 16
        %v3109 = vrot.slane %v3107, 3
        %v3110 = vshll.u32 %v2941, 16
        %v3112 = vrot.slane %v3110, 4
        %v3113 = vor.u32 %v3109, %v3112
        %v3115 = vshrl.u32 %v2946, 16
        %v3117 = vrot.slane %v3115, 3
        %v3118 = vshll.u32 %v2946, 16
        %v3120 = vrot.slane %v3118, 4
        %v3121 = vor.u32 %v3117, %v3120
        %v3122 = vsel %vm3105, %v3113, %v3121
        %v3124 = vshrl.u32 %v2942, 16
        %v3126 = vrot.slane %v3124, 3
        %v3127 = vshll.u32 %v2942, 16
        %v3129 = vrot.slane %v3127, 4
        %v3130 = vor.u32 %v3126, %v3129
        %v3132 = vshrl.u32 %v2947, 16
        %v3134 = vrot.slane %v3132, 3
        %v3135 = vshll.u32 %v2947, 16
        %v3137 = vrot.slane %v3135, 4
        %v3138 = vor.u32 %v3134, %v3137
        %v3139 = vsel %vm3105, %v3130, %v3138
        %v3141 = vshrl.u32 %v2943, 16
        %v3143 = vrot.slane %v3141, 3
        %v3144 = vshll.u32 %v2943, 16
        %v3146 = vrot.slane %v3144, 4
        %v3147 = vor.u32 %v3143, %v3146
        %v3149 = vshrl.u32 %v2948, 16
        %v3151 = vrot.slane %v3149, 3
        %v3152 = vshll.u32 %v2948, 16
        %v3154 = vrot.slane %v3152, 4
        %v3155 = vor.u32 %v3151, %v3154
        %v3156 = vsel %vm3105, %v3147, %v3155
        %v3158 = vshrl.u32 %v2944, 16
        %v3160 = vrot.slane %v3158, 3
        %v3161 = vshll.u32 %v2944, 16
        %v3163 = vrot.slane %v3161, 4
        %v3164 = vor.u32 %v3160, %v3163
        %v3166 = vshrl.u32 %v2949, 16
        %v3168 = vrot.slane %v3166, 3
        %v3169 = vshll.u32 %v2949, 16
        %v3171 = vrot.slane %v3169, 4
        %v3172 = vor.u32 %v3168, %v3171
        %v3173 = vsel %vm3105, %v3164, %v3172
        %v3175 = vshrl.u32 %v2945, 16
        %v3177 = vrot.slane %v3175, 3
        %v3178 = vshll.u32 %v2945, 16
        %v3180 = vrot.slane %v3178, 4
        %v3181 = vor.u32 %v3177, %v3180
        %v3183 = vshrl.u32 %v2950, 16
        %v3185 = vrot.slane %v3183, 3
        %v3186 = vshll.u32 %v2950, 16
        %v3188 = vrot.slane %v3186, 4
        %v3189 = vor.u32 %v3185, %v3188
        %v3190 = vsel %vm3105, %v3181, %v3189
        %v3192 = vshrl.u32 %v2951, 16
        %v3194 = vrot.slane %v3192, 3
        %v3195 = vshll.u32 %v2951, 16
        %v3197 = vrot.slane %v3195, 4
        %v3198 = vor.u32 %v3194, %v3197
        %v3199 = vsel %vm3105, %v3121, %v3198
        %v3201 = vshrl.u32 %v2952, 16
        %v3203 = vrot.slane %v3201, 3
        %v3204 = vshll.u32 %v2952, 16
        %v3206 = vrot.slane %v3204, 4
        %v3207 = vor.u32 %v3203, %v3206
        %v3208 = vsel %vm3105, %v3138, %v3207
        %v3210 = vshrl.u32 %v2953, 16
        %v3212 = vrot.slane %v3210, 3
        %v3213 = vshll.u32 %v2953, 16
        %v3215 = vrot.slane %v3213, 4
        %v3216 = vor.u32 %v3212, %v3215
        %v3217 = vsel %vm3105, %v3155, %v3216
        %v3219 = vshrl.u32 %v2954, 16
        %v3221 = vrot.slane %v3219, 3
        %v3222 = vshll.u32 %v2954, 16
        %v3224 = vrot.slane %v3222, 4
        %v3225 = vor.u32 %v3221, %v3224
        %v3226 = vsel %vm3105, %v3172, %v3225
        %v3228 = vshrl.u32 %v2955, 16
        %v3230 = vrot.slane %v3228, 3
        %v3231 = vshll.u32 %v2955, 16
        %v3233 = vrot.slane %v3231, 4
        %v3234 = vor.u32 %v3230, %v3233
        %v3235 = vsel %vm3105, %v3189, %v3234
        %v3237 = vshrl.u32 %v2956, 16
        %v3239 = vrot.slane %v3237, 3
        %v3240 = vshll.u32 %v2956, 16
        %v3242 = vrot.slane %v3240, 4
        %v3243 = vor.u32 %v3239, %v3242
        %v3244 = vsel %vm3105, %v3198, %v3243
        %v3246 = vshrl.u32 %v2957, 16
        %v3248 = vrot.slane %v3246, 3
        %v3249 = vshll.u32 %v2957, 16
        %v3251 = vrot.slane %v3249, 4
        %v3252 = vor.u32 %v3248, %v3251
        %v3253 = vsel %vm3105, %v3207, %v3252
        %v3255 = vshrl.u32 %v2958, 16
        %v3257 = vrot.slane %v3255, 3
        %v3258 = vshll.u32 %v2958, 16
        %v3260 = vrot.slane %v3258, 4
        %v3261 = vor.u32 %v3257, %v3260
        %v3262 = vsel %vm3105, %v3216, %v3261
        %v3264 = vshrl.u32 %v2959, 16
        %v3266 = vrot.slane %v3264, 3
        %v3267 = vshll.u32 %v2959, 16
        %v3269 = vrot.slane %v3267, 4
        %v3270 = vor.u32 %v3266, %v3269
        %v3271 = vsel %vm3105, %v3225, %v3270
        %v3273 = vshrl.u32 %v2960, 16
        %v3275 = vrot.slane %v3273, 3
        %v3276 = vshll.u32 %v2960, 16
        %v3278 = vrot.slane %v3276, 4
        %v3279 = vor.u32 %v3275, %v3278
        %v3280 = vsel %vm3105, %v3234, %v3279
        %v3282 = vshrl.u32 %v2961, 16
        %v3284 = vrot.slane %v3282, 3
        %v3285 = vshll.u32 %v2961, 16
        %v3287 = vrot.slane %v3285, 4
        %v3288 = vor.u32 %v3284, %v3287
        %v3289 = vsel %vm3105, %v3243, %v3288
        %v3291 = vshrl.u32 %v2962, 16
        %v3293 = vrot.slane %v3291, 3
        %v3294 = vshll.u32 %v2962, 16
        %v3296 = vrot.slane %v3294, 4
        %v3297 = vor.u32 %v3293, %v3296
        %v3298 = vsel %vm3105, %v3252, %v3297
        %v3300 = vshrl.u32 %v2963, 16
        %v3302 = vrot.slane %v3300, 3
        %v3303 = vshll.u32 %v2963, 16
        %v3305 = vrot.slane %v3303, 4
        %v3306 = vor.u32 %v3302, %v3305
        %v3307 = vsel %vm3105, %v3261, %v3306
        %v3309 = vshrl.u32 %v2964, 16
        %v3311 = vrot.slane %v3309, 3
        %v3312 = vshll.u32 %v2964, 16
        %v3314 = vrot.slane %v3312, 4
        %v3315 = vor.u32 %v3311, %v3314
        %v3316 = vsel %vm3105, %v3270, %v3315
        %v3318 = vshrl.u32 %v2965, 16
        %v3320 = vrot.slane %v3318, 3
        %v3321 = vshll.u32 %v2965, 16
        %v3323 = vrot.slane %v3321, 4
        %v3324 = vor.u32 %v3320, %v3323
        %v3325 = vsel %vm3105, %v3279, %v3324
        %v3327 = vshrl.u32 %v2966, 16
        %v3329 = vrot.slane %v3327, 3
        %v3330 = vshll.u32 %v2966, 16
        %v3332 = vrot.slane %v3330, 4
        %v3333 = vor.u32 %v3329, %v3332
        %v3334 = vsel %vm3105, %v3288, %v3333
        %v3336 = vshrl.u32 %v2967, 16
        %v3338 = vrot.slane %v3336, 3
        %v3339 = vshll.u32 %v2967, 16
        %v3341 = vrot.slane %v3339, 4
        %v3342 = vor.u32 %v3338, %v3341
        %v3343 = vsel %vm3105, %v3297, %v3342
        %v3345 = vshrl.u32 %v2968, 16
        %v3347 = vrot.slane %v3345, 3
        %v3348 = vshll.u32 %v2968, 16
        %v3350 = vrot.slane %v3348, 4
        %v3351 = vor.u32 %v3347, %v3350
        %v3352 = vsel %vm3105, %v3306, %v3351
        %v3354 = vshrl.u32 %v2969, 16
        %v3356 = vrot.slane %v3354, 3
        %v3357 = vshll.u32 %v2969, 16
        %v3359 = vrot.slane %v3357, 4
        %v3360 = vor.u32 %v3356, %v3359
        %v3361 = vsel %vm3105, %v3315, %v3360
        %v3363 = vshrl.u32 %v2970, 16
        %v3365 = vrot.slane %v3363, 3
        %v3366 = vshll.u32 %v2970, 16
        %v3368 = vrot.slane %v3366, 4
        %v3369 = vor.u32 %v3365, %v3368
        %v3370 = vsel %vm3105, %v3324, %v3369
        %v3372 = vshrl.u32 %v2971, 16
        %v3374 = vrot.slane %v3372, 3
        %v3375 = vshll.u32 %v2971, 16
        %v3377 = vrot.slane %v3375, 4
        %v3378 = vor.u32 %v3374, %v3377
        %v3379 = vsel %vm3105, %v3333, %v3378
        %v3381 = vshrl.u32 %v2972, 16
        %v3383 = vrot.slane %v3381, 3
        %v3384 = vshll.u32 %v2972, 16
        %v3386 = vrot.slane %v3384, 4
        %v3387 = vor.u32 %v3383, %v3386
        %v3388 = vsel %vm3105, %v3342, %v3387
        %v3390 = vshrl.u32 %v2973, 16
        %v3392 = vrot.slane %v3390, 3
        %v3393 = vshll.u32 %v2973, 16
        %v3395 = vrot.slane %v3393, 4
        %v3396 = vor.u32 %v3392, %v3395
        %v3397 = vsel %vm3105, %v3351, %v3396
        %v3399 = vshrl.u32 %v2974, 16
        %v3401 = vrot.slane %v3399, 3
        %v3402 = vshll.u32 %v2974, 16
        %v3404 = vrot.slane %v3402, 4
        %v3405 = vor.u32 %v3401, %v3404
        %v3406 = vsel %vm3105, %v3360, %v3405
        %v3408 = vshrl.u32 %v2975, 16
        %v3410 = vrot.slane %v3408, 3
        %v3411 = vshll.u32 %v2975, 16
        %v3413 = vrot.slane %v3411, 4
        %v3414 = vor.u32 %v3410, %v3413
        %v3415 = vsel %vm3105, %v3369, %v3414
        %v3417 = vshrl.u32 %v2976, 16
        %v3419 = vrot.slane %v3417, 3
        %v3420 = vshll.u32 %v2976, 16
        %v3422 = vrot.slane %v3420, 4
        %v3423 = vor.u32 %v3419, %v3422
        %v3424 = vsel %vm3105, %v3378, %v3423
        %v3426 = vshrl.u32 %v2977, 16
        %v3428 = vrot.slane %v3426, 3
        %v3429 = vshll.u32 %v2977, 16
        %v3431 = vrot.slane %v3429, 4
        %v3432 = vor.u32 %v3428, %v3431
        %v3433 = vsel %vm3105, %v3387, %v3432
        %v3435 = vshrl.u32 %v2978, 16
        %v3437 = vrot.slane %v3435, 3
        %v3438 = vshll.u32 %v2978, 16
        %v3440 = vrot.slane %v3438, 4
        %v3441 = vor.u32 %v3437, %v3440
        %v3442 = vsel %vm3105, %v3396, %v3441
        %v3444 = vshrl.u32 %v2979, 16
        %v3446 = vrot.slane %v3444, 3
        %v3447 = vshll.u32 %v2979, 16
        %v3449 = vrot.slane %v3447, 4
        %v3450 = vor.u32 %v3446, %v3449
        %v3451 = vsel %vm3105, %v3405, %v3450
        %v3453 = vshrl.u32 %v2980, 16
        %v3455 = vrot.slane %v3453, 3
        %v3456 = vshll.u32 %v2980, 16
        %v3458 = vrot.slane %v3456, 4
        %v3459 = vor.u32 %v3455, %v3458
        %v3460 = vsel %vm3105, %v3414, %v3459
        %v3462 = vshrl.u32 %v2981, 16
        %v3464 = vrot.slane %v3462, 3
        %v3465 = vshll.u32 %v2981, 16
        %v3467 = vrot.slane %v3465, 4
        %v3468 = vor.u32 %v3464, %v3467
        %v3469 = vsel %vm3105, %v3423, %v3468
        %v3471 = vshrl.u32 %v2982, 16
        %v3473 = vrot.slane %v3471, 3
        %v3474 = vshll.u32 %v2982, 16
        %v3476 = vrot.slane %v3474, 4
        %v3477 = vor.u32 %v3473, %v3476
        %v3478 = vsel %vm3105, %v3432, %v3477
        %v3480 = vshrl.u32 %v2983, 16
        %v3482 = vrot.slane %v3480, 3
        %v3483 = vshll.u32 %v2983, 16
        %v3485 = vrot.slane %v3483, 4
        %v3486 = vor.u32 %v3482, %v3485
        %v3487 = vsel %vm3105, %v3441, %v3486
        %v3489 = vshrl.u32 %v2984, 16
        %v3491 = vrot.slane %v3489, 3
        %v3492 = vshll.u32 %v2984, 16
        %v3494 = vrot.slane %v3492, 4
        %v3495 = vor.u32 %v3491, %v3494
        %v3496 = vsel %vm3105, %v3450, %v3495
        %v3498 = vshrl.u32 %v2985, 16
        %v3500 = vrot.slane %v3498, 3
        %v3501 = vshll.u32 %v2985, 16
        %v3503 = vrot.slane %v3501, 4
        %v3504 = vor.u32 %v3500, %v3503
        %v3505 = vsel %vm3105, %v3459, %v3504
        %v3507 = vshrl.u32 %v2986, 16
        %v3509 = vrot.slane %v3507, 3
        %v3510 = vshll.u32 %v2986, 16
        %v3512 = vrot.slane %v3510, 4
        %v3513 = vor.u32 %v3509, %v3512
        %v3514 = vsel %vm3105, %v3468, %v3513
        %v3516 = vshrl.u32 %v2987, 16
        %v3518 = vrot.slane %v3516, 3
        %v3519 = vshll.u32 %v2987, 16
        %v3521 = vrot.slane %v3519, 4
        %v3522 = vor.u32 %v3518, %v3521
        %v3523 = vsel %vm3105, %v3477, %v3522
        %v3525 = vshrl.u32 %v2988, 16
        %v3527 = vrot.slane %v3525, 3
        %v3528 = vshll.u32 %v2988, 16
        %v3530 = vrot.slane %v3528, 4
        %v3531 = vor.u32 %v3527, %v3530
        %v3532 = vsel %vm3105, %v3486, %v3531
        %v3534 = vshrl.u32 %v2989, 16
        %v3536 = vrot.slane %v3534, 3
        %v3537 = vshll.u32 %v2989, 16
        %v3539 = vrot.slane %v3537, 4
        %v3540 = vor.u32 %v3536, %v3539
        %v3541 = vsel %vm3105, %v3495, %v3540
        %v3543 = vshrl.u32 %v2990, 16
        %v3545 = vrot.slane %v3543, 3
        %v3546 = vshll.u32 %v2990, 16
        %v3548 = vrot.slane %v3546, 4
        %v3549 = vor.u32 %v3545, %v3548
        %v3550 = vsel %vm3105, %v3504, %v3549
        %v3552 = vshrl.u32 %v2991, 16
        %v3554 = vrot.slane %v3552, 3
        %v3555 = vshll.u32 %v2991, 16
        %v3557 = vrot.slane %v3555, 4
        %v3558 = vor.u32 %v3554, %v3557
        %v3559 = vsel %vm3105, %v3513, %v3558
        %v3561 = vshrl.u32 %v2992, 16
        %v3563 = vrot.slane %v3561, 3
        %v3564 = vshll.u32 %v2992, 16
        %v3566 = vrot.slane %v3564, 4
        %v3567 = vor.u32 %v3563, %v3566
        %v3568 = vsel %vm3105, %v3522, %v3567
        %v3570 = vshrl.u32 %v2993, 16
        %v3572 = vrot.slane %v3570, 3
        %v3573 = vshll.u32 %v2993, 16
        %v3575 = vrot.slane %v3573, 4
        %v3576 = vor.u32 %v3572, %v3575
        %v3577 = vsel %vm3105, %v3531, %v3576
        %v3579 = vshrl.u32 %v2994, 16
        %v3581 = vrot.slane %v3579, 3
        %v3582 = vshll.u32 %v2994, 16
        %v3584 = vrot.slane %v3582, 4
        %v3585 = vor.u32 %v3581, %v3584
        %v3586 = vsel %vm3105, %v3540, %v3585
        %v3588 = vshrl.u32 %v2995, 16
        %v3590 = vrot.slane %v3588, 3
        %v3591 = vshll.u32 %v2995, 16
        %v3593 = vrot.slane %v3591, 4
        %v3594 = vor.u32 %v3590, %v3593
        %v3595 = vsel %vm3105, %v3549, %v3594
        %v3597 = vshrl.u32 %v2996, 16
        %v3599 = vrot.slane %v3597, 3
        %v3600 = vshll.u32 %v2996, 16
        %v3602 = vrot.slane %v3600, 4
        %v3603 = vor.u32 %v3599, %v3602
        %v3604 = vsel %vm3105, %v3558, %v3603
        %v3606 = vshrl.u32 %v2997, 16
        %v3608 = vrot.slane %v3606, 3
        %v3609 = vshll.u32 %v2997, 16
        %v3611 = vrot.slane %v3609, 4
        %v3612 = vor.u32 %v3608, %v3611
        %v3613 = vsel %vm3105, %v3567, %v3612
        %v3615 = vshrl.u32 %v2998, 16
        %v3617 = vrot.slane %v3615, 3
        %v3618 = vshll.u32 %v2998, 16
        %v3620 = vrot.slane %v3618, 4
        %v3621 = vor.u32 %v3617, %v3620
        %v3622 = vsel %vm3105, %v3576, %v3621
        %v3624 = vshrl.u32 %v2999, 16
        %v3626 = vrot.slane %v3624, 3
        %v3627 = vshll.u32 %v2999, 16
        %v3629 = vrot.slane %v3627, 4
        %v3630 = vor.u32 %v3626, %v3629
        %v3631 = vsel %vm3105, %v3585, %v3630
        %v3633 = vshrl.u32 %v3000, 16
        %v3635 = vrot.slane %v3633, 3
        %v3636 = vshll.u32 %v3000, 16
        %v3638 = vrot.slane %v3636, 4
        %v3639 = vor.u32 %v3635, %v3638
        %v3640 = vsel %vm3105, %v3594, %v3639
        %v3642 = vshrl.u32 %v3001, 16
        %v3644 = vrot.slane %v3642, 3
        %v3645 = vshll.u32 %v3001, 16
        %v3647 = vrot.slane %v3645, 4
        %v3648 = vor.u32 %v3644, %v3647
        %v3649 = vsel %vm3105, %v3603, %v3648
        %v3651 = vshrl.u32 %v3002, 16
        %v3653 = vrot.slane %v3651, 3
        %v3654 = vshll.u32 %v3002, 16
        %v3656 = vrot.slane %v3654, 4
        %v3657 = vor.u32 %v3653, %v3656
        %v3658 = vsel %vm3105, %v3612, %v3657
        %v3660 = vshrl.u32 %v3003, 16
        %v3662 = vrot.slane %v3660, 3
        %v3663 = vshll.u32 %v3003, 16
        %v3665 = vrot.slane %v3663, 4
        %v3666 = vor.u32 %v3662, %v3665
        %v3667 = vsel %vm3105, %v3621, %v3666
        %v3669 = vshrl.u32 %v3004, 16
        %v3671 = vrot.slane %v3669, 3
        %v3672 = vshll.u32 %v3004, 16
        %v3674 = vrot.slane %v3672, 4
        %v3675 = vor.u32 %v3671, %v3674
        %v3676 = vsel %vm3105, %v3630, %v3675
        %v3678 = vshrl.u32 %v3005, 16
        %v3680 = vrot.slane %v3678, 3
        %v3681 = vshll.u32 %v3005, 16
        %v3683 = vrot.slane %v3681, 4
        %v3684 = vor.u32 %v3680, %v3683
        %v3685 = vsel %vm3105, %v3639, %v3684
        %v3687 = vshrl.u32 %v3006, 16
        %v3689 = vrot.slane %v3687, 3
        %v3690 = vshll.u32 %v3006, 16
        %v3692 = vrot.slane %v3690, 4
        %v3693 = vor.u32 %v3689, %v3692
        %v3694 = vsel %vm3105, %v3648, %v3693
        %v3696 = vshrl.u32 %v3007, 16
        %v3698 = vrot.slane %v3696, 3
        %v3699 = vshll.u32 %v3007, 16
        %v3701 = vrot.slane %v3699, 4
        %v3702 = vor.u32 %v3698, %v3701
        %v3703 = vsel %vm3105, %v3657, %v3702
        %v3705 = vshrl.u32 %v3008, 16
        %v3707 = vrot.slane %v3705, 3
        %v3708 = vshll.u32 %v3008, 16
        %v3710 = vrot.slane %v3708, 4
        %v3711 = vor.u32 %v3707, %v3710
        %v3712 = vsel %vm3105, %v3666, %v3711
        %v3714 = vshrl.u32 %v3009, 16
        %v3716 = vrot.slane %v3714, 3
        %v3717 = vshll.u32 %v3009, 16
        %v3719 = vrot.slane %v3717, 4
        %v3720 = vor.u32 %v3716, %v3719
        %v3721 = vsel %vm3105, %v3675, %v3720
        %v3723 = vshrl.u32 %v3010, 16
        %v3725 = vrot.slane %v3723, 3
        %v3726 = vshll.u32 %v3010, 16
        %v3728 = vrot.slane %v3726, 4
        %v3729 = vor.u32 %v3725, %v3728
        %v3730 = vsel %vm3105, %v3684, %v3729
        %v3732 = vshrl.u32 %v3011, 16
        %v3734 = vrot.slane %v3732, 3
        %v3735 = vshll.u32 %v3011, 16
        %v3737 = vrot.slane %v3735, 4
        %v3738 = vor.u32 %v3734, %v3737
        %v3739 = vsel %vm3105, %v3693, %v3738
        %v3741 = vshrl.u32 %v3012, 16
        %v3743 = vrot.slane %v3741, 3
        %v3744 = vshll.u32 %v3012, 16
        %v3746 = vrot.slane %v3744, 4
        %v3747 = vor.u32 %v3743, %v3746
        %v3748 = vsel %vm3105, %v3702, %v3747
        %v3750 = vshrl.u32 %v3013, 16
        %v3752 = vrot.slane %v3750, 3
        %v3753 = vshll.u32 %v3013, 16
        %v3755 = vrot.slane %v3753, 4
        %v3756 = vor.u32 %v3752, %v3755
        %v3757 = vsel %vm3105, %v3711, %v3756
        %v3759 = vshrl.u32 %v3014, 16
        %v3761 = vrot.slane %v3759, 3
        %v3762 = vshll.u32 %v3014, 16
        %v3764 = vrot.slane %v3762, 4
        %v3765 = vor.u32 %v3761, %v3764
        %v3766 = vsel %vm3105, %v3720, %v3765
        %v3768 = vshrl.u32 %v3015, 16
        %v3770 = vrot.slane %v3768, 3
        %v3771 = vshll.u32 %v3015, 16
        %v3773 = vrot.slane %v3771, 4
        %v3774 = vor.u32 %v3770, %v3773
        %v3775 = vsel %vm3105, %v3729, %v3774
        %v3777 = vshrl.u32 %v3016, 16
        %v3779 = vrot.slane %v3777, 3
        %v3780 = vshll.u32 %v3016, 16
        %v3782 = vrot.slane %v3780, 4
        %v3783 = vor.u32 %v3779, %v3782
        %v3784 = vsel %vm3105, %v3738, %v3783
        %v3786 = vshrl.u32 %v3017, 16
        %v3788 = vrot.slane %v3786, 3
        %v3789 = vshll.u32 %v3017, 16
        %v3791 = vrot.slane %v3789, 4
        %v3792 = vor.u32 %v3788, %v3791
        %v3793 = vsel %vm3105, %v3747, %v3792
        %v3795 = vshrl.u32 %v3018, 16
        %v3797 = vrot.slane %v3795, 3
        %v3798 = vshll.u32 %v3018, 16
        %v3800 = vrot.slane %v3798, 4
        %v3801 = vor.u32 %v3797, %v3800
        %v3802 = vsel %vm3105, %v3756, %v3801
        %v3804 = vshrl.u32 %v3019, 16
        %v3806 = vrot.slane %v3804, 3
        %v3807 = vshll.u32 %v3019, 16
        %v3809 = vrot.slane %v3807, 4
        %v3810 = vor.u32 %v3806, %v3809
        %v3811 = vsel %vm3105, %v3765, %v3810
        %v3813 = vshrl.u32 %v3020, 16
        %v3815 = vrot.slane %v3813, 3
        %v3816 = vshll.u32 %v3020, 16
        %v3818 = vrot.slane %v3816, 4
        %v3819 = vor.u32 %v3815, %v3818
        %v3820 = vsel %vm3105, %v3774, %v3819
        %v3822 = vshrl.u32 %v3021, 16
        %v3824 = vrot.slane %v3822, 3
        %v3825 = vshll.u32 %v3021, 16
        %v3827 = vrot.slane %v3825, 4
        %v3828 = vor.u32 %v3824, %v3827
        %v3829 = vsel %vm3105, %v3783, %v3828
        %v3831 = vshrl.u32 %v3022, 16
        %v3833 = vrot.slane %v3831, 3
        %v3834 = vshll.u32 %v3022, 16
        %v3836 = vrot.slane %v3834, 4
        %v3837 = vor.u32 %v3833, %v3836
        %v3838 = vsel %vm3105, %v3792, %v3837
        %v3840 = vshrl.u32 %v3023, 16
        %v3842 = vrot.slane %v3840, 3
        %v3843 = vshll.u32 %v3023, 16
        %v3845 = vrot.slane %v3843, 4
        %v3846 = vor.u32 %v3842, %v3845
        %v3847 = vsel %vm3105, %v3801, %v3846
        %v3849 = vshrl.u32 %v3024, 16
        %v3851 = vrot.slane %v3849, 3
        %v3852 = vshll.u32 %v3024, 16
        %v3854 = vrot.slane %v3852, 4
        %v3855 = vor.u32 %v3851, %v3854
        %v3856 = vsel %vm3105, %v3810, %v3855
        %v3858 = vshrl.u32 %v3025, 16
        %v3860 = vrot.slane %v3858, 3
        %v3861 = vshll.u32 %v3025, 16
        %v3863 = vrot.slane %v3861, 4
        %v3864 = vor.u32 %v3860, %v3863
        %v3865 = vsel %vm3105, %v3819, %v3864
        %v4002 = vunpack.c.l.b16 %v3026
        %v4003 = vunpack.c.l.b16 %v3027
        %v4004 = vunpack.c.l.b16 %v3028
        %v4005 = vunpack.c.l.b16 %v3029
        %v4006 = vunpack.c.l.b16 %v3030
        %v4007 = vunpack.c.l.b16 %v3031
        %v4008 = vunpack.c.l.b16 %v3032
        %v4009 = vunpack.c.l.b16 %v3033
        %v4010 = vunpack.c.l.b16 %v3034
        %v4011 = vunpack.c.l.b16 %v3035
        %v4012 = vunpack.c.l.b16 %v3036
        %v4013 = vunpack.c.l.b16 %v3037
        %v4014 = vunpack.c.l.b16 %v3038
        %v4015 = vunpack.c.l.b16 %v3039
        %v4016 = vunpack.c.l.b16 %v3040
        %v4017 = vunpack.c.l.b16 %v3041
        %v4018 = vunpack.c.l.b16 %v3042
        %v4019 = vunpack.c.l.b16 %v3043
        %v4020 = vunpack.c.l.b16 %v3044
        %v4021 = vunpack.c.l.b16 %v3045
        %v4022 = vunpack.c.l.b16 %v3046
        %v4023 = vunpack.c.l.b16 %v3047
        %v4024 = vunpack.c.l.b16 %v3048
        %v4025 = vunpack.c.l.b16 %v3049
        %v4026 = vunpack.c.l.b16 %v3050
        %v4027 = vunpack.c.l.b16 %v3051
        %v4028 = vunpack.c.l.b16 %v3052
        %v4029 = vunpack.c.l.b16 %v3053
        %v4030 = vunpack.c.l.b16 %v3054
        %v4031 = vunpack.c.l.b16 %v3055
        %v4032 = vunpack.c.l.b16 %v3056
        %v4033 = vunpack.c.l.b16 %v3057
        %v4034 = vunpack.c.l.b16 %v3058
        %v4035 = vunpack.c.l.b16 %v3059
        %v4036 = vunpack.c.l.b16 %v3060
        %v4037 = vunpack.c.l.b16 %v3061
        %v4038 = vunpack.c.l.b16 %v3062
        %v4039 = vunpack.c.l.b16 %v3063
        %v4040 = vunpack.c.l.b16 %v3064
        %v4041 = vunpack.c.l.b16 %v3065
        %v4042 = vunpack.c.l.b16 %v3066
        %v4043 = vunpack.c.l.b16 %v3067
        %v4044 = vunpack.c.l.b16 %v3068
        %v4045 = vunpack.c.l.b16 %v3069
        %v4046 = vunpack.c.l.b16 %v3070
        %v4047 = vunpack.c.l.b16 %v3071
        %v4048 = vunpack.c.l.b16 %v3072
        %v4049 = vunpack.c.l.b16 %v3073
        %v4050 = vunpack.c.l.b16 %v3074
        %v4051 = vunpack.c.l.b16 %v3075
        %v4052 = vunpack.c.l.b16 %v3076
        %v4053 = vunpack.c.l.b16 %v3077
        %v4054 = vunpack.c.l.b16 %v3078
        %v4055 = vunpack.c.l.b16 %v3079
        %v4056 = vunpack.c.l.b16 %v3080
        %v4057 = vunpack.c.l.b16 %v3081
        %v4058 = vunpack.c.l.b16 %v3082
        %v4059 = vunpack.c.l.b16 %v3083
        %v4060 = vunpack.c.l.b16 %v3084
        %v4061 = vunpack.c.l.b16 %v3085
        %v4062 = vunpack.c.l.b16 %v3086
        %v4063 = vunpack.c.l.b16 %v3087
        %v4064 = vunpack.c.l.b16 %v3088
        %v4065 = vunpack.c.l.b16 %v3089
        %v4066 = vunpack.c.l.b16 %v3090
        %v4067 = vunpack.c.l.b16 %v3091
        %v4068 = vunpack.c.l.b16 %v3092
        %v4069 = vunpack.c.l.b16 %v3093
        %v4070 = vunpack.c.l.b16 %v3094
        %v4071 = vunpack.c.l.b16 %v3095
        %v4072 = vunpack.c.l.b16 %v3096
        %v4073 = vunpack.c.l.b16 %v3097
        %v4074 = vpack.c.b16 %v4003, %v4002
        %v4075 = vpack.c.b16 %v4005, %v4004
        %v4076 = vpack.c.b16 %v4007, %v4006
        %v4077 = vpack.c.b16 %v4009, %v4008
        %v4078 = vpack.c.b16 %v4011, %v4010
        %v4079 = vpack.c.b16 %v4013, %v4012
        %v4080 = vpack.c.b16 %v4015, %v4014
        %v4081 = vpack.c.b16 %v4017, %v4016
        %v4082 = vpack.c.b16 %v4019, %v4018
        %v4083 = vpack.c.b16 %v4021, %v4020
        %v4084 = vpack.c.b16 %v4023, %v4022
        %v4085 = vpack.c.b16 %v4025, %v4024
        %v4086 = vpack.c.b16 %v4027, %v4026
        %v4087 = vpack.c.b16 %v4029, %v4028
        %v4088 = vpack.c.b16 %v4031, %v4030
        %v4089 = vpack.c.b16 %v4033, %v4032
        %v4090 = vpack.c.b16 %v4035, %v4034
        %v4091 = vpack.c.b16 %v4037, %v4036
        %v4092 = vpack.c.b16 %v4039, %v4038
        %v4093 = vpack.c.b16 %v4041, %v4040
        %v4094 = vpack.c.b16 %v4043, %v4042
        %v4095 = vpack.c.b16 %v4045, %v4044
        %v4096 = vpack.c.b16 %v4047, %v4046
        %v4097 = vpack.c.b16 %v4049, %v4048
        %v4098 = vpack.c.b16 %v4051, %v4050
        %v4099 = vpack.c.b16 %v4053, %v4052
        %v4100 = vpack.c.b16 %v4055, %v4054
        %v4101 = vpack.c.b16 %v4057, %v4056
        %v4102 = vpack.c.b16 %v4059, %v4058
        %v4103 = vpack.c.b16 %v4061, %v4060
        %v4104 = vpack.c.b16 %v4063, %v4062
        %v4105 = vpack.c.b16 %v4065, %v4064
        %v4106 = vpack.c.b16 %v4067, %v4066
        %v4107 = vpack.c.b16 %v4069, %v4068
        %v4108 = vpack.c.b16 %v4071, %v4070
        %v4109 = vpack.c.b16 %v4073, %v4072
        %v4147 = vsel %vm1199, %v3190, 0
        %v4150 = vsel %vm1199, %v3235, 0
        %v4153 = vsel %vm1199, %v3280, 0
        %v4156 = vsel %vm1199, %v3325, 0
        %v4159 = vsel %vm1199, %v3370, 0
        %v4162 = vsel %vm1199, %v3415, 0
        %v4165 = vsel %vm1199, %v3460, 0
        %v4168 = vsel %vm1199, %v3505, 0
        %v4171 = vsel %vm1199, %v3550, 0
        %v4174 = vsel %vm1199, %v3595, 0
        %v4177 = vsel %vm1199, %v3640, 0
        %v4180 = vsel %vm1199, %v3685, 0
        %v4183 = vsel %vm1199, %v3730, 0
        %v4186 = vsel %vm1199, %v3775, 0
        %v4189 = vsel %vm1199, %v3820, 0
        %v4192 = vsel %vm1199, %v3865, 0
        %4194 = vmatprep.subr.bf16.mxu0 0
        %4195 = vmatpush1.bf16.msra.mxu0 %v4081
        %4196 = vmatprep.subr.bf16.mxu0 0
        %4197 = vmatpush1.bf16.msra.mxu0 %v4080
        %4198 = vmatprep.subr.bf16.mxu0 0
        %4199 = vmatpush1.bf16.msra.mxu0 %v4079
        %4200 = vmatprep.subr.bf16.mxu0 0
        %4201 = vmatpush1.bf16.msra.mxu0 %v4078
        %4202 = vmatprep.subr.bf16.mxu0 0
        %4203 = vmatpush1.bf16.msra.mxu0 %v4077
        %4204 = vmatprep.subr.bf16.mxu0 0
        %4205 = vmatpush1.bf16.msra.mxu0 %v4076
        %4206 = vmatprep.subr.bf16.mxu0 0
        %4207 = vmatpush1.bf16.msra.mxu0 %v4075
        %4208 = vmatprep.subr.bf16.mxu0 0
        %4209 = vmatpush1.bf16.msra.mxu0 %v4074
        %4210 = vmatprep.subr.bf16.mxu0 0
        %4211 = vmatpush2.bf16.msra.mxu0 %v4089
        %4212 = vmatprep.subr.bf16.mxu0 0
        %4213 = vmatpush2.bf16.msra.mxu0 %v4088
        %4214 = vmatprep.subr.bf16.mxu0 0
        %4215 = vmatpush2.bf16.msra.mxu0 %v4087
        %4216 = vmatprep.subr.bf16.mxu0 0
        %4217 = vmatpush2.bf16.msra.mxu0 %v4086
        %4218 = vmatprep.subr.bf16.mxu0 0
        %4219 = vmatpush2.bf16.msra.mxu0 %v4085
        %4220 = vmatprep.subr.bf16.mxu0 0
        %4221 = vmatpush2.bf16.msra.mxu0 %v4084
        %4222 = vmatprep.subr.bf16.mxu0 0
        %4223 = vmatpush2.bf16.msra.mxu0 %v4083
        %4224 = vmatprep.subr.bf16.mxu0 0
        %4225 = vmatpush2.bf16.msra.mxu0 %v4082
        %4226 = vmatprep.mubr.bf16.mxu0 %v3139
        %4227 = vmatmul.mubr.bf16.gmra.mxu0 %v3122
        %v4228 = vpop.f32.mrf.mxu0
        %v4229 = vadd.f32 %v3103, %v4228
        %v4230 = vpop.f32.mrf.mxu0
        %v4231 = vpop.f32.mrf.mxu0
        %v4232 = vadd.f32 %v3103, %v4231
        %v4233 = vpop.f32.mrf.mxu0
        %4234 = vmatprep.mubr.bf16.mxu0 %v3208
        %4235 = vmatmul.mubr.bf16.gmra.mxu0 %v3199
        %v4236 = vpop.f32.mrf.mxu0
        %v4237 = vadd.f32 %v3103, %v4236
        %v4238 = vpop.f32.mrf.mxu0
        %v4239 = vpop.f32.mrf.mxu0
        %v4240 = vadd.f32 %v3103, %v4239
        %v4241 = vpop.f32.mrf.mxu0
        %4242 = vmatprep.mubr.bf16.mxu0 %v3253
        %4243 = vmatmul.mubr.bf16.gmra.mxu0 %v3244
        %v4244 = vpop.f32.mrf.mxu0
        %v4245 = vadd.f32 %v3103, %v4244
        %v4246 = vpop.f32.mrf.mxu0
        %v4247 = vpop.f32.mrf.mxu0
        %v4248 = vadd.f32 %v3103, %v4247
        %v4249 = vpop.f32.mrf.mxu0
        %4250 = vmatprep.mubr.bf16.mxu0 %v3298
        %4251 = vmatmul.mubr.bf16.gmra.mxu0 %v3289
        %v4252 = vpop.f32.mrf.mxu0
        %v4253 = vadd.f32 %v3103, %v4252
        %v4254 = vpop.f32.mrf.mxu0
        %v4255 = vpop.f32.mrf.mxu0
        %v4256 = vadd.f32 %v3103, %v4255
        %v4257 = vpop.f32.mrf.mxu0
        %4258 = vmatprep.mubr.bf16.mxu0 %v3343
        %4259 = vmatmul.mubr.bf16.gmra.mxu0 %v3334
        %v4260 = vpop.f32.mrf.mxu0
        %v4261 = vadd.f32 %v3103, %v4260
        %v4262 = vpop.f32.mrf.mxu0
        %v4263 = vpop.f32.mrf.mxu0
        %v4264 = vadd.f32 %v3103, %v4263
        %v4265 = vpop.f32.mrf.mxu0
        %4266 = vmatprep.mubr.bf16.mxu0 %v3388
        %4267 = vmatmul.mubr.bf16.gmra.mxu0 %v3379
        %v4268 = vpop.f32.mrf.mxu0
        %v4269 = vadd.f32 %v3103, %v4268
        %v4270 = vpop.f32.mrf.mxu0
        %v4271 = vpop.f32.mrf.mxu0
        %v4272 = vadd.f32 %v3103, %v4271
        %v4273 = vpop.f32.mrf.mxu0
        %4274 = vmatprep.mubr.bf16.mxu0 %v3433
        %4275 = vmatmul.mubr.bf16.gmra.mxu0 %v3424
        %v4276 = vpop.f32.mrf.mxu0
        %v4277 = vadd.f32 %v3103, %v4276
        %v4278 = vpop.f32.mrf.mxu0
        %v4279 = vpop.f32.mrf.mxu0
        %v4280 = vadd.f32 %v3103, %v4279
        %v4281 = vpop.f32.mrf.mxu0
        %4282 = vmatprep.mubr.bf16.mxu0 %v3478
        %4283 = vmatmul.mubr.bf16.gmra.mxu0 %v3469
        %v4284 = vpop.f32.mrf.mxu0
        %v4285 = vadd.f32 %v3103, %v4284
        %v4286 = vpop.f32.mrf.mxu0
        %v4287 = vpop.f32.mrf.mxu0
        %v4288 = vadd.f32 %v3103, %v4287
        %v4289 = vpop.f32.mrf.mxu0
        %4290 = vmatprep.mubr.bf16.mxu0 %v3523
        %4291 = vmatmul.mubr.bf16.gmra.mxu0 %v3514
        %v4292 = vpop.f32.mrf.mxu0
        %v4293 = vadd.f32 %v3103, %v4292
        %v4294 = vpop.f32.mrf.mxu0
        %v4295 = vpop.f32.mrf.mxu0
        %v4296 = vadd.f32 %v3103, %v4295
        %v4297 = vpop.f32.mrf.mxu0
        %4298 = vmatprep.mubr.bf16.mxu0 %v3568
        %4299 = vmatmul.mubr.bf16.gmra.mxu0 %v3559
        %v4300 = vpop.f32.mrf.mxu0
        %v4301 = vadd.f32 %v3103, %v4300
        %v4302 = vpop.f32.mrf.mxu0
        %v4303 = vpop.f32.mrf.mxu0
        %v4304 = vadd.f32 %v3103, %v4303
        %v4305 = vpop.f32.mrf.mxu0
        %4306 = vmatprep.mubr.bf16.mxu0 %v3613
        %4307 = vmatmul.mubr.bf16.gmra.mxu0 %v3604
        %v4308 = vpop.f32.mrf.mxu0
        %v4309 = vadd.f32 %v3103, %v4308
        %v4310 = vpop.f32.mrf.mxu0
        %v4311 = vpop.f32.mrf.mxu0
        %v4312 = vadd.f32 %v3103, %v4311
        %v4313 = vpop.f32.mrf.mxu0
        %4314 = vmatprep.mubr.bf16.mxu0 %v3658
        %4315 = vmatmul.mubr.bf16.gmra.mxu0 %v3649
        %v4316 = vpop.f32.mrf.mxu0
        %v4317 = vadd.f32 %v3103, %v4316
        %v4318 = vpop.f32.mrf.mxu0
        %v4319 = vpop.f32.mrf.mxu0
        %v4320 = vadd.f32 %v3103, %v4319
        %v4321 = vpop.f32.mrf.mxu0
        %4322 = vmatprep.mubr.bf16.mxu0 %v3703
        %4323 = vmatmul.mubr.bf16.gmra.mxu0 %v3694
        %v4324 = vpop.f32.mrf.mxu0
        %v4325 = vadd.f32 %v3103, %v4324
        %v4326 = vpop.f32.mrf.mxu0
        %v4327 = vpop.f32.mrf.mxu0
        %v4328 = vadd.f32 %v3103, %v4327
        %v4329 = vpop.f32.mrf.mxu0
        %4330 = vmatprep.mubr.bf16.mxu0 %v3748
        %4331 = vmatmul.mubr.bf16.gmra.mxu0 %v3739
        %v4332 = vpop.f32.mrf.mxu0
        %v4333 = vadd.f32 %v3103, %v4332
        %v4334 = vpop.f32.mrf.mxu0
        %v4335 = vpop.f32.mrf.mxu0
        %v4336 = vadd.f32 %v3103, %v4335
        %v4337 = vpop.f32.mrf.mxu0
        %4338 = vmatprep.mubr.bf16.mxu0 %v3793
        %4339 = vmatmul.mubr.bf16.gmra.mxu0 %v3784
        %v4340 = vpop.f32.mrf.mxu0
        %v4341 = vadd.f32 %v3103, %v4340
        %v4342 = vpop.f32.mrf.mxu0
        %v4343 = vpop.f32.mrf.mxu0
        %v4344 = vadd.f32 %v3103, %v4343
        %v4345 = vpop.f32.mrf.mxu0
        %4346 = vmatprep.mubr.bf16.mxu0 %v3838
        %4347 = vmatmul.mubr.bf16.gmra.mxu0 %v3829
        %v4348 = vpop.f32.mrf.mxu0
        %v4349 = vadd.f32 %v3103, %v4348
        %v4350 = vpop.f32.mrf.mxu0
        %v4351 = vpop.f32.mrf.mxu0
        %v4352 = vadd.f32 %v3103, %v4351
        %v4353 = vpop.f32.mrf.mxu0
        %4354 = vdwg.mxu0
        %4355 = vmatprep.subr.bf16.mxu0 0
        %4356 = vmatpush1.bf16.msra.mxu0 %v4097
        %4357 = vmatprep.subr.bf16.mxu0 0
        %4358 = vmatpush1.bf16.msra.mxu0 %v4096
        %4359 = vmatprep.subr.bf16.mxu0 0
        %4360 = vmatpush1.bf16.msra.mxu0 %v4095
        %4361 = vmatprep.subr.bf16.mxu0 0
        %4362 = vmatpush1.bf16.msra.mxu0 %v4094
        %4363 = vmatprep.subr.bf16.mxu0 0
        %4364 = vmatpush1.bf16.msra.mxu0 %v4093
        %4365 = vmatprep.subr.bf16.mxu0 0
        %4366 = vmatpush1.bf16.msra.mxu0 %v4092
        %4367 = vmatprep.subr.bf16.mxu0 0
        %4368 = vmatpush1.bf16.msra.mxu0 %v4091
        %4369 = vmatprep.subr.bf16.mxu0 0
        %4370 = vmatpush1.bf16.msra.mxu0 %v4090
        %4371 = vmatprep.subr.bf16.mxu0 0
        %4372 = vmatpush2.bf16.msra.mxu0 %v4105
        %4373 = vmatprep.subr.bf16.mxu0 0
        %4374 = vmatpush2.bf16.msra.mxu0 %v4104
        %4375 = vmatprep.subr.bf16.mxu0 0
        %4376 = vmatpush2.bf16.msra.mxu0 %v4103
        %4377 = vmatprep.subr.bf16.mxu0 0
        %4378 = vmatpush2.bf16.msra.mxu0 %v4102
        %4379 = vmatprep.subr.bf16.mxu0 0
        %4380 = vmatpush2.bf16.msra.mxu0 %v4101
        %4381 = vmatprep.subr.bf16.mxu0 0
        %4382 = vmatpush2.bf16.msra.mxu0 %v4100
        %4383 = vmatprep.subr.bf16.mxu0 0
        %4384 = vmatpush2.bf16.msra.mxu0 %v4099
        %4385 = vmatprep.subr.bf16.mxu0 0
        %4386 = vmatpush2.bf16.msra.mxu0 %v4098
        %4387 = vmatprep.mubr.bf16.mxu0 %v3173
        %4388 = vmatmul.mubr.bf16.gmra.mxu0 %v3156
        %v4389 = vpop.f32.mrf.mxu0
        %v4390 = vadd.f32 %v4229, %v4389
        %v4391 = vpop.f32.mrf.mxu0
        %v4392 = vpop.f32.mrf.mxu0
        %v4393 = vadd.f32 %v4232, %v4392
        %v4394 = vpop.f32.mrf.mxu0
        %4395 = vmatprep.mubr.bf16.mxu0 %v3226
        %4396 = vmatmul.mubr.bf16.gmra.mxu0 %v3217
        %v4397 = vpop.f32.mrf.mxu0
        %v4398 = vadd.f32 %v4237, %v4397
        %v4399 = vpop.f32.mrf.mxu0
        %v4400 = vpop.f32.mrf.mxu0
        %v4401 = vadd.f32 %v4240, %v4400
        %v4402 = vpop.f32.mrf.mxu0
        %4403 = vmatprep.mubr.bf16.mxu0 %v3271
        %4404 = vmatmul.mubr.bf16.gmra.mxu0 %v3262
        %v4405 = vpop.f32.mrf.mxu0
        %v4406 = vadd.f32 %v4245, %v4405
        %v4407 = vpop.f32.mrf.mxu0
        %v4408 = vpop.f32.mrf.mxu0
        %v4409 = vadd.f32 %v4248, %v4408
        %v4410 = vpop.f32.mrf.mxu0
        %4411 = vmatprep.mubr.bf16.mxu0 %v3316
        %4412 = vmatmul.mubr.bf16.gmra.mxu0 %v3307
        %v4413 = vpop.f32.mrf.mxu0
        %v4414 = vadd.f32 %v4253, %v4413
        %v4415 = vpop.f32.mrf.mxu0
        %v4416 = vpop.f32.mrf.mxu0
        %v4417 = vadd.f32 %v4256, %v4416
        %v4418 = vpop.f32.mrf.mxu0
        %4419 = vmatprep.mubr.bf16.mxu0 %v3361
        %4420 = vmatmul.mubr.bf16.gmra.mxu0 %v3352
        %v4421 = vpop.f32.mrf.mxu0
        %v4422 = vadd.f32 %v4261, %v4421
        %v4423 = vpop.f32.mrf.mxu0
        %v4424 = vpop.f32.mrf.mxu0
        %v4425 = vadd.f32 %v4264, %v4424
        %v4426 = vpop.f32.mrf.mxu0
        %4427 = vmatprep.mubr.bf16.mxu0 %v3406
        %4428 = vmatmul.mubr.bf16.gmra.mxu0 %v3397
        %v4429 = vpop.f32.mrf.mxu0
        %v4430 = vadd.f32 %v4269, %v4429
        %v4431 = vpop.f32.mrf.mxu0
        %v4432 = vpop.f32.mrf.mxu0
        %v4433 = vadd.f32 %v4272, %v4432
        %v4434 = vpop.f32.mrf.mxu0
        %4435 = vmatprep.mubr.bf16.mxu0 %v3451
        %4436 = vmatmul.mubr.bf16.gmra.mxu0 %v3442
        %v4437 = vpop.f32.mrf.mxu0
        %v4438 = vadd.f32 %v4277, %v4437
        %v4439 = vpop.f32.mrf.mxu0
        %v4440 = vpop.f32.mrf.mxu0
        %v4441 = vadd.f32 %v4280, %v4440
        %v4442 = vpop.f32.mrf.mxu0
        %4443 = vmatprep.mubr.bf16.mxu0 %v3496
        %4444 = vmatmul.mubr.bf16.gmra.mxu0 %v3487
        %v4445 = vpop.f32.mrf.mxu0
        %v4446 = vadd.f32 %v4285, %v4445
        %v4447 = vpop.f32.mrf.mxu0
        %v4448 = vpop.f32.mrf.mxu0
        %v4449 = vadd.f32 %v4288, %v4448
        %v4450 = vpop.f32.mrf.mxu0
        %4451 = vmatprep.mubr.bf16.mxu0 %v3541
        %4452 = vmatmul.mubr.bf16.gmra.mxu0 %v3532
        %v4453 = vpop.f32.mrf.mxu0
        %v4454 = vadd.f32 %v4293, %v4453
        %v4455 = vpop.f32.mrf.mxu0
        %v4456 = vpop.f32.mrf.mxu0
        %v4457 = vadd.f32 %v4296, %v4456
        %v4458 = vpop.f32.mrf.mxu0
        %4459 = vmatprep.mubr.bf16.mxu0 %v3586
        %4460 = vmatmul.mubr.bf16.gmra.mxu0 %v3577
        %v4461 = vpop.f32.mrf.mxu0
        %v4462 = vadd.f32 %v4301, %v4461
        %v4463 = vpop.f32.mrf.mxu0
        %v4464 = vpop.f32.mrf.mxu0
        %v4465 = vadd.f32 %v4304, %v4464
        %v4466 = vpop.f32.mrf.mxu0
        %4467 = vmatprep.mubr.bf16.mxu0 %v3631
        %4468 = vmatmul.mubr.bf16.gmra.mxu0 %v3622
        %v4469 = vpop.f32.mrf.mxu0
        %v4470 = vadd.f32 %v4309, %v4469
        %v4471 = vpop.f32.mrf.mxu0
        %v4472 = vpop.f32.mrf.mxu0
        %v4473 = vadd.f32 %v4312, %v4472
        %v4474 = vpop.f32.mrf.mxu0
        %4475 = vmatprep.mubr.bf16.mxu0 %v3676
        %4476 = vmatmul.mubr.bf16.gmra.mxu0 %v3667
        %v4477 = vpop.f32.mrf.mxu0
        %v4478 = vadd.f32 %v4317, %v4477
        %v4479 = vpop.f32.mrf.mxu0
        %v4480 = vpop.f32.mrf.mxu0
        %v4481 = vadd.f32 %v4320, %v4480
        %v4482 = vpop.f32.mrf.mxu0
        %4483 = vmatprep.mubr.bf16.mxu0 %v3721
        %4484 = vmatmul.mubr.bf16.gmra.mxu0 %v3712
        %v4485 = vpop.f32.mrf.mxu0
        %v4486 = vadd.f32 %v4325, %v4485
        %v4487 = vpop.f32.mrf.mxu0
        %v4488 = vpop.f32.mrf.mxu0
        %v4489 = vadd.f32 %v4328, %v4488
        %v4490 = vpop.f32.mrf.mxu0
        %4491 = vmatprep.mubr.bf16.mxu0 %v3766
        %4492 = vmatmul.mubr.bf16.gmra.mxu0 %v3757
        %v4493 = vpop.f32.mrf.mxu0
        %v4494 = vadd.f32 %v4333, %v4493
        %v4495 = vpop.f32.mrf.mxu0
        %v4496 = vpop.f32.mrf.mxu0
        %v4497 = vadd.f32 %v4336, %v4496
        %v4498 = vpop.f32.mrf.mxu0
        %4499 = vmatprep.mubr.bf16.mxu0 %v3811
        %4500 = vmatmul.mubr.bf16.gmra.mxu0 %v3802
        %v4501 = vpop.f32.mrf.mxu0
        %v4502 = vadd.f32 %v4341, %v4501
        %v4503 = vpop.f32.mrf.mxu0
        %v4504 = vpop.f32.mrf.mxu0
        %v4505 = vadd.f32 %v4344, %v4504
        %v4506 = vpop.f32.mrf.mxu0
        %4507 = vmatprep.mubr.bf16.mxu0 %v3856
        %4508 = vmatmul.mubr.bf16.gmra.mxu0 %v3847
        %v4509 = vpop.f32.mrf.mxu0
        %v4510 = vadd.f32 %v4349, %v4509
        %v4511 = vpop.f32.mrf.mxu0
        %v4512 = vpop.f32.mrf.mxu0
        %v4513 = vadd.f32 %v4352, %v4512
        %v4514 = vpop.f32.mrf.mxu0
        %4515 = vdwg.mxu0
        %4516 = vmatprep.subr.bf16.mxu0 0
        %4517 = vmatpush1.bf16.msra.mxu0 0
        %4518 = vmatprep.subr.bf16.mxu0 0
        %4519 = vmatpush1.bf16.msra.mxu0 0
        %4520 = vmatprep.subr.bf16.mxu0 0
        %4521 = vmatpush1.bf16.msra.mxu0 0
        %4522 = vmatprep.subr.bf16.mxu0 0
        %4523 = vmatpush1.bf16.msra.mxu0 0
        %4524 = vmatprep.subr.bf16.mxu0 0
        %4525 = vmatpush1.bf16.msra.mxu0 %v4109
        %4526 = vmatprep.subr.bf16.mxu0 0
        %4527 = vmatpush1.bf16.msra.mxu0 %v4108
        %4528 = vmatprep.subr.bf16.mxu0 0
        %4529 = vmatpush1.bf16.msra.mxu0 %v4107
        %4530 = vmatprep.subr.bf16.mxu0 0
        %4531 = vmatpush1.bf16.msra.mxu0 %v4106
        %4532 = vmatprep.subr.bf16.mxu0 0
        %4533 = vmatpush2.bf16.msra.mxu0 0
        %4534 = vmatprep.subr.bf16.mxu0 0
        %4535 = vmatpush2.bf16.msra.mxu0 0
        %4536 = vmatprep.subr.bf16.mxu0 0
        %4537 = vmatpush2.bf16.msra.mxu0 0
        %4538 = vmatprep.subr.bf16.mxu0 0
        %4539 = vmatpush2.bf16.msra.mxu0 0
        %4540 = vmatprep.subr.bf16.mxu0 0
        %4541 = vmatpush2.bf16.msra.mxu0 0
        %4542 = vmatprep.subr.bf16.mxu0 0
        %4543 = vmatpush2.bf16.msra.mxu0 0
        %4544 = vmatprep.subr.bf16.mxu0 0
        %4545 = vmatpush2.bf16.msra.mxu0 0
        %4546 = vmatprep.subr.bf16.mxu0 0
        %4547 = vmatpush2.bf16.msra.mxu0 0
        %4548 = vmatprep.mubr.bf16.mxu0 0
        %4549 = vmatmul.mubr.bf16.gmra.mxu0 %v4147
        %v4550 = vpop.f32.mrf.mxu0
        %v4551 = vadd.f32 %v4390, %v4550
        %v4552 = vpop.f32.mrf.mxu0
        %v4553 = vpop.f32.mrf.mxu0
        %v4554 = vadd.f32 %v4393, %v4553
        %v4555 = vpop.f32.mrf.mxu0
        %4556 = vmatprep.mubr.bf16.mxu0 0
        %4557 = vmatmul.mubr.bf16.gmra.mxu0 %v4150
        %v4558 = vpop.f32.mrf.mxu0
        %v4559 = vadd.f32 %v4398, %v4558
        %v4560 = vpop.f32.mrf.mxu0
        %v4561 = vpop.f32.mrf.mxu0
        %v4562 = vadd.f32 %v4401, %v4561
        %v4563 = vpop.f32.mrf.mxu0
        %4564 = vmatprep.mubr.bf16.mxu0 0
        %4565 = vmatmul.mubr.bf16.gmra.mxu0 %v4153
        %v4566 = vpop.f32.mrf.mxu0
        %v4567 = vadd.f32 %v4406, %v4566
        %v4568 = vpop.f32.mrf.mxu0
        %v4569 = vpop.f32.mrf.mxu0
        %v4570 = vadd.f32 %v4409, %v4569
        %v4571 = vpop.f32.mrf.mxu0
        %4572 = vmatprep.mubr.bf16.mxu0 0
        %4573 = vmatmul.mubr.bf16.gmra.mxu0 %v4156
        %v4574 = vpop.f32.mrf.mxu0
        %v4575 = vadd.f32 %v4414, %v4574
        %v4576 = vpop.f32.mrf.mxu0
        %v4577 = vpop.f32.mrf.mxu0
        %v4578 = vadd.f32 %v4417, %v4577
        %v4579 = vpop.f32.mrf.mxu0
        %4580 = vmatprep.mubr.bf16.mxu0 0
        %4581 = vmatmul.mubr.bf16.gmra.mxu0 %v4159
        %v4582 = vpop.f32.mrf.mxu0
        %v4583 = vadd.f32 %v4422, %v4582
        %v4584 = vpop.f32.mrf.mxu0
        %v4585 = vpop.f32.mrf.mxu0
        %v4586 = vadd.f32 %v4425, %v4585
        %v4587 = vpop.f32.mrf.mxu0
        %4588 = vmatprep.mubr.bf16.mxu0 0
        %4589 = vmatmul.mubr.bf16.gmra.mxu0 %v4162
        %v4590 = vpop.f32.mrf.mxu0
        %v4591 = vadd.f32 %v4430, %v4590
        %v4592 = vpop.f32.mrf.mxu0
        %v4593 = vpop.f32.mrf.mxu0
        %v4594 = vadd.f32 %v4433, %v4593
        %v4595 = vpop.f32.mrf.mxu0
        %4596 = vmatprep.mubr.bf16.mxu0 0
        %4597 = vmatmul.mubr.bf16.gmra.mxu0 %v4165
        %v4598 = vpop.f32.mrf.mxu0
        %v4599 = vadd.f32 %v4438, %v4598
        %v4600 = vpop.f32.mrf.mxu0
        %v4601 = vpop.f32.mrf.mxu0
        %v4602 = vadd.f32 %v4441, %v4601
        %v4603 = vpop.f32.mrf.mxu0
        %4604 = vmatprep.mubr.bf16.mxu0 0
        %4605 = vmatmul.mubr.bf16.gmra.mxu0 %v4168
        %v4606 = vpop.f32.mrf.mxu0
        %v4607 = vadd.f32 %v4446, %v4606
        %v4608 = vpop.f32.mrf.mxu0
        %v4609 = vpop.f32.mrf.mxu0
        %v4610 = vadd.f32 %v4449, %v4609
        %v4611 = vpop.f32.mrf.mxu0
        %4612 = vmatprep.mubr.bf16.mxu0 0
        %4613 = vmatmul.mubr.bf16.gmra.mxu0 %v4171
        %v4614 = vpop.f32.mrf.mxu0
        %v4615 = vadd.f32 %v4454, %v4614
        %v4616 = vpop.f32.mrf.mxu0
        %v4617 = vpop.f32.mrf.mxu0
        %v4618 = vadd.f32 %v4457, %v4617
        %v4619 = vpop.f32.mrf.mxu0
        %4620 = vmatprep.mubr.bf16.mxu0 0
        %4621 = vmatmul.mubr.bf16.gmra.mxu0 %v4174
        %v4622 = vpop.f32.mrf.mxu0
        %v4623 = vadd.f32 %v4462, %v4622
        %v4624 = vpop.f32.mrf.mxu0
        %v4625 = vpop.f32.mrf.mxu0
        %v4626 = vadd.f32 %v4465, %v4625
        %v4627 = vpop.f32.mrf.mxu0
        %4628 = vmatprep.mubr.bf16.mxu0 0
        %4629 = vmatmul.mubr.bf16.gmra.mxu0 %v4177
        %v4630 = vpop.f32.mrf.mxu0
        %v4631 = vadd.f32 %v4470, %v4630
        %v4632 = vpop.f32.mrf.mxu0
        %v4633 = vpop.f32.mrf.mxu0
        %v4634 = vadd.f32 %v4473, %v4633
        %v4635 = vpop.f32.mrf.mxu0
        %4636 = vmatprep.mubr.bf16.mxu0 0
        %4637 = vmatmul.mubr.bf16.gmra.mxu0 %v4180
        %v4638 = vpop.f32.mrf.mxu0
        %v4639 = vadd.f32 %v4478, %v4638
        %v4640 = vpop.f32.mrf.mxu0
        %v4641 = vpop.f32.mrf.mxu0
        %v4642 = vadd.f32 %v4481, %v4641
        %v4643 = vpop.f32.mrf.mxu0
        %4644 = vmatprep.mubr.bf16.mxu0 0
        %4645 = vmatmul.mubr.bf16.gmra.mxu0 %v4183
        %v4646 = vpop.f32.mrf.mxu0
        %v4647 = vadd.f32 %v4486, %v4646
        %v4648 = vpop.f32.mrf.mxu0
        %v4649 = vpop.f32.mrf.mxu0
        %v4650 = vadd.f32 %v4489, %v4649
        %v4651 = vpop.f32.mrf.mxu0
        %4652 = vmatprep.mubr.bf16.mxu0 0
        %4653 = vmatmul.mubr.bf16.gmra.mxu0 %v4186
        %v4654 = vpop.f32.mrf.mxu0
        %v4655 = vadd.f32 %v4494, %v4654
        %v4656 = vpop.f32.mrf.mxu0
        %v4657 = vpop.f32.mrf.mxu0
        %v4658 = vadd.f32 %v4497, %v4657
        %v4659 = vpop.f32.mrf.mxu0
        %4660 = vmatprep.mubr.bf16.mxu0 0
        %4661 = vmatmul.mubr.bf16.gmra.mxu0 %v4189
        %v4662 = vpop.f32.mrf.mxu0
        %v4663 = vadd.f32 %v4502, %v4662
        %v4664 = vpop.f32.mrf.mxu0
        %v4665 = vpop.f32.mrf.mxu0
        %v4666 = vadd.f32 %v4505, %v4665
        %v4667 = vpop.f32.mrf.mxu0
        %4668 = vmatprep.mubr.bf16.mxu0 0
        %4669 = vmatmul.mubr.bf16.gmra.mxu0 %v4192
        %v4670 = vpop.f32.mrf.mxu0
        %v4671 = vadd.f32 %v4510, %v4670
        %v4672 = vpop.f32.mrf.mxu0
        %v4673 = vpop.f32.mrf.mxu0
        %v4674 = vadd.f32 %v4513, %v4673
        %v4675 = vpop.f32.mrf.mxu0
        %4676 = vdwg.mxu0
        %v4677 = vpack.c.bf16 %v4554, %v4551
        %v4678 = vpack.c.bf16 %v4562, %v4559
        %v4679 = vpack.c.bf16 %v4570, %v4567
        %v4680 = vpack.c.bf16 %v4578, %v4575
        %v4681 = vpack.c.bf16 %v4586, %v4583
        %v4682 = vpack.c.bf16 %v4594, %v4591
        %v4683 = vpack.c.bf16 %v4602, %v4599
        %v4684 = vpack.c.bf16 %v4610, %v4607
        %v4685 = vpack.c.bf16 %v4618, %v4615
        %v4686 = vpack.c.bf16 %v4626, %v4623
        %v4687 = vpack.c.bf16 %v4634, %v4631
        %v4688 = vpack.c.bf16 %v4642, %v4639
        %v4689 = vpack.c.bf16 %v4650, %v4647
        %v4690 = vpack.c.bf16 %v4658, %v4655
        %v4691 = vpack.c.bf16 %v4666, %v4663
        %v4692 = vpack.c.bf16 %v4674, %v4671
        %v4701 = vunpack.c.l.b16 %v1191
        %v4702 = vunpack.c.h.b16 %v1191
        %v4703 = vunpack.c.l.b16 %v1192
        %v4704 = vunpack.c.h.b16 %v1192
        %v4705 = vunpack.c.l.b16 %v1193
        %v4706 = vunpack.c.h.b16 %v1193
        %v4707 = vunpack.c.l.b16 %v1194
        %v4708 = vunpack.c.h.b16 %v1194
        %v4709 = vunpack.c.l.b16 %v1195
        %v4710 = vunpack.c.h.b16 %v1195
        %v4711 = vunpack.c.l.b16 %v1196
        %v4712 = vunpack.c.h.b16 %v1196
        %v4713 = vunpack.c.l.b16 %v1197
        %v4714 = vunpack.c.h.b16 %v1197
        %v4715 = vunpack.c.l.b16 %v1198
        %v4716 = vunpack.c.h.b16 %v1198
        %v4717 = vpack.c.b16 %v4703, %v4701
        %v4718 = vpack.c.b16 %v4704, %v4702
        %v4719 = vpack.c.b16 %v4707, %v4705
        %v4720 = vpack.c.b16 %v4708, %v4706
        %v4721 = vpack.c.b16 %v4711, %v4709
        %v4722 = vpack.c.b16 %v4712, %v4710
        %v4723 = vpack.c.b16 %v4715, %v4713
        %v4724 = vpack.c.b16 %v4716, %v4714
        %4733 = vmatprep.subr.bf16.mxu0 0
        %4734 = vmatpush1.bf16.msra.mxu0 %v4684
        %4735 = vmatprep.subr.bf16.mxu0 0
        %4736 = vmatpush1.bf16.msra.mxu0 %v4683
        %4737 = vmatprep.subr.bf16.mxu0 0
        %4738 = vmatpush1.bf16.msra.mxu0 %v4682
        %4739 = vmatprep.subr.bf16.mxu0 0
        %4740 = vmatpush1.bf16.msra.mxu0 %v4681
        %4741 = vmatprep.subr.bf16.mxu0 0
        %4742 = vmatpush1.bf16.msra.mxu0 %v4680
        %4743 = vmatprep.subr.bf16.mxu0 0
        %4744 = vmatpush1.bf16.msra.mxu0 %v4679
        %4745 = vmatprep.subr.bf16.mxu0 0
        %4746 = vmatpush1.bf16.msra.mxu0 %v4678
        %4747 = vmatprep.subr.bf16.mxu0 0
        %4748 = vmatpush1.bf16.msra.mxu0 %v4677
        %4749 = vmatprep.subr.bf16.mxu0 0
        %4750 = vmatpush2.bf16.msra.mxu0 %v4692
        %4751 = vmatprep.subr.bf16.mxu0 0
        %4752 = vmatpush2.bf16.msra.mxu0 %v4691
        %4753 = vmatprep.subr.bf16.mxu0 0
        %4754 = vmatpush2.bf16.msra.mxu0 %v4690
        %4755 = vmatprep.subr.bf16.mxu0 0
        %4756 = vmatpush2.bf16.msra.mxu0 %v4689
        %4757 = vmatprep.subr.bf16.mxu0 0
        %4758 = vmatpush2.bf16.msra.mxu0 %v4688
        %4759 = vmatprep.subr.bf16.mxu0 0
        %4760 = vmatpush2.bf16.msra.mxu0 %v4687
        %4761 = vmatprep.subr.bf16.mxu0 0
        %4762 = vmatpush2.bf16.msra.mxu0 %v4686
        %4763 = vmatprep.subr.bf16.mxu0 0
        %4764 = vmatpush2.bf16.msra.mxu0 %v4685
        %4765 = vmatprep.mubr.bf16.mxu0 %v4718
        %4766 = vmatmul.mubr.bf16.gmra.mxu0 %v4717
        %v4767 = vpop.f32.mrf.mxu0
        %v4768 = vadd.f32 0.0, %v4767
        %v4769 = vpop.f32.mrf.mxu0
        %v4770 = vpop.f32.mrf.mxu0
        %v4771 = vadd.f32 0.0, %v4770
        %v4772 = vpop.f32.mrf.mxu0
        %4773 = vmatprep.mubr.bf16.mxu0 %v4720
        %4774 = vmatmul.mubr.bf16.gmra.mxu0 %v4719
        %v4775 = vpop.f32.mrf.mxu0
        %v4776 = vadd.f32 0.0, %v4775
        %v4777 = vpop.f32.mrf.mxu0
        %v4778 = vpop.f32.mrf.mxu0
        %v4779 = vadd.f32 0.0, %v4778
        %v4780 = vpop.f32.mrf.mxu0
        %4781 = vmatprep.mubr.bf16.mxu0 %v4722
        %4782 = vmatmul.mubr.bf16.gmra.mxu0 %v4721
        %v4783 = vpop.f32.mrf.mxu0
        %v4784 = vadd.f32 0.0, %v4783
        %v4785 = vpop.f32.mrf.mxu0
        %v4786 = vpop.f32.mrf.mxu0
        %v4787 = vadd.f32 0.0, %v4786
        %v4788 = vpop.f32.mrf.mxu0
        %4789 = vmatprep.mubr.bf16.mxu0 %v4724
        %4790 = vmatmul.mubr.bf16.gmra.mxu0 %v4723
        %v4791 = vpop.f32.mrf.mxu0
        %v4792 = vadd.f32 0.0, %v4791
        %v4793 = vpop.f32.mrf.mxu0
        %v4794 = vpop.f32.mrf.mxu0
        %v4795 = vadd.f32 0.0, %v4794
        %v4796 = vpop.f32.mrf.mxu0
        %4797 = vdwg.mxu0
        %v4798 = vsel %vm1199, %v4768, 0.0
        %v4799 = vsel %vm1199, %v4771, 0.0
        %v4800 = vadd.f32 %v4798, %v4799
        %v4801 = vsel %vm1199, %v4776, 0.0
        %v4802 = vadd.f32 %v4800, %v4801
        %v4803 = vsel %vm1199, %v4779, 0.0
        %v4804 = vadd.f32 %v4802, %v4803
        %v4805 = vsel %vm1199, %v4784, 0.0
        %v4806 = vadd.f32 %v4804, %v4805
        %v4807 = vsel %vm1199, %v4787, 0.0
        %v4808 = vadd.f32 %v4806, %v4807
        %v4809 = vsel %vm1199, %v4792, 0.0
        %v4810 = vadd.f32 %v4808, %v4809
        %v4811 = vsel %vm1199, %v4795, 0.0
        %v4812 = vadd.f32 %v4810, %v4811
        %v4813 = vrot.slane %v4812, 4
        %v4814 = vadd.f32 %v4812, %v4813
        %v4815 = vrot.slane %v4814, 2
        %v4816 = vadd.f32 %v4814, %v4815
        %v4817 = vrot.slane %v4816, 1
        %v4818 = vadd.f32 %v4816, %v4817
        %v4819 = vrcp.pop 64.0
        %v4820 = vmul.f32 %v4818, %v4819
        %v4821 = vmul.f32 %v4768, %v4768
        %v4822 = vmul.f32 %v4771, %v4771
        %v4823 = vmul.f32 %v4776, %v4776
        %v4824 = vmul.f32 %v4779, %v4779
        %v4825 = vmul.f32 %v4784, %v4784
        %v4826 = vmul.f32 %v4787, %v4787
        %v4827 = vmul.f32 %v4792, %v4792
        %v4828 = vmul.f32 %v4795, %v4795
        %v4829 = vsel %vm1199, %v4821, 0.0
        %v4830 = vsel %vm1199, %v4822, 0.0
        %v4831 = vadd.f32 %v4829, %v4830
        %v4832 = vsel %vm1199, %v4823, 0.0
        %v4833 = vadd.f32 %v4831, %v4832
        %v4834 = vsel %vm1199, %v4824, 0.0
        %v4835 = vadd.f32 %v4833, %v4834
        %v4836 = vsel %vm1199, %v4825, 0.0
        %v4837 = vadd.f32 %v4835, %v4836
        %v4838 = vsel %vm1199, %v4826, 0.0
        %v4839 = vadd.f32 %v4837, %v4838
        %v4840 = vsel %vm1199, %v4827, 0.0
        %v4841 = vadd.f32 %v4839, %v4840
        %v4842 = vsel %vm1199, %v4828, 0.0
        %v4843 = vadd.f32 %v4841, %v4842
        %v4844 = vrot.slane %v4843, 4
        %v4845 = vadd.f32 %v4843, %v4844
        %v4846 = vrot.slane %v4845, 2
        %v4847 = vadd.f32 %v4845, %v4846
        %v4848 = vrot.slane %v4847, 1
        %v4849 = vadd.f32 %v4847, %v4848
        %v4850 = vmul.f32 %v4849, %v4819
        %v4851 = vmul.f32 %v4820, %v4820
        %v4852 = vsub.f32 %v4850, %v4851
        %v4853 = vmax.f32 %v4852, 0.0
        %v4854 = vadd.f32 %v4853, 1e-05
        %v4855 = vrsqrt.pop %v4854
        %v4856 = vld [vmem:[%s4] sm:$0x1]
        %v4857 = vmul.f32 %v4855, %v4856
        %v4858 = vld [vmem:[%s5] sm:$0x1]
        %v4859 = vmul.f32 %v4820, %v4857
        %v4860 = vsub.f32 %v4858, %v4859
        %v4861 = vlaneseq
        %v4862 = vshrl.u32 %v4861, 7
        %v4863 = vsub.s32 0, %v4862
        %v4864 = vrot.slane %v4857, %v4863
        %v4865 = vmul.f32 %v4768, %v4864
        %v4866 = vmul.f32 %v4771, %v4864
        %v4867 = vmul.f32 %v4776, %v4864
        %v4868 = vmul.f32 %v4779, %v4864
        %v4869 = vmul.f32 %v4784, %v4864
        %v4870 = vmul.f32 %v4787, %v4864
        %v4871 = vmul.f32 %v4792, %v4864
        %v4872 = vmul.f32 %v4795, %v4864
        %v4874 = vlaneseq
        %v4875 = vshrl.u32 %v4874, 7
        %v4876 = vsub.s32 0, %v4875
        %v4877 = vrot.slane %v4860, %v4876
        %v4879 = vadd.f32 %v4865, %v4877
        %v4880 = vadd.f32 %v4866, %v4877
        %v4881 = vadd.f32 %v4867, %v4877
        %v4882 = vadd.f32 %v4868, %v4877
        %v4883 = vadd.f32 %v4869, %v4877
        %v4884 = vadd.f32 %v4870, %v4877
        %v4885 = vadd.f32 %v4871, %v4877
        %v4886 = vadd.f32 %v4872, %v4877
        %v4887 = vmul.f32 %v4879, 0.2
        %v4888 = vmul.f32 %v4880, 0.2
        %v4889 = vmul.f32 %v4881, 0.2
        %v4890 = vmul.f32 %v4882, 0.2
        %v4891 = vmul.f32 %v4883, 0.2
        %v4892 = vmul.f32 %v4884, 0.2
        %v4893 = vmul.f32 %v4885, 0.2
        %v4894 = vmul.f32 %v4886, 0.2
        %v4895 = vmax.f32 %v4879, %v4887
        %v4896 = vmax.f32 %v4880, %v4888
        %v4897 = vmax.f32 %v4881, %v4889
        %v4898 = vmax.f32 %v4882, %v4890
        %v4899 = vmax.f32 %v4883, %v4891
        %v4900 = vmax.f32 %v4884, %v4892
        %v4901 = vmax.f32 %v4885, %v4893
        %v4902 = vmax.f32 %v4886, %v4894
        %v4911 = vrot.slane %v1159, 1
        %v4912 = vrot.slane %v1160, 1
        %v4913 = vsel %vm1553, %v4911, %v4912
        %v4914 = vrot.slane %v1161, 1
        %v4915 = vsel %vm1553, %v4912, %v4914
        %v4916 = vrot.slane %v1162, 1
        %v4917 = vsel %vm1553, %v4914, %v4916
        %v4918 = vrot.slane %v1163, 1
        %v4919 = vsel %vm1553, %v4916, %v4918
        %v4920 = vrot.slane %v1164, 1
        %v4921 = vsel %vm1553, %v4918, %v4920
        %v4922 = vrot.slane %v1165, 1
        %v4923 = vsel %vm1553, %v4920, %v4922
        %v4924 = vrot.slane %v1166, 1
        %v4925 = vsel %vm1553, %v4922, %v4924
        %v4935 = vmul.f32 %v4911, 0.0
        %v4936 = vmul.f32 %v4913, 0.0
        %v4937 = vmul.f32 %v4895, %v4915
        %v4938 = vmul.f32 %v4896, %v4917
        %v4939 = vmul.f32 %v4897, %v4919
        %v4940 = vmul.f32 %v4898, %v4921
        %v4941 = vmul.f32 %v4899, %v4923
        %v4942 = vmul.f32 %v4900, %v4925
        %v4943 = vmul.f32 %v4901, %v4924
        %v4952 = vrot.slane %v1183, 7
        %v4953 = vrot.slane %v1184, 7
        %v4954 = vsel %vm1715, %v4952, %v4953
        %v4955 = vrot.slane %v1185, 7
        %v4956 = vsel %vm1715, %v4953, %v4955
        %v4957 = vrot.slane %v1186, 7
        %v4958 = vsel %vm1715, %v4955, %v4957
        %v4959 = vrot.slane %v1187, 7
        %v4960 = vsel %vm1715, %v4957, %v4959
        %v4961 = vrot.slane %v1188, 7
        %v4962 = vsel %vm1715, %v4959, %v4961
        %v4963 = vrot.slane %v1189, 7
        %v4964 = vsel %vm1715, %v4961, %v4963
        %v4965 = vrot.slane %v1190, 7
        %v4966 = vsel %vm1715, %v4963, %v4965
        %v4976 = vmul.f32 %v4952, 0.0
        %v4977 = vmul.f32 %v4895, %v4954
        %v4978 = vmul.f32 %v4896, %v4956
        %v4979 = vmul.f32 %v4897, %v4958
        %v4980 = vmul.f32 %v4898, %v4960
        %v4981 = vmul.f32 %v4899, %v4962
        %v4982 = vmul.f32 %v4900, %v4964
        %v4983 = vmul.f32 %v4901, %v4966
        %v4984 = vmul.f32 %v4902, %v4965
        %v4985 = vmul.f32 %v4895, %v4913
        %v4986 = vmul.f32 %v4896, %v4915
        %v4987 = vmul.f32 %v4897, %v4917
        %v4988 = vmul.f32 %v4898, %v4919
        %v4989 = vmul.f32 %v4899, %v4921
        %v4990 = vmul.f32 %v4900, %v4923
        %v4991 = vmul.f32 %v4901, %v4925
        %v4992 = vmul.f32 %v4902, %v4924
        %v4993 = vmul.f32 %v4895, %v4952
        %v4994 = vmul.f32 %v4896, %v4954
        %v4995 = vmul.f32 %v4897, %v4956
        %v4996 = vmul.f32 %v4898, %v4958
        %v4997 = vmul.f32 %v4899, %v4960
        %v4998 = vmul.f32 %v4900, %v4962
        %v4999 = vmul.f32 %v4901, %v4964
        %v5000 = vmul.f32 %v4902, %v4966
        %v5001 = vmul.f32 %v4965, 0.0
        %v5002 = vmul.f32 %v4895, %v4911
        %v5003 = vmul.f32 %v4896, %v4913
        %v5004 = vmul.f32 %v4897, %v4915
        %v5005 = vmul.f32 %v4898, %v4917
        %v5006 = vmul.f32 %v4899, %v4919
        %v5007 = vmul.f32 %v4900, %v4921
        %v5008 = vmul.f32 %v4901, %v4923
        %v5009 = vmul.f32 %v4902, %v4925
        %v5010 = vmul.f32 %v4924, 0.0
        %v5011 = vmul.f32 %v4896, %v4952
        %v5012 = vmul.f32 %v4897, %v4954
        %v5013 = vmul.f32 %v4898, %v4956
        %v5014 = vmul.f32 %v4899, %v4958
        %v5015 = vmul.f32 %v4900, %v4960
        %v5016 = vmul.f32 %v4901, %v4962
        %v5017 = vmul.f32 %v4902, %v4964
        %v5018 = vmul.f32 %v4966, 0.0
        %v5026 = vrot.slane %v4895, 1
        %v5027 = vsel %vm1553, %v2006, %v5026
        %v5028 = vrot.slane %v4896, 1
        %v5029 = vsel %vm1553, %v5026, %v5028
        %v5030 = vrot.slane %v4897, 1
        %v5031 = vsel %vm1553, %v5028, %v5030
        %v5032 = vrot.slane %v4898, 1
        %v5033 = vsel %vm1553, %v5030, %v5032
        %v5034 = vrot.slane %v4899, 1
        %v5035 = vsel %vm1553, %v5032, %v5034
        %v5036 = vrot.slane %v4900, 1
        %v5037 = vsel %vm1553, %v5034, %v5036
        %v5038 = vrot.slane %v4901, 1
        %v5039 = vsel %vm1553, %v5036, %v5038
        %5040 = vrot.lane.b32.xlu0 %v5027, 64
        %v5041 = vpop.permute.xlu0 %5040
        %5042 = vrot.lane.b32.xlu0 %v5029, 64
        %v5043 = vpop.permute.xlu0 %5042
        %5044 = vrot.lane.b32.xlu0 %v5031, 64
        %v5045 = vpop.permute.xlu0 %5044
        %5046 = vrot.lane.b32.xlu0 %v5033, 64
        %v5047 = vpop.permute.xlu0 %5046
        %5048 = vrot.lane.b32.xlu0 %v5035, 64
        %v5049 = vpop.permute.xlu0 %5048
        %5050 = vrot.lane.b32.xlu0 %v5037, 64
        %v5051 = vpop.permute.xlu0 %5050
        %5052 = vrot.lane.b32.xlu0 %v5039, 64
        %v5053 = vpop.permute.xlu0 %5052
        %5054 = vrot.lane.b32.xlu0 %v5038, 64
        %v5055 = vpop.permute.xlu0 %5054
        %v5073 = vrot.slane %v4976, 2
        %v5074 = vrot.slane %v4977, 2
        %v5075 = vsel %vm2200, %v5073, %v5074
        %v5076 = vrot.slane %v4978, 2
        %v5077 = vsel %vm2200, %v5074, %v5076
        %v5078 = vrot.slane %v4979, 2
        %v5079 = vsel %vm2200, %v5076, %v5078
        %v5080 = vrot.slane %v4980, 2
        %v5081 = vsel %vm2200, %v5078, %v5080
        %v5082 = vrot.slane %v4981, 2
        %v5083 = vsel %vm2200, %v5080, %v5082
        %v5084 = vrot.slane %v4982, 2
        %v5085 = vsel %vm2200, %v5082, %v5084
        %v5086 = vrot.slane %v4983, 2
        %v5087 = vsel %vm2200, %v5084, %v5086
        %v5088 = vrot.slane %v4984, 2
        %v5089 = vsel %vm2200, %v5086, %v5088
        %5108 = vrot.lane.b32.xlu0 %v4935, 64
        %v5109 = vpop.permute.xlu0 %5108
        %5110 = vrot.lane.b32.xlu0 %v4985, 64
        %v5111 = vpop.permute.xlu0 %5110
        %5112 = vrot.lane.b32.xlu0 %v4986, 64
        %v5113 = vpop.permute.xlu0 %5112
        %5114 = vrot.lane.b32.xlu0 %v4987, 64
        %v5115 = vpop.permute.xlu0 %5114
        %5116 = vrot.lane.b32.xlu0 %v4988, 64
        %v5117 = vpop.permute.xlu0 %5116
        %5118 = vrot.lane.b32.xlu0 %v4989, 64
        %v5119 = vpop.permute.xlu0 %5118
        %5120 = vrot.lane.b32.xlu0 %v4990, 64
        %v5121 = vpop.permute.xlu0 %5120
        %5122 = vrot.lane.b32.xlu0 %v4991, 64
        %v5123 = vpop.permute.xlu0 %5122
        %5124 = vrot.lane.b32.xlu0 %v4992, 64
        %v5125 = vpop.permute.xlu0 %5124
        %v5136 = vrot.slane %v4902, 1
        %v5137 = vsel %vm1553, %v5038, %v5136
        %v5156 = vrot.slane %v4993, 2
        %v5157 = vrot.slane %v4994, 2
        %v5158 = vsel %vm2200, %v5156, %v5157
        %v5159 = vrot.slane %v4995, 2
        %v5160 = vsel %vm2200, %v5157, %v5159
        %v5161 = vrot.slane %v4996, 2
        %v5162 = vsel %vm2200, %v5159, %v5161
        %v5163 = vrot.slane %v4997, 2
        %v5164 = vsel %vm2200, %v5161, %v5163
        %v5165 = vrot.slane %v4998, 2
        %v5166 = vsel %vm2200, %v5163, %v5165
        %v5167 = vrot.slane %v4999, 2
        %v5168 = vsel %vm2200, %v5165, %v5167
        %v5169 = vrot.slane %v5000, 2
        %v5170 = vsel %vm2200, %v5167, %v5169
        %v5171 = vrot.slane %v5001, 2
        %v5172 = vsel %vm2200, %v5169, %v5171
        %5173 = vrot.lane.b32.xlu0 %v5156, 64
        %v5174 = vpop.permute.xlu0 %5173
        %5175 = vrot.lane.b32.xlu0 %v5158, 64
        %v5176 = vpop.permute.xlu0 %5175
        %5177 = vrot.lane.b32.xlu0 %v5160, 64
        %v5178 = vpop.permute.xlu0 %5177
        %5179 = vrot.lane.b32.xlu0 %v5162, 64
        %v5180 = vpop.permute.xlu0 %5179
        %5181 = vrot.lane.b32.xlu0 %v5164, 64
        %v5182 = vpop.permute.xlu0 %5181
        %5183 = vrot.lane.b32.xlu0 %v5166, 64
        %v5184 = vpop.permute.xlu0 %5183
        %5185 = vrot.lane.b32.xlu0 %v5168, 64
        %v5186 = vpop.permute.xlu0 %5185
        %5187 = vrot.lane.b32.xlu0 %v5170, 64
        %v5188 = vpop.permute.xlu0 %5187
        %5189 = vrot.lane.b32.xlu0 %v5172, 64
        %v5190 = vpop.permute.xlu0 %5189
        %v5200 = vsel %vm1553, %v5136, %v2006
        %5201 = vrot.lane.b32.xlu0 %v5028, 64
        %v5202 = vpop.permute.xlu0 %5201
        %5203 = vrot.lane.b32.xlu0 %v5137, 64
        %v5204 = vpop.permute.xlu0 %5203
        %5205 = vrot.lane.b32.xlu0 %v5200, 64
        %v5206 = vpop.permute.xlu0 %5205
        %v5218 = vrot.slane %v5011, 2
        %v5219 = vrot.slane %v5012, 2
        %v5220 = vsel %vm2200, %v5218, %v5219
        %v5221 = vrot.slane %v5013, 2
        %v5222 = vsel %vm2200, %v5219, %v5221
        %v5223 = vrot.slane %v5014, 2
        %v5224 = vsel %vm2200, %v5221, %v5223
        %v5225 = vrot.slane %v5015, 2
        %v5226 = vsel %vm2200, %v5223, %v5225
        %v5227 = vrot.slane %v5016, 2
        %v5228 = vsel %vm2200, %v5225, %v5227
        %v5229 = vrot.slane %v5017, 2
        %v5230 = vsel %vm2200, %v5227, %v5229
        %v5231 = vrot.slane %v5018, 2
        %v5232 = vsel %vm2200, %v5229, %v5231
        %v5233 = vsel %vm2200, %v5231, %v5171
        %v5243 = vsel %vm1199, %v4935, %v2069
        %v5244 = vsel %vm1199, %v4936, %v5041
        %v5245 = vsel %vm1199, %v4937, %v5043
        %v5246 = vsel %vm1199, %v4938, %v5045
        %v5247 = vsel %vm1199, %v4939, %v5047
        %v5248 = vsel %vm1199, %v4940, %v5049
        %v5249 = vsel %vm1199, %v4941, %v5051
        %v5250 = vsel %vm1199, %v4942, %v5053
        %v5251 = vsel %vm1199, %v4943, %v5055
        %v5252 = vsel %vm1199, %v5073, %v5109
        %v5253 = vsel %vm1199, %v5075, %v5111
        %v5254 = vsel %vm1199, %v5077, %v5113
        %v5255 = vsel %vm1199, %v5079, %v5115
        %v5256 = vsel %vm1199, %v5081, %v5117
        %v5257 = vsel %vm1199, %v5083, %v5119
        %v5258 = vsel %vm1199, %v5085, %v5121
        %v5259 = vsel %vm1199, %v5087, %v5123
        %v5260 = vsel %vm1199, %v5089, %v5125
        %v5261 = vsel %vm1199, %v5026, %v5174
        %v5262 = vsel %vm1199, %v5029, %v5176
        %v5263 = vsel %vm1199, %v5031, %v5178
        %v5264 = vsel %vm1199, %v5033, %v5180
        %v5265 = vsel %vm1199, %v5035, %v5182
        %v5266 = vsel %vm1199, %v5037, %v5184
        %v5267 = vsel %vm1199, %v5039, %v5186
        %v5268 = vsel %vm1199, %v5137, %v5188
        %v5269 = vsel %vm1199, %v5136, %v5190
        %v5270 = vsel %vm1199, %v5002, %v5202
        %v5271 = vsel %vm1199, %v5003, %v5045
        %v5272 = vsel %vm1199, %v5004, %v5047
        %v5273 = vsel %vm1199, %v5005, %v5049
        %v5274 = vsel %vm1199, %v5006, %v5051
        %v5275 = vsel %vm1199, %v5007, %v5053
        %v5276 = vsel %vm1199, %v5008, %v5204
        %v5277 = vsel %vm1199, %v5009, %v5206
        %v5278 = vsel %vm1199, %v5010, %v2069
        %v5279 = vpack.c.bf16 %v5244, %v5243
        %v5280 = vpack.c.bf16 %v5253, %v5252
        %v5281 = vpack.c.bf16 %v5262, %v5261
        %v5282 = vpack.c.bf16 %v5271, %v5270
        %v5283 = vpack.c.bf16 %v5220, %v5218
        %v5284 = vpack.c.bf16 %v5246, %v5245
        %v5285 = vpack.c.bf16 %v5255, %v5254
        %v5286 = vpack.c.bf16 %v5264, %v5263
        %v5287 = vpack.c.bf16 %v5273, %v5272
        %v5288 = vpack.c.bf16 %v5224, %v5222
        %v5289 = vpack.c.bf16 %v5248, %v5247
        %v5290 = vpack.c.bf16 %v5257, %v5256
        %v5291 = vpack.c.bf16 %v5266, %v5265
        %v5292 = vpack.c.bf16 %v5275, %v5274
        %v5293 = vpack.c.bf16 %v5228, %v5226
        %v5294 = vpack.c.bf16 %v5250, %v5249
        %v5295 = vpack.c.bf16 %v5259, %v5258
        %v5296 = vpack.c.bf16 %v5268, %v5267
        %v5297 = vpack.c.bf16 %v5277, %v5276
        %v5298 = vpack.c.bf16 %v5232, %v5230
        %v5299 = vpack.c.bf16 %v5251, %v5251
        %v5300 = vpack.c.bf16 %v5260, %v5260
        %v5301 = vpack.c.bf16 %v5269, %v5269
        %v5302 = vpack.c.bf16 %v5278, %v5278
        %v5303 = vpack.c.bf16 %v5233, %v5233
        %v5304 = vld [vmem:[%s8] sm:$0xf]
        %v5305 = vld [vmem:[%s8 + $0x4] sm:$0xf]
        %v5306 = vld [vmem:[%s8 + $0x8] sm:$0xf]
        %v5307 = vld [vmem:[%s8 + $0xc] sm:$0xf]
        %v5308 = vld [vmem:[%s8 + $0x10] sm:$0xf]
        %v5309 = vld [vmem:[%s8 + $0x14] sm:$0xf]
        %v5310 = vld [vmem:[%s8 + $0x18] sm:$0xf]
        %v5311 = vld [vmem:[%s8 + $0x1c] sm:$0xf]
        %v5312 = vld [vmem:[%s8 + $0x20] sm:$0xf]
        %v5313 = vld [vmem:[%s8 + $0x24] sm:$0xf]
        %v5314 = vld [vmem:[%s8 + $0x28] sm:$0xf]
        %v5315 = vld [vmem:[%s8 + $0x2c] sm:$0xf]
        %v5316 = vld [vmem:[%s8 + $0x30] sm:$0xf]
        %v5317 = vld [vmem:[%s8 + $0x34] sm:$0xf]
        %v5318 = vld [vmem:[%s8 + $0x38] sm:$0xf]
        %v5319 = vld [vmem:[%s8 + $0x3c] sm:$0xf]
        %v5320 = vld [vmem:[%s8 + $0x40] sm:$0xf]
        %v5321 = vld [vmem:[%s8 + $0x44] sm:$0xf]
        %v5322 = vld [vmem:[%s8 + $0x48] sm:$0xf]
        %v5323 = vld [vmem:[%s8 + $0x4c] sm:$0xf]
        %v5324 = vld [vmem:[%s8 + $0x50] sm:$0xf]
        %v5325 = vld [vmem:[%s8 + $0x54] sm:$0xf]
        %v5326 = vld [vmem:[%s8 + $0x58] sm:$0xf]
        %v5327 = vld [vmem:[%s8 + $0x5c] sm:$0xf]
        %v5328 = vld [vmem:[%s8 + $0x60] sm:$0xf]
        %v5329 = vld [vmem:[%s8 + $0x64] sm:$0xf]
        %v5330 = vld [vmem:[%s8 + $0x68] sm:$0xf]
        %v5331 = vld [vmem:[%s8 + $0x6c] sm:$0xf]
        %v5332 = vld [vmem:[%s8 + $0x70] sm:$0xf]
        %v5333 = vld [vmem:[%s8 + $0x74] sm:$0xf]
        %v5334 = vld [vmem:[%s8 + $0x78] sm:$0xf]
        %v5335 = vld [vmem:[%s8 + $0x7c] sm:$0xf]
        %v5336 = vld [vmem:[%s8 + $0x80] sm:$0xf]
        %v5337 = vld [vmem:[%s8 + $0x84] sm:$0xf]
        %v5338 = vld [vmem:[%s8 + $0x88] sm:$0xf]
        %v5339 = vld [vmem:[%s8 + $0x8c] sm:$0xf]
        %v5340 = vld [vmem:[%s8 + $0x90] sm:$0xf]
        %v5341 = vld [vmem:[%s8 + $0x94] sm:$0xf]
        %v5342 = vld [vmem:[%s8 + $0x98] sm:$0xf]
        %v5343 = vld [vmem:[%s8 + $0x9c] sm:$0xf]
        %v5344 = vld [vmem:[%s8 + $0xa0] sm:$0xf]
        %v5345 = vld [vmem:[%s8 + $0xa4] sm:$0xf]
        %v5346 = vld [vmem:[%s8 + $0xa8] sm:$0xf]
        %v5347 = vld [vmem:[%s8 + $0xac] sm:$0xf]
        %v5348 = vld [vmem:[%s8 + $0xb0] sm:$0xf]
        %v5349 = vld [vmem:[%s8 + $0xb4] sm:$0xf]
        %v5350 = vld [vmem:[%s8 + $0xb8] sm:$0xf]
        %v5351 = vld [vmem:[%s8 + $0xbc] sm:$0xf]
        %v5352 = vld [vmem:[%s8 + $0xc0] sm:$0xf]
        %v5353 = vld [vmem:[%s8 + $0xc4] sm:$0xf]
        %v5354 = vld [vmem:[%s8 + $0xc8] sm:$0xf]
        %v5355 = vld [vmem:[%s8 + $0xcc] sm:$0xf]
        %v5356 = vld [vmem:[%s8 + $0xd0] sm:$0xf]
        %v5357 = vld [vmem:[%s8 + $0xd4] sm:$0xf]
        %v5358 = vld [vmem:[%s8 + $0xd8] sm:$0xf]
        %v5359 = vld [vmem:[%s8 + $0xdc] sm:$0xf]
        %v5360 = vld [vmem:[%s8 + $0xe0] sm:$0xf]
        %v5361 = vld [vmem:[%s8 + $0xe4] sm:$0xf]
        %v5362 = vld [vmem:[%s8 + $0xe8] sm:$0xf]
        %v5363 = vld [vmem:[%s8 + $0xec] sm:$0xf]
        %v5364 = vld [vmem:[%s8 + $0xf0] sm:$0xf]
        %v5365 = vld [vmem:[%s8 + $0xf4] sm:$0xf]
        %v5366 = vld [vmem:[%s8 + $0xf8] sm:$0xf]
        %v5367 = vld [vmem:[%s8 + $0xfc] sm:$0xf]
        %v5368 = vld [vmem:[%s8 + $0x100] sm:$0xf]
        %v5369 = vld [vmem:[%s8 + $0x104] sm:$0xf]
        %v5370 = vld [vmem:[%s8 + $0x108] sm:$0xf]
        %v5371 = vld [vmem:[%s8 + $0x10c] sm:$0xf]
        %v5372 = vld [vmem:[%s8 + $0x110] sm:$0xf]
        %v5373 = vld [vmem:[%s8 + $0x114] sm:$0xf]
        %v5374 = vld [vmem:[%s8 + $0x118] sm:$0xf]
        %v5375 = vld [vmem:[%s8 + $0x11c] sm:$0xf]
        %v5376 = vld [vmem:[%s9] sm:$0x1]
        %v5378 = vlaneseq
        %v5379 = vshrl.u32 %v5378, 7
        %v5380 = vsub.s32 0, %v5379
        %v5381 = vrot.slane %v5376, %v5380
        %v5384 = vshrl.u32 %v5279, 16
        %v5386 = vrot.slane %v5384, 3
        %v5387 = vshll.u32 %v5279, 16
        %v5389 = vrot.slane %v5387, 4
        %v5390 = vor.u32 %v5386, %v5389
        %v5392 = vshrl.u32 %v5284, 16
        %v5394 = vrot.slane %v5392, 3
        %v5395 = vshll.u32 %v5284, 16
        %v5397 = vrot.slane %v5395, 4
        %v5398 = vor.u32 %v5394, %v5397
        %v5399 = vsel %vm3105, %v5390, %v5398
        %v5401 = vshrl.u32 %v5280, 16
        %v5403 = vrot.slane %v5401, 3
        %v5404 = vshll.u32 %v5280, 16
        %v5406 = vrot.slane %v5404, 4
        %v5407 = vor.u32 %v5403, %v5406
        %v5409 = vshrl.u32 %v5285, 16
        %v5411 = vrot.slane %v5409, 3
        %v5412 = vshll.u32 %v5285, 16
        %v5414 = vrot.slane %v5412, 4
        %v5415 = vor.u32 %v5411, %v5414
        %v5416 = vsel %vm3105, %v5407, %v5415
        %v5418 = vshrl.u32 %v5281, 16
        %v5420 = vrot.slane %v5418, 3
        %v5421 = vshll.u32 %v5281, 16
        %v5423 = vrot.slane %v5421, 4
        %v5424 = vor.u32 %v5420, %v5423
        %v5426 = vshrl.u32 %v5286, 16
        %v5428 = vrot.slane %v5426, 3
        %v5429 = vshll.u32 %v5286, 16
        %v5431 = vrot.slane %v5429, 4
        %v5432 = vor.u32 %v5428, %v5431
        %v5433 = vsel %vm3105, %v5424, %v5432
        %v5435 = vshrl.u32 %v5282, 16
        %v5437 = vrot.slane %v5435, 3
        %v5438 = vshll.u32 %v5282, 16
        %v5440 = vrot.slane %v5438, 4
        %v5441 = vor.u32 %v5437, %v5440
        %v5443 = vshrl.u32 %v5287, 16
        %v5445 = vrot.slane %v5443, 3
        %v5446 = vshll.u32 %v5287, 16
        %v5448 = vrot.slane %v5446, 4
        %v5449 = vor.u32 %v5445, %v5448
        %v5450 = vsel %vm3105, %v5441, %v5449
        %v5452 = vshrl.u32 %v5283, 16
        %v5454 = vrot.slane %v5452, 3
        %v5455 = vshll.u32 %v5283, 16
        %v5457 = vrot.slane %v5455, 4
        %v5458 = vor.u32 %v5454, %v5457
        %v5460 = vshrl.u32 %v5288, 16
        %v5462 = vrot.slane %v5460, 3
        %v5463 = vshll.u32 %v5288, 16
        %v5465 = vrot.slane %v5463, 4
        %v5466 = vor.u32 %v5462, %v5465
        %v5467 = vsel %vm3105, %v5458, %v5466
        %v5469 = vshrl.u32 %v5289, 16
        %v5471 = vrot.slane %v5469, 3
        %v5472 = vshll.u32 %v5289, 16
        %v5474 = vrot.slane %v5472, 4
        %v5475 = vor.u32 %v5471, %v5474
        %v5476 = vsel %vm3105, %v5398, %v5475
        %v5478 = vshrl.u32 %v5290, 16
        %v5480 = vrot.slane %v5478, 3
        %v5481 = vshll.u32 %v5290, 16
        %v5483 = vrot.slane %v5481, 4
        %v5484 = vor.u32 %v5480, %v5483
        %v5485 = vsel %vm3105, %v5415, %v5484
        %v5487 = vshrl.u32 %v5291, 16
        %v5489 = vrot.slane %v5487, 3
        %v5490 = vshll.u32 %v5291, 16
        %v5492 = vrot.slane %v5490, 4
        %v5493 = vor.u32 %v5489, %v5492
        %v5494 = vsel %vm3105, %v5432, %v5493
        %v5496 = vshrl.u32 %v5292, 16
        %v5498 = vrot.slane %v5496, 3
        %v5499 = vshll.u32 %v5292, 16
        %v5501 = vrot.slane %v5499, 4
        %v5502 = vor.u32 %v5498, %v5501
        %v5503 = vsel %vm3105, %v5449, %v5502
        %v5505 = vshrl.u32 %v5293, 16
        %v5507 = vrot.slane %v5505, 3
        %v5508 = vshll.u32 %v5293, 16
        %v5510 = vrot.slane %v5508, 4
        %v5511 = vor.u32 %v5507, %v5510
        %v5512 = vsel %vm3105, %v5466, %v5511
        %v5514 = vshrl.u32 %v5294, 16
        %v5516 = vrot.slane %v5514, 3
        %v5517 = vshll.u32 %v5294, 16
        %v5519 = vrot.slane %v5517, 4
        %v5520 = vor.u32 %v5516, %v5519
        %v5521 = vsel %vm3105, %v5475, %v5520
        %v5523 = vshrl.u32 %v5295, 16
        %v5525 = vrot.slane %v5523, 3
        %v5526 = vshll.u32 %v5295, 16
        %v5528 = vrot.slane %v5526, 4
        %v5529 = vor.u32 %v5525, %v5528
        %v5530 = vsel %vm3105, %v5484, %v5529
        %v5532 = vshrl.u32 %v5296, 16
        %v5534 = vrot.slane %v5532, 3
        %v5535 = vshll.u32 %v5296, 16
        %v5537 = vrot.slane %v5535, 4
        %v5538 = vor.u32 %v5534, %v5537
        %v5539 = vsel %vm3105, %v5493, %v5538
        %v5541 = vshrl.u32 %v5297, 16
        %v5543 = vrot.slane %v5541, 3
        %v5544 = vshll.u32 %v5297, 16
        %v5546 = vrot.slane %v5544, 4
        %v5547 = vor.u32 %v5543, %v5546
        %v5548 = vsel %vm3105, %v5502, %v5547
        %v5550 = vshrl.u32 %v5298, 16
        %v5552 = vrot.slane %v5550, 3
        %v5553 = vshll.u32 %v5298, 16
        %v5555 = vrot.slane %v5553, 4
        %v5556 = vor.u32 %v5552, %v5555
        %v5557 = vsel %vm3105, %v5511, %v5556
        %v5559 = vshrl.u32 %v5299, 16
        %v5561 = vrot.slane %v5559, 3
        %v5562 = vshll.u32 %v5299, 16
        %v5564 = vrot.slane %v5562, 4
        %v5565 = vor.u32 %v5561, %v5564
        %v5566 = vsel %vm3105, %v5520, %v5565
        %v5568 = vshrl.u32 %v5300, 16
        %v5570 = vrot.slane %v5568, 3
        %v5571 = vshll.u32 %v5300, 16
        %v5573 = vrot.slane %v5571, 4
        %v5574 = vor.u32 %v5570, %v5573
        %v5575 = vsel %vm3105, %v5529, %v5574
        %v5577 = vshrl.u32 %v5301, 16
        %v5579 = vrot.slane %v5577, 3
        %v5580 = vshll.u32 %v5301, 16
        %v5582 = vrot.slane %v5580, 4
        %v5583 = vor.u32 %v5579, %v5582
        %v5584 = vsel %vm3105, %v5538, %v5583
        %v5586 = vshrl.u32 %v5302, 16
        %v5588 = vrot.slane %v5586, 3
        %v5589 = vshll.u32 %v5302, 16
        %v5591 = vrot.slane %v5589, 4
        %v5592 = vor.u32 %v5588, %v5591
        %v5593 = vsel %vm3105, %v5547, %v5592
        %v5595 = vshrl.u32 %v5303, 16
        %v5597 = vrot.slane %v5595, 3
        %v5598 = vshll.u32 %v5303, 16
        %v5600 = vrot.slane %v5598, 4
        %v5601 = vor.u32 %v5597, %v5600
        %v5602 = vsel %vm3105, %v5556, %v5601
        %v5691 = vunpack.c.l.b16 %v5304
        %v5692 = vunpack.c.l.b16 %v5305
        %v5693 = vunpack.c.l.b16 %v5306
        %v5694 = vunpack.c.l.b16 %v5307
        %v5695 = vunpack.c.l.b16 %v5308
        %v5696 = vunpack.c.l.b16 %v5309
        %v5697 = vunpack.c.l.b16 %v5310
        %v5698 = vunpack.c.l.b16 %v5311
        %v5699 = vunpack.c.l.b16 %v5312
        %v5700 = vunpack.c.l.b16 %v5313
        %v5701 = vunpack.c.l.b16 %v5314
        %v5702 = vunpack.c.l.b16 %v5315
        %v5703 = vunpack.c.l.b16 %v5316
        %v5704 = vunpack.c.l.b16 %v5317
        %v5705 = vunpack.c.l.b16 %v5318
        %v5706 = vunpack.c.l.b16 %v5319
        %v5707 = vunpack.c.l.b16 %v5320
        %v5708 = vunpack.c.l.b16 %v5321
        %v5709 = vunpack.c.l.b16 %v5322
        %v5710 = vunpack.c.l.b16 %v5323
        %v5711 = vunpack.c.l.b16 %v5324
        %v5712 = vunpack.c.l.b16 %v5325
        %v5713 = vunpack.c.l.b16 %v5326
        %v5714 = vunpack.c.l.b16 %v5327
        %v5715 = vunpack.c.l.b16 %v5328
        %v5716 = vunpack.c.l.b16 %v5329
        %v5717 = vunpack.c.l.b16 %v5330
        %v5718 = vunpack.c.l.b16 %v5331
        %v5719 = vunpack.c.l.b16 %v5332
        %v5720 = vunpack.c.l.b16 %v5333
        %v5721 = vunpack.c.l.b16 %v5334
        %v5722 = vunpack.c.l.b16 %v5335
        %v5723 = vunpack.c.l.b16 %v5336
        %v5724 = vunpack.c.l.b16 %v5337
        %v5725 = vunpack.c.l.b16 %v5338
        %v5726 = vunpack.c.l.b16 %v5339
        %v5727 = vunpack.c.l.b16 %v5340
        %v5728 = vunpack.c.l.b16 %v5341
        %v5729 = vunpack.c.l.b16 %v5342
        %v5730 = vunpack.c.l.b16 %v5343
        %v5731 = vunpack.c.l.b16 %v5344
        %v5732 = vunpack.c.l.b16 %v5345
        %v5733 = vunpack.c.l.b16 %v5346
        %v5734 = vunpack.c.l.b16 %v5347
        %v5735 = vunpack.c.l.b16 %v5348
        %v5736 = vunpack.c.l.b16 %v5349
        %v5737 = vunpack.c.l.b16 %v5350
        %v5738 = vunpack.c.l.b16 %v5351
        %v5739 = vunpack.c.l.b16 %v5352
        %v5740 = vunpack.c.l.b16 %v5353
        %v5741 = vunpack.c.l.b16 %v5354
        %v5742 = vunpack.c.l.b16 %v5355
        %v5743 = vunpack.c.l.b16 %v5356
        %v5744 = vunpack.c.l.b16 %v5357
        %v5745 = vunpack.c.l.b16 %v5358
        %v5746 = vunpack.c.l.b16 %v5359
        %v5747 = vunpack.c.l.b16 %v5360
        %v5748 = vunpack.c.l.b16 %v5361
        %v5749 = vunpack.c.l.b16 %v5362
        %v5750 = vunpack.c.l.b16 %v5363
        %v5751 = vunpack.c.l.b16 %v5364
        %v5752 = vunpack.c.l.b16 %v5365
        %v5753 = vunpack.c.l.b16 %v5366
        %v5754 = vunpack.c.l.b16 %v5367
        %v5755 = vunpack.c.l.b16 %v5368
        %v5756 = vunpack.c.l.b16 %v5369
        %v5757 = vunpack.c.l.b16 %v5370
        %v5758 = vunpack.c.l.b16 %v5371
        %v5759 = vunpack.c.l.b16 %v5372
        %v5760 = vunpack.c.l.b16 %v5373
        %v5761 = vunpack.c.l.b16 %v5374
        %v5762 = vunpack.c.l.b16 %v5375
        %v5763 = vpack.c.b16 %v5692, %v5691
        %v5764 = vpack.c.b16 %v5694, %v5693
        %v5765 = vpack.c.b16 %v5696, %v5695
        %v5766 = vpack.c.b16 %v5698, %v5697
        %v5767 = vpack.c.b16 %v5700, %v5699
        %v5768 = vpack.c.b16 %v5702, %v5701
        %v5769 = vpack.c.b16 %v5704, %v5703
        %v5770 = vpack.c.b16 %v5706, %v5705
        %v5771 = vpack.c.b16 %v5708, %v5707
        %v5772 = vpack.c.b16 %v5710, %v5709
        %v5773 = vpack.c.b16 %v5712, %v5711
        %v5774 = vpack.c.b16 %v5714, %v5713
        %v5775 = vpack.c.b16 %v5716, %v5715
        %v5776 = vpack.c.b16 %v5718, %v5717
        %v5777 = vpack.c.b16 %v5720, %v5719
        %v5778 = vpack.c.b16 %v5722, %v5721
        %v5779 = vpack.c.b16 %v5724, %v5723
        %v5780 = vpack.c.b16 %v5726, %v5725
        %v5781 = vpack.c.b16 %v5728, %v5727
        %v5782 = vpack.c.b16 %v5730, %v5729
        %v5783 = vpack.c.b16 %v5732, %v5731
        %v5784 = vpack.c.b16 %v5734, %v5733
        %v5785 = vpack.c.b16 %v5736, %v5735
        %v5786 = vpack.c.b16 %v5738, %v5737
        %v5787 = vpack.c.b16 %v5740, %v5739
        %v5788 = vpack.c.b16 %v5742, %v5741
        %v5789 = vpack.c.b16 %v5744, %v5743
        %v5790 = vpack.c.b16 %v5746, %v5745
        %v5791 = vpack.c.b16 %v5748, %v5747
        %v5792 = vpack.c.b16 %v5750, %v5749
        %v5793 = vpack.c.b16 %v5752, %v5751
        %v5794 = vpack.c.b16 %v5754, %v5753
        %v5795 = vpack.c.b16 %v5756, %v5755
        %v5796 = vpack.c.b16 %v5758, %v5757
        %v5797 = vpack.c.b16 %v5760, %v5759
        %v5798 = vpack.c.b16 %v5762, %v5761
        %v5836 = vsel %vm1199, %v5467, 0
        %v5839 = vsel %vm1199, %v5512, 0
        %v5842 = vsel %vm1199, %v5557, 0
        %v5845 = vsel %vm1199, %v5602, 0
        %5847 = vmatprep.subr.bf16.mxu0 0
        %5848 = vmatpush1.bf16.msra.mxu0 %v5770
        %5849 = vmatprep.subr.bf16.mxu0 0
        %5850 = vmatpush1.bf16.msra.mxu0 %v5769
        %5851 = vmatprep.subr.bf16.mxu0 0
        %5852 = vmatpush1.bf16.msra.mxu0 %v5768
        %5853 = vmatprep.subr.bf16.mxu0 0
        %5854 = vmatpush1.bf16.msra.mxu0 %v5767
        %5855 = vmatprep.subr.bf16.mxu0 0
        %5856 = vmatpush1.bf16.msra.mxu0 %v5766
        %5857 = vmatprep.subr.bf16.mxu0 0
        %5858 = vmatpush1.bf16.msra.mxu0 %v5765
        %5859 = vmatprep.subr.bf16.mxu0 0
        %5860 = vmatpush1.bf16.msra.mxu0 %v5764
        %5861 = vmatprep.subr.bf16.mxu0 0
        %5862 = vmatpush1.bf16.msra.mxu0 %v5763
        %5863 = vmatprep.subr.bf16.mxu0 0
        %5864 = vmatpush2.bf16.msra.mxu0 %v5778
        %5865 = vmatprep.subr.bf16.mxu0 0
        %5866 = vmatpush2.bf16.msra.mxu0 %v5777
        %5867 = vmatprep.subr.bf16.mxu0 0
        %5868 = vmatpush2.bf16.msra.mxu0 %v5776
        %5869 = vmatprep.subr.bf16.mxu0 0
        %5870 = vmatpush2.bf16.msra.mxu0 %v5775
        %5871 = vmatprep.subr.bf16.mxu0 0
        %5872 = vmatpush2.bf16.msra.mxu0 %v5774
        %5873 = vmatprep.subr.bf16.mxu0 0
        %5874 = vmatpush2.bf16.msra.mxu0 %v5773
        %5875 = vmatprep.subr.bf16.mxu0 0
        %5876 = vmatpush2.bf16.msra.mxu0 %v5772
        %5877 = vmatprep.subr.bf16.mxu0 0
        %5878 = vmatpush2.bf16.msra.mxu0 %v5771
        %5879 = vmatprep.mubr.bf16.mxu0 %v5416
        %5880 = vmatmul.mubr.bf16.gmra.mxu0 %v5399
        %v5881 = vpop.f32.mrf.mxu0
        %v5882 = vadd.f32 %v5381, %v5881
        %v5883 = vpop.f32.mrf.mxu0
        %v5884 = vpop.f32.mrf.mxu0
        %v5885 = vadd.f32 %v5381, %v5884
        %v5886 = vpop.f32.mrf.mxu0
        %5887 = vmatprep.mubr.bf16.mxu0 %v5485
        %5888 = vmatmul.mubr.bf16.gmra.mxu0 %v5476
        %v5889 = vpop.f32.mrf.mxu0
        %v5890 = vadd.f32 %v5381, %v5889
        %v5891 = vpop.f32.mrf.mxu0
        %v5892 = vpop.f32.mrf.mxu0
        %v5893 = vadd.f32 %v5381, %v5892
        %v5894 = vpop.f32.mrf.mxu0
        %5895 = vmatprep.mubr.bf16.mxu0 %v5530
        %5896 = vmatmul.mubr.bf16.gmra.mxu0 %v5521
        %v5897 = vpop.f32.mrf.mxu0
        %v5898 = vadd.f32 %v5381, %v5897
        %v5899 = vpop.f32.mrf.mxu0
        %v5900 = vpop.f32.mrf.mxu0
        %v5901 = vadd.f32 %v5381, %v5900
        %v5902 = vpop.f32.mrf.mxu0
        %5903 = vmatprep.mubr.bf16.mxu0 %v5575
        %5904 = vmatmul.mubr.bf16.gmra.mxu0 %v5566
        %v5905 = vpop.f32.mrf.mxu0
        %v5906 = vadd.f32 %v5381, %v5905
        %v5907 = vpop.f32.mrf.mxu0
        %v5908 = vpop.f32.mrf.mxu0
        %v5909 = vadd.f32 %v5381, %v5908
        %v5910 = vpop.f32.mrf.mxu0
        %5911 = vdwg.mxu0
        %5912 = vmatprep.subr.bf16.mxu0 0
        %5913 = vmatpush1.bf16.msra.mxu0 %v5786
        %5914 = vmatprep.subr.bf16.mxu0 0
        %5915 = vmatpush1.bf16.msra.mxu0 %v5785
        %5916 = vmatprep.subr.bf16.mxu0 0
        %5917 = vmatpush1.bf16.msra.mxu0 %v5784
        %5918 = vmatprep.subr.bf16.mxu0 0
        %5919 = vmatpush1.bf16.msra.mxu0 %v5783
        %5920 = vmatprep.subr.bf16.mxu0 0
        %5921 = vmatpush1.bf16.msra.mxu0 %v5782
        %5922 = vmatprep.subr.bf16.mxu0 0
        %5923 = vmatpush1.bf16.msra.mxu0 %v5781
        %5924 = vmatprep.subr.bf16.mxu0 0
        %5925 = vmatpush1.bf16.msra.mxu0 %v5780
        %5926 = vmatprep.subr.bf16.mxu0 0
        %5927 = vmatpush1.bf16.msra.mxu0 %v5779
        %5928 = vmatprep.subr.bf16.mxu0 0
        %5929 = vmatpush2.bf16.msra.mxu0 %v5794
        %5930 = vmatprep.subr.bf16.mxu0 0
        %5931 = vmatpush2.bf16.msra.mxu0 %v5793
        %5932 = vmatprep.subr.bf16.mxu0 0
        %5933 = vmatpush2.bf16.msra.mxu0 %v5792
        %5934 = vmatprep.subr.bf16.mxu0 0
        %5935 = vmatpush2.bf16.msra.mxu0 %v5791
        %5936 = vmatprep.subr.bf16.mxu0 0
        %5937 = vmatpush2.bf16.msra.mxu0 %v5790
        %5938 = vmatprep.subr.bf16.mxu0 0
        %5939 = vmatpush2.bf16.msra.mxu0 %v5789
        %5940 = vmatprep.subr.bf16.mxu0 0
        %5941 = vmatpush2.bf16.msra.mxu0 %v5788
        %5942 = vmatprep.subr.bf16.mxu0 0
        %5943 = vmatpush2.bf16.msra.mxu0 %v5787
        %5944 = vmatprep.mubr.bf16.mxu0 %v5450
        %5945 = vmatmul.mubr.bf16.gmra.mxu0 %v5433
        %v5946 = vpop.f32.mrf.mxu0
        %v5947 = vadd.f32 %v5882, %v5946
        %v5948 = vpop.f32.mrf.mxu0
        %v5949 = vpop.f32.mrf.mxu0
        %v5950 = vadd.f32 %v5885, %v5949
        %v5951 = vpop.f32.mrf.mxu0
        %5952 = vmatprep.mubr.bf16.mxu0 %v5503
        %5953 = vmatmul.mubr.bf16.gmra.mxu0 %v5494
        %v5954 = vpop.f32.mrf.mxu0
        %v5955 = vadd.f32 %v5890, %v5954
        %v5956 = vpop.f32.mrf.mxu0
        %v5957 = vpop.f32.mrf.mxu0
        %v5958 = vadd.f32 %v5893, %v5957
        %v5959 = vpop.f32.mrf.mxu0
        %5960 = vmatprep.mubr.bf16.mxu0 %v5548
        %5961 = vmatmul.mubr.bf16.gmra.mxu0 %v5539
        %v5962 = vpop.f32.mrf.mxu0
        %v5963 = vadd.f32 %v5898, %v5962
        %v5964 = vpop.f32.mrf.mxu0
        %v5965 = vpop.f32.mrf.mxu0
        %v5966 = vadd.f32 %v5901, %v5965
        %v5967 = vpop.f32.mrf.mxu0
        %5968 = vmatprep.mubr.bf16.mxu0 %v5593
        %5969 = vmatmul.mubr.bf16.gmra.mxu0 %v5584
        %v5970 = vpop.f32.mrf.mxu0
        %v5971 = vadd.f32 %v5906, %v5970
        %v5972 = vpop.f32.mrf.mxu0
        %v5973 = vpop.f32.mrf.mxu0
        %v5974 = vadd.f32 %v5909, %v5973
        %v5975 = vpop.f32.mrf.mxu0
        %5976 = vdwg.mxu0
        %5977 = vmatprep.subr.bf16.mxu0 0
        %5978 = vmatpush1.bf16.msra.mxu0 0
        %5979 = vmatprep.subr.bf16.mxu0 0
        %5980 = vmatpush1.bf16.msra.mxu0 0
        %5981 = vmatprep.subr.bf16.mxu0 0
        %5982 = vmatpush1.bf16.msra.mxu0 0
        %5983 = vmatprep.subr.bf16.mxu0 0
        %5984 = vmatpush1.bf16.msra.mxu0 0
        %5985 = vmatprep.subr.bf16.mxu0 0
        %5986 = vmatpush1.bf16.msra.mxu0 %v5798
        %5987 = vmatprep.subr.bf16.mxu0 0
        %5988 = vmatpush1.bf16.msra.mxu0 %v5797
        %5989 = vmatprep.subr.bf16.mxu0 0
        %5990 = vmatpush1.bf16.msra.mxu0 %v5796
        %5991 = vmatprep.subr.bf16.mxu0 0
        %5992 = vmatpush1.bf16.msra.mxu0 %v5795
        %5993 = vmatprep.subr.bf16.mxu0 0
        %5994 = vmatpush2.bf16.msra.mxu0 0
        %5995 = vmatprep.subr.bf16.mxu0 0
        %5996 = vmatpush2.bf16.msra.mxu0 0
        %5997 = vmatprep.subr.bf16.mxu0 0
        %5998 = vmatpush2.bf16.msra.mxu0 0
        %5999 = vmatprep.subr.bf16.mxu0 0
        %6000 = vmatpush2.bf16.msra.mxu0 0
        %6001 = vmatprep.subr.bf16.mxu0 0
        %6002 = vmatpush2.bf16.msra.mxu0 0
        %6003 = vmatprep.subr.bf16.mxu0 0
        %6004 = vmatpush2.bf16.msra.mxu0 0
        %6005 = vmatprep.subr.bf16.mxu0 0
        %6006 = vmatpush2.bf16.msra.mxu0 0
        %6007 = vmatprep.subr.bf16.mxu0 0
        %6008 = vmatpush2.bf16.msra.mxu0 0
        %6009 = vmatprep.mubr.bf16.mxu0 0
        %6010 = vmatmul.mubr.bf16.gmra.mxu0 %v5836
        %v6011 = vpop.f32.mrf.mxu0
        %v6012 = vadd.f32 %v5947, %v6011
        %v6013 = vpop.f32.mrf.mxu0
        %v6014 = vpop.f32.mrf.mxu0
        %v6015 = vadd.f32 %v5950, %v6014
        %v6016 = vpop.f32.mrf.mxu0
        %6017 = vmatprep.mubr.bf16.mxu0 0
        %6018 = vmatmul.mubr.bf16.gmra.mxu0 %v5839
        %v6019 = vpop.f32.mrf.mxu0
        %v6020 = vadd.f32 %v5955, %v6019
        %v6021 = vpop.f32.mrf.mxu0
        %v6022 = vpop.f32.mrf.mxu0
        %v6023 = vadd.f32 %v5958, %v6022
        %v6024 = vpop.f32.mrf.mxu0
        %6025 = vmatprep.mubr.bf16.mxu0 0
        %6026 = vmatmul.mubr.bf16.gmra.mxu0 %v5842
        %v6027 = vpop.f32.mrf.mxu0
        %v6028 = vadd.f32 %v5963, %v6027
        %v6029 = vpop.f32.mrf.mxu0
        %v6030 = vpop.f32.mrf.mxu0
        %v6031 = vadd.f32 %v5966, %v6030
        %v6032 = vpop.f32.mrf.mxu0
        %6033 = vmatprep.mubr.bf16.mxu0 0
        %6034 = vmatmul.mubr.bf16.gmra.mxu0 %v5845
        %v6035 = vpop.f32.mrf.mxu0
        %v6036 = vadd.f32 %v5971, %v6035
        %v6037 = vpop.f32.mrf.mxu0
        %v6038 = vpop.f32.mrf.mxu0
        %v6039 = vadd.f32 %v5974, %v6038
        %v6040 = vpop.f32.mrf.mxu0
        %6041 = vdwg.mxu0
        %v6042 = vpack.c.bf16 %v407, %v406
        %v6043 = vpack.c.bf16 %v409, %v408
        %v6044 = vpack.c.bf16 %v411, %v410
        %v6045 = vpack.c.bf16 %v413, %v412
        %v6046 = vpack.c.bf16 %v415, %v414
        %v6047 = vpack.c.bf16 %v417, %v416
        %v6048 = vpack.c.bf16 %v419, %v418
        %v6049 = vpack.c.bf16 %v421, %v420
        %v6050 = vpack.c.bf16 %v423, %v422
        %v6051 = vpack.c.bf16 %v425, %v424
        %v6052 = vpack.c.bf16 %v427, %v426
        %v6053 = vpack.c.bf16 %v429, %v428
        %v6054 = vpack.c.bf16 %v431, %v430
        %v6055 = vpack.c.bf16 %v433, %v432
        %v6056 = vpack.c.bf16 %v435, %v434
        %v6057 = vpack.c.bf16 %v437, %v436
        %6058 = vmatprep.subr.bf16.mxu0 0
        %6059 = vmatpush1.bf16.msra.mxu0 %v6049
        %6060 = vmatprep.subr.bf16.mxu0 0
        %6061 = vmatpush1.bf16.msra.mxu0 %v6048
        %6062 = vmatprep.subr.bf16.mxu0 0
        %6063 = vmatpush1.bf16.msra.mxu0 %v6047
        %6064 = vmatprep.subr.bf16.mxu0 0
        %6065 = vmatpush1.bf16.msra.mxu0 %v6046
        %6066 = vmatprep.subr.bf16.mxu0 0
        %6067 = vmatpush1.bf16.msra.mxu0 %v6045
        %6068 = vmatprep.subr.bf16.mxu0 0
        %6069 = vmatpush1.bf16.msra.mxu0 %v6044
        %6070 = vmatprep.subr.bf16.mxu0 0
        %6071 = vmatpush1.bf16.msra.mxu0 %v6043
        %6072 = vmatprep.subr.bf16.mxu0 0
        %6073 = vmatpush1.bf16.msra.mxu0 %v6042
        %6074 = vmatprep.subr.bf16.mxu0 0
        %6075 = vmatpush2.bf16.msra.mxu0 %v6057
        %6076 = vmatprep.subr.bf16.mxu0 0
        %6077 = vmatpush2.bf16.msra.mxu0 %v6056
        %6078 = vmatprep.subr.bf16.mxu0 0
        %6079 = vmatpush2.bf16.msra.mxu0 %v6055
        %6080 = vmatprep.subr.bf16.mxu0 0
        %6081 = vmatpush2.bf16.msra.mxu0 %v6054
        %6082 = vmatprep.subr.bf16.mxu0 0
        %6083 = vmatpush2.bf16.msra.mxu0 %v6053
        %6084 = vmatprep.subr.bf16.mxu0 0
        %6085 = vmatpush2.bf16.msra.mxu0 %v6052
        %6086 = vmatprep.subr.bf16.mxu0 0
        %6087 = vmatpush2.bf16.msra.mxu0 %v6051
        %6088 = vmatprep.subr.bf16.mxu0 0
        %6089 = vmatpush2.bf16.msra.mxu0 %v6050
        %6090 = vmatprep.mubr.bf16.mxu0 %v4718
        %6091 = vmatmul.mubr.bf16.gmra.mxu0 %v4717
        %v6092 = vpop.f32.mrf.mxu0
        %v6093 = vadd.f32 0.0, %v6092
        %v6094 = vpop.f32.mrf.mxu0
        %v6095 = vpop.f32.mrf.mxu0
        %v6096 = vadd.f32 0.0, %v6095
        %v6097 = vpop.f32.mrf.mxu0
        %6098 = vmatprep.mubr.bf16.mxu0 %v4720
        %6099 = vmatmul.mubr.bf16.gmra.mxu0 %v4719
        %v6100 = vpop.f32.mrf.mxu0
        %v6101 = vadd.f32 0.0, %v6100
        %v6102 = vpop.f32.mrf.mxu0
        %v6103 = vpop.f32.mrf.mxu0
        %v6104 = vadd.f32 0.0, %v6103
        %v6105 = vpop.f32.mrf.mxu0
        %6106 = vmatprep.mubr.bf16.mxu0 %v4722
        %6107 = vmatmul.mubr.bf16.gmra.mxu0 %v4721
        %v6108 = vpop.f32.mrf.mxu0
        %v6109 = vadd.f32 0.0, %v6108
        %v6110 = vpop.f32.mrf.mxu0
        %v6111 = vpop.f32.mrf.mxu0
        %v6112 = vadd.f32 0.0, %v6111
        %v6113 = vpop.f32.mrf.mxu0
        %6114 = vmatprep.mubr.bf16.mxu0 %v4724
        %6115 = vmatmul.mubr.bf16.gmra.mxu0 %v4723
        %v6116 = vpop.f32.mrf.mxu0
        %v6117 = vadd.f32 0.0, %v6116
        %v6118 = vpop.f32.mrf.mxu0
        %v6119 = vpop.f32.mrf.mxu0
        %v6120 = vadd.f32 0.0, %v6119
        %v6121 = vpop.f32.mrf.mxu0
        %6122 = vdwg.mxu0
        %v6123 = vpack.c.bf16 %v6096, %v6093
        %v6124 = vpack.c.bf16 %v6104, %v6101
        %v6125 = vpack.c.bf16 %v6112, %v6109
        %v6126 = vpack.c.bf16 %v6120, %v6117
        %v6127 = vld [vmem:[%s10] sm:$0xf]
        %v6128 = vld [vmem:[%s10 + $0x4] sm:$0xf]
        %v6129 = vld [vmem:[%s10 + $0x8] sm:$0xf]
        %v6130 = vld [vmem:[%s10 + $0xc] sm:$0xf]
        %v6131 = vld [vmem:[%s10 + $0x10] sm:$0xf]
        %v6132 = vld [vmem:[%s10 + $0x14] sm:$0xf]
        %v6133 = vld [vmem:[%s10 + $0x18] sm:$0xf]
        %v6134 = vld [vmem:[%s10 + $0x1c] sm:$0xf]
        %v6143 = vunpack.c.l.b16 %v6127
        %v6144 = vunpack.c.l.b16 %v6128
        %v6145 = vunpack.c.l.b16 %v6129
        %v6146 = vunpack.c.l.b16 %v6130
        %v6147 = vunpack.c.l.b16 %v6131
        %v6148 = vunpack.c.l.b16 %v6132
        %v6149 = vunpack.c.l.b16 %v6133
        %v6150 = vunpack.c.l.b16 %v6134
        %v6151 = vpack.c.b16 %v6144, %v6143
        %v6152 = vpack.c.b16 %v6146, %v6145
        %v6153 = vpack.c.b16 %v6148, %v6147
        %v6154 = vpack.c.b16 %v6150, %v6149
        %v6160 = vsel %vm1199, %v6123, 0
        %v6163 = vsel %vm1199, %v6124, 0
        %v6166 = vsel %vm1199, %v6125, 0
        %v6169 = vsel %vm1199, %v6126, 0
        %6171 = vmatprep.subr.bf16.mxu0 0
        %6172 = vmatpush1.bf16.msra.mxu0 0
        %6173 = vmatprep.subr.bf16.mxu0 0
        %6174 = vmatpush1.bf16.msra.mxu0 0
        %6175 = vmatprep.subr.bf16.mxu0 0
        %6176 = vmatpush1.bf16.msra.mxu0 0
        %6177 = vmatprep.subr.bf16.mxu0 0
        %6178 = vmatpush1.bf16.msra.mxu0 0
        %6179 = vmatprep.subr.bf16.mxu0 0
        %6180 = vmatpush1.bf16.msra.mxu0 %v6154
        %6181 = vmatprep.subr.bf16.mxu0 0
        %6182 = vmatpush1.bf16.msra.mxu0 %v6153
        %6183 = vmatprep.subr.bf16.mxu0 0
        %6184 = vmatpush1.bf16.msra.mxu0 %v6152
        %6185 = vmatprep.subr.bf16.mxu0 0
        %6186 = vmatpush1.bf16.msra.mxu0 %v6151
        %6187 = vmatprep.subr.bf16.mxu0 0
        %6188 = vmatpush2.bf16.msra.mxu0 0
        %6189 = vmatprep.subr.bf16.mxu0 0
        %6190 = vmatpush2.bf16.msra.mxu0 0
        %6191 = vmatprep.subr.bf16.mxu0 0
        %6192 = vmatpush2.bf16.msra.mxu0 0
        %6193 = vmatprep.subr.bf16.mxu0 0
        %6194 = vmatpush2.bf16.msra.mxu0 0
        %6195 = vmatprep.subr.bf16.mxu0 0
        %6196 = vmatpush2.bf16.msra.mxu0 0
        %6197 = vmatprep.subr.bf16.mxu0 0
        %6198 = vmatpush2.bf16.msra.mxu0 0
        %6199 = vmatprep.subr.bf16.mxu0 0
        %6200 = vmatpush2.bf16.msra.mxu0 0
        %6201 = vmatprep.subr.bf16.mxu0 0
        %6202 = vmatpush2.bf16.msra.mxu0 0
        %6203 = vmatprep.mubr.bf16.mxu0 0
        %6204 = vmatmul.mubr.bf16.gmra.mxu0 %v6160
        %v6205 = vpop.f32.mrf.mxu0
        %v6206 = vadd.f32 %v6012, %v6205
        %v6207 = vpop.f32.mrf.mxu0
        %v6208 = vpop.f32.mrf.mxu0
        %v6209 = vadd.f32 %v6015, %v6208
        %v6210 = vpop.f32.mrf.mxu0
        %6211 = vmatprep.mubr.bf16.mxu0 0
        %6212 = vmatmul.mubr.bf16.gmra.mxu0 %v6163
        %v6213 = vpop.f32.mrf.mxu0
        %v6214 = vadd.f32 %v6020, %v6213
        %v6215 = vpop.f32.mrf.mxu0
        %v6216 = vpop.f32.mrf.mxu0
        %v6217 = vadd.f32 %v6023, %v6216
        %v6218 = vpop.f32.mrf.mxu0
        %6219 = vmatprep.mubr.bf16.mxu0 0
        %6220 = vmatmul.mubr.bf16.gmra.mxu0 %v6166
        %v6221 = vpop.f32.mrf.mxu0
        %v6222 = vadd.f32 %v6028, %v6221
        %v6223 = vpop.f32.mrf.mxu0
        %v6224 = vpop.f32.mrf.mxu0
        %v6225 = vadd.f32 %v6031, %v6224
        %v6226 = vpop.f32.mrf.mxu0
        %6227 = vmatprep.mubr.bf16.mxu0 0
        %6228 = vmatmul.mubr.bf16.gmra.mxu0 %v6169
        %v6229 = vpop.f32.mrf.mxu0
        %v6230 = vadd.f32 %v6036, %v6229
        %v6231 = vpop.f32.mrf.mxu0
        %v6232 = vpop.f32.mrf.mxu0
        %v6233 = vadd.f32 %v6039, %v6232
        %v6234 = vpop.f32.mrf.mxu0
        %6235 = vdwg.mxu0
        %v6236 = vmul.f32 %v6206, 0.70710677
        %v6237 = vmul.f32 %v6209, 0.70710677
        %v6238 = vmul.f32 %v6214, 0.70710677
        %v6239 = vmul.f32 %v6217, 0.70710677
        %v6240 = vmul.f32 %v6222, 0.70710677
        %v6241 = vmul.f32 %v6225, 0.70710677
        %v6242 = vmul.f32 %v6230, 0.70710677
        %v6243 = vmul.f32 %v6233, 0.70710677
        %6244 = vst [vmem:[%s404] sm:$0xff] %v6236
        %6245 = vst [vmem:[%s404 + $0x8] sm:$0xff] %v6237
        %6246 = vst [vmem:[%s404 + $0x10] sm:$0xff] %v6238
        %6247 = vst [vmem:[%s404 + $0x18] sm:$0xff] %v6239
        %6248 = vst [vmem:[%s404 + $0x20] sm:$0xff] %v6240
        %6249 = vst [vmem:[%s404 + $0x28] sm:$0xff] %v6241
        %6250 = vst [vmem:[%s404 + $0x30] sm:$0xff] %v6242
        %6251 = vst [vmem:[%s404 + $0x38] sm:$0xff] %v6243
        %s6252 = sand.u32 %s272, 1
        %s6253 = scalar_lea.sflag [#allocation4], %s6252
        %s6254 = sand.u32 %s272, 1
        %s6255 = smul.addr %s6254, 64
        %s6256 = scalar_lea.vmem [#allocation5], %s6255
        // Predicated region
        $region69: #{resblk_forward.1} parent=63 // pred_check
          %p6257 = pneg %p282
        $region70: #{resblk_forward.1} parent=63 // pred_check_branch
          %6259 = sbr.rel (%p6257) target = $region72
        $region71: #{resblk_forward.1} parent=63 // pred_region
          %s6261 = ssub.s32 1024, 1024
          %6262 = vsyncadd %s6253, %s6261
          %s6263 = smul.addr %s28, 8
          %s6264 = smul.addr %s6263, 128
          %s6265 = scalar_lea.hbm %s11, %s6264
          %s6266 = sshll.u32 %s6256, 4
          %s6267 = int_to_ptr.vmem [resolvable:$true] %s6266
          %6272 = dma.vmem_to_hbm [thread:$0]  %s6267, 1024, %s6265, %s6253, 128, 128, 8
        $region72: #{resblk_forward.1} parent=63 // pred_fallthru
          _
      $region64: #{resblk_forward.1} parent=5 // pred_fallthru
        _
      %p6273 = scmp.le.s32.totalorder 2, %s23
      // Predicated region
      $region73: #{resblk_forward.1} parent=5 // pred_check
        %p6274 = pneg %p6273
      $region74: #{resblk_forward.1} parent=5 // pred_check_branch
        %6276 = sbr.rel (%p6274) target = $region76
      $region75: #{resblk_forward.1} parent=5 // pred_region
        %s6277 = ssub.s32 %s23, 2
        // Predicated region
        $region77: #{resblk_forward.1} parent=75 // pred_check
          %p6278 = pneg %p288
        $region78: #{resblk_forward.1} parent=75 // pred_check_branch
          %6280 = sbr.rel (%p6278) target = $region80
        $region79: #{resblk_forward.1} parent=75 // pred_region
          %s6281 = sand.u32 %s273, 1
          %s6282 = scalar_lea.sflag [#allocation4], %s6281
          %s6283 = sand.u32 %s273, 1
          %s6284 = smul.addr %s6283, 64
          %s6285 = scalar_lea.vmem [#allocation5], %s6284
          %6286 = dma.done %s6282, 1024
        $region80: #{resblk_forward.1} parent=75 // pred_fallthru
          _
      $region76: #{resblk_forward.1} parent=5 // pred_fallthru
        _
    $region6: #{resblk_forward.1} parent=1 // loop_footer
      %s27 = sadd.s32 1, %s23
    $region7: #{resblk_forward.1} parent=1 // loop_footer_branch
      %22 = sbr.rel target = $region3
    $region8: #{resblk_forward.1} parent=1 // loop_exit
      _
    %6287 = vsyncpa [#allocation3], 1
    %s6288 = scalar_lea.sflag [#allocation3], 1
    %6289 = vsyncpa %s6288, 1
    %6290 = vsyncpa [#allocation4], 1
    %s6291 = scalar_lea.sflag [#allocation4], 1
    %6292 = vsyncpa %s6291, 1

</llo_original>
